<compile_context>
chip_gen: v7x
topology: tpu7x:2x2x1
jax: 0.10.0
libtpu: 0.0.40
codegen_flags: <defaults>
</compile_context>

<pallas_src>
import jax
import jax.numpy as jnp
import numpy as np
from jax.experimental import pallas as pl
from jax.experimental.pallas import tpu as pltpu

# ---- model dims (match the PyTorch module) -------------------------------
STATE_SIZE = 24          # state dim (x.unsqueeze(0) -> (1, STATE_SIZE))
S_PAD = 32               # state padded to a multiple of 8 sublanes
ACTION_SIZE = 4          # action_size.shape[0]
H1, H2 = 256, 128        # hidden widths
LSTM_H = 128
HEAD_W = 128             # packed head lane width (critic | actor | actor2 | zero-pad)

# rollout / batching
T_STEPS = 32             # timesteps, all inside one pallas grid point
BATCH = 128              # independent env states on the sublane axis
B_TILE = 64              # batch tile per grid point (2 tiles -> 2 TCs on v7x)

# ---- packed weight layout: one (W_ROWS, 512) bf16 buffer, sliced in-kernel ----
R1, R2, R3, R4 = 0, 32, 288, 544          # linear_1..4 row offsets
RG, RH = 672, 928                         # fused LSTM gates / fused heads
W_ROWS = 1056
# packed bias layout: one (B_TILE, B_COLS) f32 slab (row pre-replicated)
C1, C2, C3, C4, CG, CH = 0, 256, 512, 640, 768, 1280
B_COLS = 1408


def network_kernel(x_ref, hx0_ref, cx0_ref, w_ref, b_ref,
                   heads_ref, hx_out_ref, cx_out_ref, hx_s, cx_s):
    # per-batch-tile recurrent carry initialization (each grid point independent)
    hx_s[...] = hx0_ref[...]
    cx_s[...] = cx0_ref[...]

    def dense(v_bf16, r0, k, c0, n):
        # bf16 x bf16 MXU matmul, f32 accumulation, f32 bias vadd
        return (jnp.dot(v_bf16, w_ref[r0:r0 + k, 0:n],
                        preferred_element_type=jnp.float32)
                + b_ref[:, c0:c0 + n])

    @pl.loop(0, T_STEPS)
    def _step(t):
        x = x_ref[t].astype(jnp.bfloat16)                   # (B_TILE, S_PAD)

        def layer(v, r0, k, c0, n):
            y = dense(v, r0, k, c0, n)
            y = jnp.maximum(y, 0.1 * y)                     # F.leaky_relu(., 0.1)
            return y.astype(jnp.bfloat16)

        h1 = layer(x,  R1, S_PAD, C1, H1)                   # linear_1 (24->256, zero-pad K)
        h2 = layer(h1, R2, H1,    C2, H1)                   # linear_2 (256->256)
        h3 = layer(h2, R3, H1,    C3, H2)                   # linear_3 (256->128)
        h4 = layer(h3, R4, H2,    C4, H2)                   # linear_4 (128->128)

        # LSTMCell, fused gate matmul: [x ; hx] (B,256) @ [Wih ; Whh] (256,512)
        h_prev = hx_s[...]
        c_prev = cx_s[...]
        xh = jnp.concatenate([h4, h_prev.astype(jnp.bfloat16)], axis=-1)
        gates = dense(xh, RG, 2 * H2, CG, 4 * LSTM_H)       # bih + bhh pre-summed
        i = jax.nn.sigmoid(gates[:, 0 * LSTM_H:1 * LSTM_H]) # PyTorch gate order i,f,g,o
        f = jax.nn.sigmoid(gates[:, 1 * LSTM_H:2 * LSTM_H])
        g = jnp.tanh(gates[:, 2 * LSTM_H:3 * LSTM_H])
        o = jax.nn.sigmoid(gates[:, 3 * LSTM_H:4 * LSTM_H])
        c_new = f * c_prev + i * g
        h_new = o * jnp.tanh(c_new)

        # fused heads: one (128,128) matmul, one lane-dense (B_TILE,128) store
        heads_ref[t] = dense(h_new.astype(jnp.bfloat16), RH, LSTM_H, CH, HEAD_W)

        hx_s[...] = h_new
        cx_s[...] = c_new

    # carries written to HBM exactly once, after the rollout loop
    hx_out_ref[...] = hx_s[...]
    cx_out_ref[...] = cx_s[...]


def network_forward(x_seq, hx, cx, W_all, b_rep):
    """x_seq: (T, B, STATE_SIZE) f32; hx, cx: (B, LSTM_H) f32; packed params."""
    T, B, S = x_seq.shape
    x_pad = jnp.pad(x_seq, ((0, 0), (0, 0), (0, S_PAD - S)))
    n_tiles = B // B_TILE

    flops = 2 * T * B * (S_PAD * H1 + H1 * H1 + H1 * H2 + H2 * H2
                         + 2 * H2 * 4 * LSTM_H + H2 * HEAD_W)
    bytes_accessed = (2 * W_all.size + 4 * b_rep.size + 4 * x_pad.size
                      + 4 * 4 * hx.size + 4 * T * B * HEAD_W)

    grid_spec = pltpu.PrefetchScalarGridSpec(
        num_scalar_prefetch=0,
        grid=(n_tiles,),
        in_specs=[
            pl.BlockSpec((T, B_TILE, S_PAD), lambda i: (0, i, 0)),    # whole rollout, one tile
            pl.BlockSpec((B_TILE, LSTM_H), lambda i: (i, 0)),         # hx0 tile
            pl.BlockSpec((B_TILE, LSTM_H), lambda i: (i, 0)),         # cx0 tile
            pl.BlockSpec((W_ROWS, 512), lambda i: (0, 0)),            # all weights (bf16), one DMA
            pl.BlockSpec((B_TILE, B_COLS), lambda i: (0, 0)),         # all biases, pre-replicated
        ],
        out_specs=[
            pl.BlockSpec((T, B_TILE, HEAD_W), lambda i: (0, i, 0)),   # packed heads, whole rollout
            pl.BlockSpec((B_TILE, LSTM_H), lambda i: (i, 0)),         # final hx
            pl.BlockSpec((B_TILE, LSTM_H), lambda i: (i, 0)),         # final cx
        ],
        scratch_shapes=[pltpu.VMEM((B_TILE, LSTM_H), jnp.float32),    # hx carry
                        pltpu.VMEM((B_TILE, LSTM_H), jnp.float32)],   # cx carry
    )

    heads, hx_out, cx_out = pl.pallas_call(
        network_kernel,
        out_shape=(
            jax.ShapeDtypeStruct((T, B, HEAD_W), jnp.float32),
            jax.ShapeDtypeStruct((B, LSTM_H), jnp.float32),
            jax.ShapeDtypeStruct((B, LSTM_H), jnp.float32),
        ),
        grid_spec=grid_spec,
        compiler_params=pltpu.CompilerParams(
            dimension_semantics=("parallel",),            # batch tiles -> 2 TCs on v7x
            vmem_limit_bytes=32 * 1024 * 1024),
        cost_estimate=pl.CostEstimate(flops=flops,
                                      transcendentals=T * B * 5 * LSTM_H,
                                      bytes_accessed=bytes_accessed),
    )(x_pad, hx, cx, W_all, b_rep)

    critic = heads[..., 0:1]
    a = heads[..., 1:1 + ACTION_SIZE]
    actor = a / (1.0 + jnp.abs(a))                                    # F.softsign(actor_head)
    actor2 = heads[..., 1 + ACTION_SIZE:1 + 2 * ACTION_SIZE]
    return critic, actor, actor2, hx_out, cx_out


network_forward_jit = jax.jit(network_forward)


# ---- parameter init (mimics the PyTorch __init__; weights stored as (in, out)) ----
def init_params(key):
    gain = np.sqrt(2.0 / (1.0 + 0.01 ** 2))  # nn.init.calculate_gain('leaky_relu')
    keys = iter(jax.random.split(key, 32))

    def linear(fan_in, fan_out, weight_gain=1.0, zero_bias=False, xavier=False):
        kw, kb = next(keys), next(keys)
        if xavier:
            limit = weight_gain * np.sqrt(6.0 / (fan_in + fan_out))
            w = jax.random.uniform(kw, (fan_in, fan_out), jnp.float32, -limit, limit)
        else:
            k = 1.0 / np.sqrt(fan_in)
            w = jax.random.uniform(kw, (fan_in, fan_out), jnp.float32, -k, k) * weight_gain
        if zero_bias:
            b = jnp.zeros((1, fan_out), jnp.float32)
        else:
            k = 1.0 / np.sqrt(fan_in)
            b = jax.random.uniform(kb, (1, fan_out), jnp.float32, -k, k)
        return w, b

    w1, b1 = linear(STATE_SIZE, H1, weight_gain=gain)
    w2, b2 = linear(H1, H1, weight_gain=gain)
    w3, b3 = linear(H1, H2, weight_gain=gain)
    w4, b4 = linear(H2, H2, weight_gain=gain)

    k = 1.0 / np.sqrt(LSTM_H)
    wih = jax.random.uniform(next(keys), (H2, 4 * LSTM_H), jnp.float32, -k, k)
    whh = jax.random.uniform(next(keys), (LSTM_H, 4 * LSTM_H), jnp.float32, -k, k)
    bih = jnp.zeros((1, 4 * LSTM_H), jnp.float32)
    bhh = jnp.zeros((1, 4 * LSTM_H), jnp.float32)

    wa, ba = linear(LSTM_H, ACTION_SIZE, weight_gain=gain, zero_bias=True, xavier=True)
    wa2, ba2 = linear(LSTM_H, ACTION_SIZE, weight_gain=gain, zero_bias=True, xavier=True)
    wc, bc = linear(LSTM_H, 1, weight_gain=gain, zero_bias=True, xavier=True)

    return [w1, b1, w2, b2, w3, b3, w4, b4,
            wih, bih, whh, bhh,
            wc, bc, wa, ba, wa2, ba2]


def pack_params(raw):
    (w1, b1, w2, b2, w3, b3, w4, b4,
     wih, bih, whh, bhh, wc, bc, wa, ba, wa2, ba2) = raw

    W = jnp.zeros((W_ROWS, 512), jnp.float32)
    W = W.at[R1:R1 + STATE_SIZE, 0:H1].set(w1)                 # rows 24..31 stay zero (pad)
    W = W.at[R2:R2 + H1, 0:H1].set(w2)
    W = W.at[R3:R3 + H1, 0:H2].set(w3)
    W = W.at[R4:R4 + H2, 0:H2].set(w4)
    W = W.at[RG:RG + H2, 0:4 * LSTM_H].set(wih)                # [Wih ; Whh] fused
    W = W.at[RG + H2:RG + 2 * H2, 0:4 * LSTM_H].set(whh)
    W = W.at[RH:RH + LSTM_H, 0:1].set(wc)                      # heads packed into 128 lanes
    W = W.at[RH:RH + LSTM_H, 1:1 + ACTION_SIZE].set(wa)
    W = W.at[RH:RH + LSTM_H, 1 + ACTION_SIZE:1 + 2 * ACTION_SIZE].set(wa2)
    W = W.astype(jnp.bfloat16)                                 # MXU-native operand dtype

    b = jnp.zeros((1, B_COLS), jnp.float32)
    b = b.at[:, C1:C1 + H1].set(b1)
    b = b.at[:, C2:C2 + H1].set(b2)
    b = b.at[:, C3:C3 + H2].set(b3)
    b = b.at[:, C4:C4 + H2].set(b4)
    b = b.at[:, CG:CG + 4 * LSTM_H].set(bih + bhh)             # pre-summed LSTM biases
    b = b.at[:, CH:CH + 1].set(bc)
    b = b.at[:, CH + 1:CH + 1 + ACTION_SIZE].set(ba)
    b = b.at[:, CH + 1 + ACTION_SIZE:CH + 1 + 2 * ACTION_SIZE].set(ba2)
    b_rep = jnp.tile(b, (B_TILE, 1))                           # pre-replicated -> plain vadd
    return W, b_rep


def reference_forward(x_seq, hx, cx, raw):
    """Pure-JAX reference (unfused per-step loop).  Matmul operands are rounded to
    bf16 exactly as the kernel does; everything else stays f32."""
    (w1, b1, w2, b2, w3, b3, w4, b4,
     wih, bih, whh, bhh, wc, bc, wa, ba, wa2, ba2) = raw
    bf = lambda v: v.astype(jnp.bfloat16).astype(jnp.float32)
    lrelu = lambda v: jnp.maximum(v, 0.1 * v)
    critics, actors, actor2s = [], [], []
    for t in range(x_seq.shape[0]):
        x = x_seq[t]
        x = lrelu(bf(x) @ bf(w1) + b1)
        x = lrelu(bf(x) @ bf(w2) + b2)
        x = lrelu(bf(x) @ bf(w3) + b3)
        x = lrelu(bf(x) @ bf(w4) + b4)
        gates = bf(x) @ bf(wih) + bih + bf(hx) @ bf(whh) + bhh
        i = jax.nn.sigmoid(gates[:, 0:128])
        f = jax.nn.sigmoid(gates[:, 128:256])
        g = jnp.tanh(gates[:, 256:384])
        o = jax.nn.sigmoid(gates[:, 384:512])
        cx = f * cx + i * g
        hx = o * jnp.tanh(cx)
        critics.append(bf(hx) @ bf(wc) + bc)
        a = bf(hx) @ bf(wa) + ba
        actors.append(a / (1.0 + jnp.abs(a)))
        actor2s.append(bf(hx) @ bf(wa2) + ba2)
    return (jnp.stack(critics), jnp.stack(actors), jnp.stack(actor2s), hx, cx)


if __name__ == "__main__":
    key = jax.random.PRNGKey(0)
    k_param, k_x, k_h, k_c = jax.random.split(key, 4)

    raw = init_params(k_param)
    W_all, b_rep = pack_params(raw)

    x_seq = jax.random.normal(k_x, (T_STEPS, BATCH, STATE_SIZE), jnp.float32)
    hx = jax.random.normal(k_h, (BATCH, LSTM_H), jnp.float32) * 0.1
    cx = jax.random.normal(k_c, (BATCH, LSTM_H), jnp.float32) * 0.1

    outs = network_forward_jit(x_seq, hx, cx, W_all, b_rep)
    outs = jax.block_until_ready(outs)

    refs = reference_forward(x_seq, hx, cx, raw)

    names = ("critic", "actor", "actor2", "hx", "cx")
    for name, got, want in zip(names, outs, refs):
        np.testing.assert_allclose(np.asarray(got), np.asarray(want),
                                   rtol=1e-2, atol=1e-3, err_msg=name)
    print("KERNEL_OK")
</pallas_src>

<mosaic_0001>
module attributes {stable_mosaic.version = 11 : i64} {
  func.func @network_kernel(%arg0: i32, %arg1: memref<32x64x32xf32, #tpu.memory_space<vmem>>, %arg2: memref<64x128xf32, #tpu.memory_space<vmem>>, %arg3: memref<64x128xf32, #tpu.memory_space<vmem>>, %arg4: memref<1056x512xbf16, #tpu.memory_space<vmem>>, %arg5: memref<64x1408xf32, #tpu.memory_space<vmem>>, %arg6: memref<32x64x128xf32, #tpu.memory_space<vmem>>, %arg7: memref<64x128xf32, #tpu.memory_space<vmem>>, %arg8: memref<64x128xf32, #tpu.memory_space<vmem>>, %arg9: memref<64x128xf32, #tpu.memory_space<vmem>>, %arg10: memref<64x128xf32, #tpu.memory_space<vmem>>) attributes {dimension_semantics = [#tpu.dimension_semantics<parallel>], iteration_bounds = array<i64: 2>, scalar_prefetch = 0 : i64, scratch_operands = 2 : i64, tpu.core_type = #tpu.core_type<tc>, window_params = [{transform_indices = @transform_0, window_bounds = array<i64: 32, 64, 32>}, {transform_indices = @transform_1, window_bounds = array<i64: 64, 128>}, {transform_indices = @transform_2, window_bounds = array<i64: 64, 128>}, {pipeline_mode = #tpu.pipeline_mode<synchronous>, transform_indices = @transform_3, window_bounds = array<i64: 1056, 512>}, {pipeline_mode = #tpu.pipeline_mode<synchronous>, transform_indices = @transform_4, window_bounds = array<i64: 64, 1408>}, {transform_indices = @transform_5, window_bounds = array<i64: 32, 64, 128>}, {transform_indices = @transform_6, window_bounds = array<i64: 64, 128>}, {transform_indices = @transform_7, window_bounds = array<i64: 64, 128>}]} {
    %c0 = arith.constant 0 : index
    %c0_0 = arith.constant 0 : index
    %0 = vector.load %arg2[%c0, %c0_0] : memref<64x128xf32, #tpu.memory_space<vmem>>, vector<64x128xf32>
    %c0_1 = arith.constant 0 : index
    %c0_2 = arith.constant 0 : index
    %1 = vector.load %arg9[%c0_1, %c0_2] : memref<64x128xf32, #tpu.memory_space<vmem>>, vector<64x128xf32>
    tpu.vector_store %arg9[%c0_1, %c0_2], %0 {strides = array<i32>} : memref<64x128xf32, #tpu.memory_space<vmem>>, vector<64x128xf32>,
    %c0_3 = arith.constant 0 : index
    %c0_4 = arith.constant 0 : index
    %2 = vector.load %arg3[%c0_3, %c0_4] : memref<64x128xf32, #tpu.memory_space<vmem>>, vector<64x128xf32>
    %c0_5 = arith.constant 0 : index
    %c0_6 = arith.constant 0 : index
    %3 = vector.load %arg10[%c0_5, %c0_6] : memref<64x128xf32, #tpu.memory_space<vmem>>, vector<64x128xf32>
    tpu.vector_store %arg10[%c0_5, %c0_6], %2 {strides = array<i32>} : memref<64x128xf32, #tpu.memory_space<vmem>>, vector<64x128xf32>,
    %c0_i32 = arith.constant 0 : i32
    %c32_i32 = arith.constant 32 : i32
    %4 = arith.addi %c0_i32, %c32_i32 : i32
    %c1_i32 = arith.constant 1 : i32
    scf.for %arg11 = %c0_i32 to %4 step %c1_i32  : i32 {
      %c1_i32_16 = arith.constant 1 : i32
      %9 = arith.muli %arg11, %c1_i32_16 : i32
      %c0_i32_17 = arith.constant 0 : i32
      %10 = arith.addi %c0_i32_17, %9 : i32
      %11 = arith.index_cast %10 : i32 to index
      %c0_18 = arith.constant 0 : index
      %c0_19 = arith.constant 0 : index
      %12 = vector.load %arg1[%11, %c0_18, %c0_19] : memref<32x64x32xf32, #tpu.memory_space<vmem>>, vector<1x64x32xf32>
      %13 = vector.shape_cast %12 : vector<1x64x32xf32> to vector<64x32xf32>
      %14 = arith.truncf %13 : vector<64x32xf32> to vector<64x32xbf16>
      %c0_20 = arith.constant 0 : index
      %c0_21 = arith.constant 0 : index
      %15 = vector.load %arg4[%c0_20, %c0_21] : memref<1056x512xbf16, #tpu.memory_space<vmem>>, vector<32x256xbf16>
      %cst = arith.constant dense<0.000000e+00> : vector<64x256xf32>
      %16 = tpu.matmul %14, %15, %cst {dimension_numbers = #tpu.dot_dimension_numbers<[1], [0], [0], [1], [0, 0, 1, 1], [], []>} : vector<64x32xbf16>, vector<32x256xbf16>, vector<64x256xf32> -> vector<64x256xf32>
      %c0_22 = arith.constant 0 : index
      %c0_23 = arith.constant 0 : index
      %17 = vector.load %arg5[%c0_22, %c0_23] : memref<64x1408xf32, #tpu.memory_space<vmem>>, vector<64x256xf32>
      %18 = arith.addf %16, %17 : vector<64x256xf32>
      %cst_24 = arith.constant 1.000000e-01 : f32
      %19 = vector.broadcast %cst_24 : f32 to vector<64x256xf32>
      %20 = arith.mulf %19, %18 : vector<64x256xf32>
      %21 = arith.maximumf %18, %20 : vector<64x256xf32>
      %22 = arith.truncf %21 : vector<64x256xf32> to vector<64x256xbf16>
      %c32 = arith.constant 32 : index
      %c0_25 = arith.constant 0 : index
      %23 = vector.load %arg4[%c32, %c0_25] : memref<1056x512xbf16, #tpu.memory_space<vmem>>, vector<256x256xbf16>
      %cst_26 = arith.constant dense<0.000000e+00> : vector<64x256xf32>
      %24 = tpu.matmul %22, %23, %cst_26 {dimension_numbers = #tpu.dot_dimension_numbers<[1], [0], [0], [1], [0, 0, 1, 1], [], []>} : vector<64x256xbf16>, vector<256x256xbf16>, vector<64x256xf32> -> vector<64x256xf32>
      %c0_27 = arith.constant 0 : index
      %c256 = arith.constant 256 : index
      %25 = vector.load %arg5[%c0_27, %c256] : memref<64x1408xf32, #tpu.memory_space<vmem>>, vector<64x256xf32>
      %26 = arith.addf %24, %25 : vector<64x256xf32>
      %cst_28 = arith.constant 1.000000e-01 : f32
      %27 = vector.broadcast %cst_28 : f32 to vector<64x256xf32>
      %28 = arith.mulf %27, %26 : vector<64x256xf32>
      %29 = arith.maximumf %26, %28 : vector<64x256xf32>
      %30 = arith.truncf %29 : vector<64x256xf32> to vector<64x256xbf16>
      %c288 = arith.constant 288 : index
      %c0_29 = arith.constant 0 : index
      %31 = vector.load %arg4[%c288, %c0_29] : memref<1056x512xbf16, #tpu.memory_space<vmem>>, vector<256x128xbf16>
      %cst_30 = arith.constant dense<0.000000e+00> : vector<64x128xf32>
      %32 = tpu.matmul %30, %31, %cst_30 {dimension_numbers = #tpu.dot_dimension_numbers<[1], [0], [0], [1], [0, 0, 1, 1], [], []>} : vector<64x256xbf16>, vector<256x128xbf16>, vector<64x128xf32> -> vector<64x128xf32>
      %c0_31 = arith.constant 0 : index
      %c512 = arith.constant 512 : index
      %33 = vector.load %arg5[%c0_31, %c512] : memref<64x1408xf32, #tpu.memory_space<vmem>>, vector<64x128xf32>
      %34 = arith.addf %32, %33 : vector<64x128xf32>
      %cst_32 = arith.constant 1.000000e-01 : f32
      %35 = vector.broadcast %cst_32 : f32 to vector<64x128xf32>
      %36 = arith.mulf %35, %34 : vector<64x128xf32>
      %37 = arith.maximumf %34, %36 : vector<64x128xf32>
      %38 = arith.truncf %37 : vector<64x128xf32> to vector<64x128xbf16>
      %c544 = arith.constant 544 : index
      %c0_33 = arith.constant 0 : index
      %39 = vector.load %arg4[%c544, %c0_33] : memref<1056x512xbf16, #tpu.memory_space<vmem>>, vector<128x128xbf16>
      %cst_34 = arith.constant dense<0.000000e+00> : vector<64x128xf32>
      %40 = tpu.matmul %38, %39, %cst_34 {dimension_numbers = #tpu.dot_dimension_numbers<[1], [0], [0], [1], [0, 0, 1, 1], [], []>} : vector<64x128xbf16>, vector<128x128xbf16>, vector<64x128xf32> -> vector<64x128xf32>
      %c0_35 = arith.constant 0 : index
      %c640 = arith.constant 640 : index
      %41 = vector.load %arg5[%c0_35, %c640] : memref<64x1408xf32, #tpu.memory_space<vmem>>, vector<64x128xf32>
      %42 = arith.addf %40, %41 : vector<64x128xf32>
      %cst_36 = arith.constant 1.000000e-01 : f32
      %43 = vector.broadcast %cst_36 : f32 to vector<64x128xf32>
      %44 = arith.mulf %43, %42 : vector<64x128xf32>
      %45 = arith.maximumf %42, %44 : vector<64x128xf32>
      %46 = arith.truncf %45 : vector<64x128xf32> to vector<64x128xbf16>
      %c0_37 = arith.constant 0 : index
      %c0_38 = arith.constant 0 : index
      %47 = vector.load %arg9[%c0_37, %c0_38] : memref<64x128xf32, #tpu.memory_space<vmem>>, vector<64x128xf32>
      %c0_39 = arith.constant 0 : index
      %c0_40 = arith.constant 0 : index
      %48 = vector.load %arg10[%c0_39, %c0_40] : memref<64x128xf32, #tpu.memory_space<vmem>>, vector<64x128xf32>
      %49 = arith.truncf %47 : vector<64x128xf32> to vector<64x128xbf16>
      %50 = tpu.concatenate %46, %49 in 1 : vector<64x128xbf16>, vector<64x128xbf16> -> vector<64x256xbf16>
      %c672 = arith.constant 672 : index
      %c0_41 = arith.constant 0 : index
      %51 = vector.load %arg4[%c672, %c0_41] : memref<1056x512xbf16, #tpu.memory_space<vmem>>, vector<256x512xbf16>
      %cst_42 = arith.constant dense<0.000000e+00> : vector<64x512xf32>
      %52 = tpu.matmul %50, %51, %cst_42 {dimension_numbers = #tpu.dot_dimension_numbers<[1], [0], [0], [1], [0, 0, 1, 1], [], []>} : vector<64x256xbf16>, vector<256x512xbf16>, vector<64x512xf32> -> vector<64x512xf32>
      %c0_43 = arith.constant 0 : index
      %c768 = arith.constant 768 : index
      %53 = vector.load %arg5[%c0_43, %c768] : memref<64x1408xf32, #tpu.memory_space<vmem>>, vector<64x512xf32>
      %54 = arith.addf %52, %53 : vector<64x512xf32>
      %55 = vector.extract_strided_slice %54 {offsets = [0, 0], sizes = [64, 128], strides = [1, 1]} : vector<64x512xf32> to vector<64x128xf32>
      %56 = arith.negf %55 : vector<64x128xf32>
      %57 = math.exp %56 : vector<64x128xf32>
      %cst_44 = arith.constant 1.000000e+00 : f32
      %58 = vector.broadcast %cst_44 : f32 to vector<64x128xf32>
      %59 = arith.addf %58, %57 : vector<64x128xf32>
      %60 = arith.divf %58, %59 : vector<64x128xf32>
      %61 = vector.extract_strided_slice %54 {offsets = [0, 128], sizes = [64, 128], strides = [1, 1]} : vector<64x512xf32> to vector<64x128xf32>
      %62 = arith.negf %61 : vector<64x128xf32>
      %63 = math.exp %62 : vector<64x128xf32>
      %cst_45 = arith.constant 1.000000e+00 : f32
      %64 = vector.broadcast %cst_45 : f32 to vector<64x128xf32>
      %65 = arith.addf %64, %63 : vector<64x128xf32>
      %66 = arith.divf %64, %65 : vector<64x128xf32>
      %67 = vector.extract_strided_slice %54 {offsets = [0, 256], sizes = [64, 128], strides = [1, 1]} : vector<64x512xf32> to vector<64x128xf32>
      %68 = math.tanh %67 : vector<64x128xf32>
      %69 = vector.extract_strided_slice %54 {offsets = [0, 384], sizes = [64, 128], strides = [1, 1]} : vector<64x512xf32> to vector<64x128xf32>
      %70 = arith.negf %69 : vector<64x128xf32>
      %71 = math.exp %70 : vector<64x128xf32>
      %cst_46 = arith.constant 1.000000e+00 : f32
      %72 = vector.broadcast %cst_46 : f32 to vector<64x128xf32>
      %73 = arith.addf %72, %71 : vector<64x128xf32>
      %74 = arith.divf %72, %73 : vector<64x128xf32>
      %75 = arith.mulf %66, %48 : vector<64x128xf32>
      %76 = arith.mulf %60, %68 : vector<64x128xf32>
      %77 = arith.addf %75, %76 : vector<64x128xf32>
      %78 = math.tanh %77 : vector<64x128xf32>
      %79 = arith.mulf %74, %78 : vector<64x128xf32>
      %80 = arith.truncf %79 : vector<64x128xf32> to vector<64x128xbf16>
      %c928 = arith.constant 928 : index
      %c0_47 = arith.constant 0 : index
      %81 = vector.load %arg4[%c928, %c0_47] : memref<1056x512xbf16, #tpu.memory_space<vmem>>, vector<128x128xbf16>
      %cst_48 = arith.constant dense<0.000000e+00> : vector<64x128xf32>
      %82 = tpu.matmul %80, %81, %cst_48 {dimension_numbers = #tpu.dot_dimension_numbers<[1], [0], [0], [1], [0, 0, 1, 1], [], []>} : vector<64x128xbf16>, vector<128x128xbf16>, vector<64x128xf32> -> vector<64x128xf32>
      %c0_49 = arith.constant 0 : index
      %c1280 = arith.constant 1280 : index
      %83 = vector.load %arg5[%c0_49, %c1280] : memref<64x1408xf32, #tpu.memory_space<vmem>>, vector<64x128xf32>
      %84 = arith.addf %82, %83 : vector<64x128xf32>
      %85 = arith.index_cast %10 : i32 to index
      %c0_50 = arith.constant 0 : index
      %c0_51 = arith.constant 0 : index
      %86 = vector.load %arg6[%85, %c0_50, %c0_51] : memref<32x64x128xf32, #tpu.memory_space<vmem>>, vector<1x64x128xf32>
      %87 = vector.shape_cast %86 : vector<1x64x128xf32> to vector<64x128xf32>
      %88 = vector.shape_cast %84 : vector<64x128xf32> to vector<1x64x128xf32>
      tpu.vector_store %arg6[%85, %c0_50, %c0_51], %88 {strides = array<i32>} : memref<32x64x128xf32, #tpu.memory_space<vmem>>, vector<1x64x128xf32>,
      %c0_52 = arith.constant 0 : index
      %c0_53 = arith.constant 0 : index
      %89 = vector.load %arg9[%c0_52, %c0_53] : memref<64x128xf32, #tpu.memory_space<vmem>>, vector<64x128xf32>
      tpu.vector_store %arg9[%c0_52, %c0_53], %79 {strides = array<i32>} : memref<64x128xf32, #tpu.memory_space<vmem>>, vector<64x128xf32>,
      %c0_54 = arith.constant 0 : index
      %c0_55 = arith.constant 0 : index
      %90 = vector.load %arg10[%c0_54, %c0_55] : memref<64x128xf32, #tpu.memory_space<vmem>>, vector<64x128xf32>
      tpu.vector_store %arg10[%c0_54, %c0_55], %77 {strides = array<i32>} : memref<64x128xf32, #tpu.memory_space<vmem>>, vector<64x128xf32>,
    }
    %c32_i32_7 = arith.constant 32 : i32
    %c0_8 = arith.constant 0 : index
    %c0_9 = arith.constant 0 : index
    %5 = vector.load %arg9[%c0_8, %c0_9] : memref<64x128xf32, #tpu.memory_space<vmem>>, vector<64x128xf32>
    %c0_10 = arith.constant 0 : index
    %c0_11 = arith.constant 0 : index
    %6 = vector.load %arg7[%c0_10, %c0_11] : memref<64x128xf32, #tpu.memory_space<vmem>>, vector<64x128xf32>
    tpu.vector_store %arg7[%c0_10, %c0_11], %5 {strides = array<i32>} : memref<64x128xf32, #tpu.memory_space<vmem>>, vector<64x128xf32>,
    %c0_12 = arith.constant 0 : index
    %c0_13 = arith.constant 0 : index
    %7 = vector.load %arg10[%c0_12, %c0_13] : memref<64x128xf32, #tpu.memory_space<vmem>>, vector<64x128xf32>
    %c0_14 = arith.constant 0 : index
    %c0_15 = arith.constant 0 : index
    %8 = vector.load %arg8[%c0_14, %c0_15] : memref<64x128xf32, #tpu.memory_space<vmem>>, vector<64x128xf32>
    tpu.vector_store %arg8[%c0_14, %c0_15], %7 {strides = array<i32>} : memref<64x128xf32, #tpu.memory_space<vmem>>, vector<64x128xf32>,
    return
  }
  func.func @transform_0(%arg0: i32) -> (i32, i32, i32) {
    %c0_i32 = arith.constant 0 : i32
    %c0_i32_0 = arith.constant 0 : i32
    %c0_i32_1 = arith.constant 0 : i32
    return %c0_i32, %arg0, %c0_i32_0 : i32, i32, i32
  }
  func.func @transform_1(%arg0: i32) -> (i32, i32) {
    %c0_i32 = arith.constant 0 : i32
    %c0_i32_0 = arith.constant 0 : i32
    return %arg0, %c0_i32 : i32, i32
  }
  func.func @transform_2(%arg0: i32) -> (i32, i32) {
    %c0_i32 = arith.constant 0 : i32
    %c0_i32_0 = arith.constant 0 : i32
    return %arg0, %c0_i32 : i32, i32
  }
  func.func @transform_3(%arg0: i32) -> (i32, i32) {
    %c0_i32 = arith.constant 0 : i32
    %c0_i32_0 = arith.constant 0 : i32
    %c0_i32_1 = arith.constant 0 : i32
    return %c0_i32, %c0_i32_0 : i32, i32
  }
  func.func @transform_4(%arg0: i32) -> (i32, i32) {
    %c0_i32 = arith.constant 0 : i32
    %c0_i32_0 = arith.constant 0 : i32
    %c0_i32_1 = arith.constant 0 : i32
    return %c0_i32, %c0_i32_0 : i32, i32
  }
  func.func @transform_5(%arg0: i32) -> (i32, i32, i32) {
    %c0_i32 = arith.constant 0 : i32
    %c0_i32_0 = arith.constant 0 : i32
    %c0_i32_1 = arith.constant 0 : i32
    return %c0_i32, %arg0, %c0_i32_0 : i32, i32, i32
  }
  func.func @transform_6(%arg0: i32) -> (i32, i32) {
    %c0_i32 = arith.constant 0 : i32
    %c0_i32_0 = arith.constant 0 : i32
    return %arg0, %c0_i32 : i32, i32
  }
  func.func @transform_7(%arg0: i32) -> (i32, i32) {
    %c0_i32 = arith.constant 0 : i32
    %c0_i32_0 = arith.constant 0 : i32
    return %arg0, %c0_i32 : i32, i32
  }
}

</mosaic_0001>

<llo_original>
// kernel: network_forward.1
$region0: #{network_forward.1}
  #allocation0 [shape = 'u32[]', space=smem, size = 0x4, offset = 0x4, fixed_abs, tag = 'smem constant byte address 0x4 - core index']
  #allocation1 [shape = 'u32[144,128]{1,0:T(1,128)}', space=vmem, size = 0x12000, scoped, tag = 'internal scratch']
  #allocation2 [shape = 'f32[64,128]{1,0:T(8,128)}', space=vmem, size = 0x8000, scoped, tag = 'scratch operand']
  #allocation3 [shape = 'f32[64,128]{1,0:T(8,128)}', space=vmem, size = 0x8000, scoped, tag = 'scratch operand']
  %s0 = inlined_call_operand.vmem [shape: f32[32,128,32], index: 0, kind: input, shape index: {}]
  %s1 = inlined_call_operand.vmem [shape: f32[128,128], index: 1, kind: input, shape index: {}]
  %s2 = inlined_call_operand.vmem [shape: f32[128,128], index: 2, kind: input, shape index: {}]
  %s3 = inlined_call_operand.vmem [shape: bf16[1056,512], index: 3, kind: input, shape index: {}]
  %s4 = inlined_call_operand.vmem [shape: f32[64,1408], index: 4, kind: input, shape index: {}]
  %s5 = inlined_call_operand.vmem [shape: f32[32,128,128], index: 5, kind: output, shape index: {0}]
  %s6 = inlined_call_operand.hbm [shape: f32[128,128], index: 6, kind: output, shape index: {1}]
  %s7 = inlined_call_operand.hbm [shape: f32[128,128], index: 7, kind: output, shape index: {2}]
  %8 = xla_tuple %s5, %s6, %s7
  %s9 = sld [smem:[#allocation0]]
  $region148: #{network_forward.1} parent=0
    _
  %s11 = ssub.s32 1, %s9
  %s12 = scalar_select 0, %s11, %s9
  $region1: #{network_forward.1} parent=0
    #allocation4 [shape = 'u8[2097152]{0}', space=vmem, size = 0x200000, scoped, tag = 'input window, operand 0']
    #allocation5 [shape = 'u8[2097152]{0}', space=vmem, size = 0x200000, scoped, tag = 'output window, operand 0']
    #allocation6 [shape = 'u8[65536]{0}', space=vmem, size = 0x10000, scoped, tag = 'output window, operand 1']
    #allocation7 [shape = 's32[2]{0}', space=sflag, size = 0x8, scoped, tag = 'scoped memory for network_forward.1']
    #allocation8 [shape = 'u8[65536]{0}', space=vmem, size = 0x10000, scoped, tag = 'output window, operand 2']
    #allocation9 [shape = 's32[2]{0}', space=sflag, size = 0x8, scoped, tag = 'scoped memory for network_forward.1']
    %13 = vsyncpa [#allocation7], 0
    %s14 = scalar_lea.sflag [#allocation7], 1
    %15 = vsyncpa %s14, 0
    %16 = vsyncpa [#allocation9], 0
    %s17 = scalar_lea.sflag [#allocation9], 1
    %18 = vsyncpa %s17, 0
    loop: start=0, step=1, limit=4
    $region2: #{network_forward.1} parent=1 // loop_pre_header
      _
    $region3: #{network_forward.1} parent=1 // loop_header
      %s20 = sphi 0, %s24
      %p21 = scmp.ge.s32.totalorder %s20, 4
      %s30 = sphi 0, %s32
      %s33 = sphi 0, %s30
      %s34 = sphi 0, %s33
      %s50 = sphi 0, %s34
      %s56 = sphi 0, %s58
      %s59 = sphi 0, %s56
      %s60 = sphi 0, %s59
      %s76 = sphi 0, %s60
      %s82 = sphi 0, %s84
      %s85 = sphi 0, %s82
      %s86 = sphi 0, %s85
      %s102 = sphi 0, %s86
      %s106 = sphi 0, %s106
      %s108 = sphi 0, %s106
      %s109 = sphi 0, %s108
      %s123 = sphi 0, %s109
      %s127 = sphi 0, %s127
      %s129 = sphi 0, %s127
      %s130 = sphi 0, %s129
      %s144 = sphi 0, %s130
      %s150 = sphi 0, %s152
      %s153 = sphi 0, %s150
      %s154 = sphi 0, %s153
      %s170 = sphi 0, %s154
      %s176 = sphi 0, %s178
      %s179 = sphi 0, %s176
      %s180 = sphi 0, %s179
      %s196 = sphi 0, %s180
      %s202 = sphi 0, %s204
      %s205 = sphi 0, %s202
      %s206 = sphi 0, %s205
      %s222 = sphi 0, %s206
    $region4: #{network_forward.1} parent=1 // loop_header_branch
      %23 = sbr.rel (%p21) target = $region8
    $region5: #{network_forward.1} parent=1 // loop_body
      %s25 = ssub.s32 %s20, 1
      %s26 = ssub.s32 %s20, 2
      %s27 = sadd.s32 %s20, 1
      %s28 = ssub.s32 %s20, %s27
      %p29 = scmp.eq.s32.totalorder %s28, 0
      %s31 = sadd.s32 %s30, 1
      %s32 = scalar_select %p29, %s30, %s31
      %p35 = pneg %p29
      %p36 = scmp.eq.s32.totalorder %s20, 1
      %p37 = por %p35, %p36
      %p38 = scmp.ne.s32.totalorder %s30, %s33
      %p39 = scmp.eq.s32.totalorder %s20, 0
      %p40 = por %p38, %p39
      %p41 = scmp.ne.s32.totalorder %s30, %s33
      %p42 = scmp.eq.s32.totalorder %s25, 1
      %p43 = por %p41, %p42
      %p44 = scmp.ne.s32.totalorder %s33, %s34
      %p45 = scmp.eq.s32.totalorder %s25, 0
      %p46 = por %p44, %p45
      %p47 = scmp.ne.s32.totalorder %s33, %s34
      %p48 = scmp.eq.s32.totalorder %s26, 1
      %p49 = por %p47, %p48
      %p51 = scmp.ne.s32.totalorder %s34, %s50
      %p52 = scmp.eq.s32.totalorder %s26, 0
      %p53 = por %p51, %p52
      %s54 = ssub.s32 %s20, %s27
      %p55 = scmp.eq.s32.totalorder %s54, 0
      %s57 = sadd.s32 %s56, 1
      %s58 = scalar_select %p55, %s56, %s57
      %p61 = pneg %p55
      %p62 = scmp.eq.s32.totalorder %s20, 1
      %p63 = por %p61, %p62
      %p64 = scmp.ne.s32.totalorder %s56, %s59
      %p65 = scmp.eq.s32.totalorder %s20, 0
      %p66 = por %p64, %p65
      %p67 = scmp.ne.s32.totalorder %s56, %s59
      %p68 = scmp.eq.s32.totalorder %s25, 1
      %p69 = por %p67, %p68
      %p70 = scmp.ne.s32.totalorder %s59, %s60
      %p71 = scmp.eq.s32.totalorder %s25, 0
      %p72 = por %p70, %p71
      %p73 = scmp.ne.s32.totalorder %s59, %s60
      %p74 = scmp.eq.s32.totalorder %s26, 1
      %p75 = por %p73, %p74
      %p77 = scmp.ne.s32.totalorder %s60, %s76
      %p78 = scmp.eq.s32.totalorder %s26, 0
      %p79 = por %p77, %p78
      %s80 = ssub.s32 %s20, %s27
      %p81 = scmp.eq.s32.totalorder %s80, 0
      %s83 = sadd.s32 %s82, 1
      %s84 = scalar_select %p81, %s82, %s83
      %p87 = pneg %p81
      %p88 = scmp.eq.s32.totalorder %s20, 1
      %p89 = por %p87, %p88
      %p90 = scmp.ne.s32.totalorder %s82, %s85
      %p91 = scmp.eq.s32.totalorder %s20, 0
      %p92 = por %p90, %p91
      %p93 = scmp.ne.s32.totalorder %s82, %s85
      %p94 = scmp.eq.s32.totalorder %s25, 1
      %p95 = por %p93, %p94
      %p96 = scmp.ne.s32.totalorder %s85, %s86
      %p97 = scmp.eq.s32.totalorder %s25, 0
      %p98 = por %p96, %p97
      %p99 = scmp.ne.s32.totalorder %s85, %s86
      %p100 = scmp.eq.s32.totalorder %s26, 1
      %p101 = por %p99, %p100
      %p103 = scmp.ne.s32.totalorder %s86, %s102
      %p104 = scmp.eq.s32.totalorder %s26, 0
      %p105 = por %p103, %p104
      %s107 = sadd.s32 %s106, 1
      %p110 = scmp.eq.s32.totalorder %s20, 1
      %p111 = scmp.ne.s32.totalorder %s106, %s108
      %p112 = scmp.eq.s32.totalorder %s20, 0
      %p113 = por %p111, %p112
      %p114 = scmp.ne.s32.totalorder %s106, %s108
      %p115 = scmp.eq.s32.totalorder %s25, 1
      %p116 = por %p114, %p115
      %p117 = scmp.ne.s32.totalorder %s108, %s109
      %p118 = scmp.eq.s32.totalorder %s25, 0
      %p119 = por %p117, %p118
      %p120 = scmp.ne.s32.totalorder %s108, %s109
      %p121 = scmp.eq.s32.totalorder %s26, 1
      %p122 = por %p120, %p121
      %p124 = scmp.ne.s32.totalorder %s109, %s123
      %p125 = scmp.eq.s32.totalorder %s26, 0
      %p126 = por %p124, %p125
      %s128 = sadd.s32 %s127, 1
      %p131 = scmp.eq.s32.totalorder %s20, 1
      %p132 = scmp.ne.s32.totalorder %s127, %s129
      %p133 = scmp.eq.s32.totalorder %s20, 0
      %p134 = por %p132, %p133
      %p135 = scmp.ne.s32.totalorder %s127, %s129
      %p136 = scmp.eq.s32.totalorder %s25, 1
      %p137 = por %p135, %p136
      %p138 = scmp.ne.s32.totalorder %s129, %s130
      %p139 = scmp.eq.s32.totalorder %s25, 0
      %p140 = por %p138, %p139
      %p141 = scmp.ne.s32.totalorder %s129, %s130
      %p142 = scmp.eq.s32.totalorder %s26, 1
      %p143 = por %p141, %p142
      %p145 = scmp.ne.s32.totalorder %s130, %s144
      %p146 = scmp.eq.s32.totalorder %s26, 0
      %p147 = por %p145, %p146
      %s148 = ssub.s32 %s20, %s27
      %p149 = scmp.eq.s32.totalorder %s148, 0
      %s151 = sadd.s32 %s150, 1
      %s152 = scalar_select %p149, %s150, %s151
      %p155 = pneg %p149
      %p156 = scmp.eq.s32.totalorder %s20, 1
      %p157 = por %p155, %p156
      %p158 = scmp.ne.s32.totalorder %s150, %s153
      %p159 = scmp.eq.s32.totalorder %s20, 0
      %p160 = por %p158, %p159
      %p161 = scmp.ne.s32.totalorder %s150, %s153
      %p162 = scmp.eq.s32.totalorder %s25, 1
      %p163 = por %p161, %p162
      %p164 = scmp.ne.s32.totalorder %s153, %s154
      %p165 = scmp.eq.s32.totalorder %s25, 0
      %p166 = por %p164, %p165
      %p167 = scmp.ne.s32.totalorder %s153, %s154
      %p168 = scmp.eq.s32.totalorder %s26, 1
      %p169 = por %p167, %p168
      %p171 = scmp.ne.s32.totalorder %s154, %s170
      %p172 = scmp.eq.s32.totalorder %s26, 0
      %p173 = por %p171, %p172
      %s174 = ssub.s32 %s20, %s27
      %p175 = scmp.eq.s32.totalorder %s174, 0
      %s177 = sadd.s32 %s176, 1
      %s178 = scalar_select %p175, %s176, %s177
      %p181 = pneg %p175
      %p182 = scmp.eq.s32.totalorder %s20, 1
      %p183 = por %p181, %p182
      %p184 = scmp.ne.s32.totalorder %s176, %s179
      %p185 = scmp.eq.s32.totalorder %s20, 0
      %p186 = por %p184, %p185
      %p187 = scmp.ne.s32.totalorder %s176, %s179
      %p188 = scmp.eq.s32.totalorder %s25, 1
      %p189 = por %p187, %p188
      %p190 = scmp.ne.s32.totalorder %s179, %s180
      %p191 = scmp.eq.s32.totalorder %s25, 0
      %p192 = por %p190, %p191
      %p193 = scmp.ne.s32.totalorder %s179, %s180
      %p194 = scmp.eq.s32.totalorder %s26, 1
      %p195 = por %p193, %p194
      %p197 = scmp.ne.s32.totalorder %s180, %s196
      %p198 = scmp.eq.s32.totalorder %s26, 0
      %p199 = por %p197, %p198
      %s200 = ssub.s32 %s20, %s27
      %p201 = scmp.eq.s32.totalorder %s200, 0
      %s203 = sadd.s32 %s202, 1
      %s204 = scalar_select %p201, %s202, %s203
      %p207 = pneg %p201
      %p208 = scmp.eq.s32.totalorder %s20, 1
      %p209 = por %p207, %p208
      %p210 = scmp.ne.s32.totalorder %s202, %s205
      %p211 = scmp.eq.s32.totalorder %s20, 0
      %p212 = por %p210, %p211
      %p213 = scmp.ne.s32.totalorder %s202, %s205
      %p214 = scmp.eq.s32.totalorder %s25, 1
      %p215 = por %p213, %p214
      %p216 = scmp.ne.s32.totalorder %s205, %s206
      %p217 = scmp.eq.s32.totalorder %s25, 0
      %p218 = por %p216, %p217
      %p219 = scmp.ne.s32.totalorder %s205, %s206
      %p220 = scmp.eq.s32.totalorder %s26, 1
      %p221 = por %p219, %p220
      %p223 = scmp.ne.s32.totalorder %s206, %s222
      %p224 = scmp.eq.s32.totalorder %s26, 0
      %p225 = por %p223, %p224
      %p226 = scmp.le.s32.totalorder 1, %s20
      %p227 = scmp.lt.s32.totalorder %s20, 3
      %p228 = pnand %p226, %p227
      %p229 = pneg %p228
      // Predicated region
      $region9: #{network_forward.1} parent=5 // pred_check
        _
      $region10: #{network_forward.1} parent=5 // pred_check_branch
        %231 = sbr.rel (%p228) target = $region12
      $region11: #{network_forward.1} parent=5 // pred_region
        %s232 = ssub.s32 %s20, 1
        // Predicated region
        $region13: #{network_forward.1} parent=11 // pred_check
          %p233 = pneg %p119
        $region14: #{network_forward.1} parent=11 // pred_check_branch
          %235 = sbr.rel (%p233) target = $region16
        $region15: #{network_forward.1} parent=11 // pred_region
          _
        $region16: #{network_forward.1} parent=11 // pred_fallthru
          _
        // Predicated region
        $region17: #{network_forward.1} parent=11 // pred_check
          %p236 = pneg %p140
        $region18: #{network_forward.1} parent=11 // pred_check_branch
          %238 = sbr.rel (%p236) target = $region20
        $region19: #{network_forward.1} parent=11 // pred_region
          _
        $region20: #{network_forward.1} parent=11 // pred_fallthru
          _
      $region12: #{network_forward.1} parent=5 // pred_fallthru
        _
      %p239 = scmp.lt.s32.totalorder %s20, 2
      // Predicated region
      $region21: #{network_forward.1} parent=5 // pred_check
        %p240 = pneg %p239
      $region22: #{network_forward.1} parent=5 // pred_check_branch
        %242 = sbr.rel (%p240) target = $region24
      $region23: #{network_forward.1} parent=5 // pred_region
        // Predicated region
        $region25: #{network_forward.1} parent=23 // pred_check
          %p243 = pneg %p40
        $region26: #{network_forward.1} parent=23 // pred_check_branch
          %245 = sbr.rel (%p243) target = $region28
        $region27: #{network_forward.1} parent=23 // pred_region
          %s246 = sand.u32 %s30, 1
          %s247 = sand.u32 %s30, 1
          %s248 = smul.addr %s247, 2048
          %s249 = scalar_lea.vmem [#allocation4], %s248
          %s250 = smul.u32 8, %s20
          %s251 = smul.addr %s250, 8
          %s252 = scalar_lea.vmem %s0, %s251
          // Predicated region
          $region29: #{network_forward.1} parent=27 // pred_check
            _
          $region30: #{network_forward.1} parent=27 // pred_check_branch
            %254 = sbr.rel (0) target = $region32
          $region31: #{network_forward.1} parent=27 // pred_region
            // Predicated region
            $region33: #{network_forward.1} parent=31 // pred_check
              _
            $region34: #{network_forward.1} parent=31 // pred_check_branch
              %256 = sbr.rel (0) target = $region36
            $region35: #{network_forward.1} parent=31 // pred_region
              // Predicated region
              $region48: #{network_forward.1} parent=35 // pred_check
                _
              $region49: #{network_forward.1} parent=35 // pred_check_branch
                %781 = sbr.rel (0) target = $region51
              $region50: #{network_forward.1} parent=35 // pred_region
                loop: start=0, step=1, limit=1
                $region52: #{network_forward.1} parent=50 // loop_pre_header
                  _
                $region53: #{network_forward.1} parent=50 // loop_header
                  %s783 = sphi 0, %s787
                  %p784 = scmp.ge.s32.totalorder %s783, 1
                  %s788 = sphi %s252, %s252
                  %s789 = sphi %s249, %s249
                $region54: #{network_forward.1} parent=50 // loop_header_branch
                  %786 = sbr.rel (%p784) target = $region58
                $region55: #{network_forward.1} parent=50 // loop_body
                  %v790 = vld [vmem:[%s788] sm:$0xff]
                  %791 = vst [vmem:[%s789] sm:$0xff] %v790
                  %v792 = vld [vmem:[%s788 + $0x8] sm:$0xff]
                  %793 = vst [vmem:[%s789 + $0x8] sm:$0xff] %v792
                  %v794 = vld [vmem:[%s788 + $0x10] sm:$0xff]
                  %795 = vst [vmem:[%s789 + $0x10] sm:$0xff] %v794
                  %v796 = vld [vmem:[%s788 + $0x18] sm:$0xff]
                  %797 = vst [vmem:[%s789 + $0x18] sm:$0xff] %v796
                  %v798 = vld [vmem:[%s788 + $0x20] sm:$0xff]
                  %799 = vst [vmem:[%s789 + $0x20] sm:$0xff] %v798
                  %v800 = vld [vmem:[%s788 + $0x28] sm:$0xff]
                  %801 = vst [vmem:[%s789 + $0x28] sm:$0xff] %v800
                  %v802 = vld [vmem:[%s788 + $0x30] sm:$0xff]
                  %803 = vst [vmem:[%s789 + $0x30] sm:$0xff] %v802
                  %v804 = vld [vmem:[%s788 + $0x38] sm:$0xff]
                  %805 = vst [vmem:[%s789 + $0x38] sm:$0xff] %v804
                  %v806 = vld [vmem:[%s788 + $0x80] sm:$0xff]
                  %807 = vst [vmem:[%s789 + $0x40] sm:$0xff] %v806
                  %v808 = vld [vmem:[%s788 + $0x88] sm:$0xff]
                  %809 = vst [vmem:[%s789 + $0x48] sm:$0xff] %v808
                  %v810 = vld [vmem:[%s788 + $0x90] sm:$0xff]
                  %811 = vst [vmem:[%s789 + $0x50] sm:$0xff] %v810
                  %v812 = vld [vmem:[%s788 + $0x98] sm:$0xff]
                  %813 = vst [vmem:[%s789 + $0x58] sm:$0xff] %v812
                  %v814 = vld [vmem:[%s788 + $0xa0] sm:$0xff]
                  %815 = vst [vmem:[%s789 + $0x60] sm:$0xff] %v814
                  %v816 = vld [vmem:[%s788 + $0xa8] sm:$0xff]
                  %817 = vst [vmem:[%s789 + $0x68] sm:$0xff] %v816
                  %v818 = vld [vmem:[%s788 + $0xb0] sm:$0xff]
                  %819 = vst [vmem:[%s789 + $0x70] sm:$0xff] %v818
                  %v820 = vld [vmem:[%s788 + $0xb8] sm:$0xff]
                  %821 = vst [vmem:[%s789 + $0x78] sm:$0xff] %v820
                  %v822 = vld [vmem:[%s788 + $0x100] sm:$0xff]
                  %823 = vst [vmem:[%s789 + $0x80] sm:$0xff] %v822
                  %v824 = vld [vmem:[%s788 + $0x108] sm:$0xff]
                  %825 = vst [vmem:[%s789 + $0x88] sm:$0xff] %v824
                  %v826 = vld [vmem:[%s788 + $0x110] sm:$0xff]
                  %827 = vst [vmem:[%s789 + $0x90] sm:$0xff] %v826
                  %v828 = vld [vmem:[%s788 + $0x118] sm:$0xff]
                  %829 = vst [vmem:[%s789 + $0x98] sm:$0xff] %v828
                  %v830 = vld [vmem:[%s788 + $0x120] sm:$0xff]
                  %831 = vst [vmem:[%s789 + $0xa0] sm:$0xff] %v830
                  %v832 = vld [vmem:[%s788 + $0x128] sm:$0xff]
                  %833 = vst [vmem:[%s789 + $0xa8] sm:$0xff] %v832
                  %v834 = vld [vmem:[%s788 + $0x130] sm:$0xff]
                  %835 = vst [vmem:[%s789 + $0xb0] sm:$0xff] %v834
                  %v836 = vld [vmem:[%s788 + $0x138] sm:$0xff]
                  %837 = vst [vmem:[%s789 + $0xb8] sm:$0xff] %v836
                  %v838 = vld [vmem:[%s788 + $0x180] sm:$0xff]
                  %839 = vst [vmem:[%s789 + $0xc0] sm:$0xff] %v838
                  %v840 = vld [vmem:[%s788 + $0x188] sm:$0xff]
                  %841 = vst [vmem:[%s789 + $0xc8] sm:$0xff] %v840
                  %v842 = vld [vmem:[%s788 + $0x190] sm:$0xff]
                  %843 = vst [vmem:[%s789 + $0xd0] sm:$0xff] %v842
                  %v844 = vld [vmem:[%s788 + $0x198] sm:$0xff]
                  %845 = vst [vmem:[%s789 + $0xd8] sm:$0xff] %v844
                  %v846 = vld [vmem:[%s788 + $0x1a0] sm:$0xff]
                  %847 = vst [vmem:[%s789 + $0xe0] sm:$0xff] %v846
                  %v848 = vld [vmem:[%s788 + $0x1a8] sm:$0xff]
                  %849 = vst [vmem:[%s789 + $0xe8] sm:$0xff] %v848
                  %v850 = vld [vmem:[%s788 + $0x1b0] sm:$0xff]
                  %851 = vst [vmem:[%s789 + $0xf0] sm:$0xff] %v850
                  %v852 = vld [vmem:[%s788 + $0x1b8] sm:$0xff]
                  %853 = vst [vmem:[%s789 + $0xf8] sm:$0xff] %v852
                  %v854 = vld [vmem:[%s788 + $0x200] sm:$0xff]
                  %855 = vst [vmem:[%s789 + $0x100] sm:$0xff] %v854
                  %v856 = vld [vmem:[%s788 + $0x208] sm:$0xff]
                  %857 = vst [vmem:[%s789 + $0x108] sm:$0xff] %v856
                  %v858 = vld [vmem:[%s788 + $0x210] sm:$0xff]
                  %859 = vst [vmem:[%s789 + $0x110] sm:$0xff] %v858
                  %v860 = vld [vmem:[%s788 + $0x218] sm:$0xff]
                  %861 = vst [vmem:[%s789 + $0x118] sm:$0xff] %v860
                  %v862 = vld [vmem:[%s788 + $0x220] sm:$0xff]
                  %863 = vst [vmem:[%s789 + $0x120] sm:$0xff] %v862
                  %v864 = vld [vmem:[%s788 + $0x228] sm:$0xff]
                  %865 = vst [vmem:[%s789 + $0x128] sm:$0xff] %v864
                  %v866 = vld [vmem:[%s788 + $0x230] sm:$0xff]
                  %867 = vst [vmem:[%s789 + $0x130] sm:$0xff] %v866
                  %v868 = vld [vmem:[%s788 + $0x238] sm:$0xff]
                  %869 = vst [vmem:[%s789 + $0x138] sm:$0xff] %v868
                  %v870 = vld [vmem:[%s788 + $0x280] sm:$0xff]
                  %871 = vst [vmem:[%s789 + $0x140] sm:$0xff] %v870
                  %v872 = vld [vmem:[%s788 + $0x288] sm:$0xff]
                  %873 = vst [vmem:[%s789 + $0x148] sm:$0xff] %v872
                  %v874 = vld [vmem:[%s788 + $0x290] sm:$0xff]
                  %875 = vst [vmem:[%s789 + $0x150] sm:$0xff] %v874
                  %v876 = vld [vmem:[%s788 + $0x298] sm:$0xff]
                  %877 = vst [vmem:[%s789 + $0x158] sm:$0xff] %v876
                  %v878 = vld [vmem:[%s788 + $0x2a0] sm:$0xff]
                  %879 = vst [vmem:[%s789 + $0x160] sm:$0xff] %v878
                  %v880 = vld [vmem:[%s788 + $0x2a8] sm:$0xff]
                  %881 = vst [vmem:[%s789 + $0x168] sm:$0xff] %v880
                  %v882 = vld [vmem:[%s788 + $0x2b0] sm:$0xff]
                  %883 = vst [vmem:[%s789 + $0x170] sm:$0xff] %v882
                  %v884 = vld [vmem:[%s788 + $0x2b8] sm:$0xff]
                  %885 = vst [vmem:[%s789 + $0x178] sm:$0xff] %v884
                  %v886 = vld [vmem:[%s788 + $0x300] sm:$0xff]
                  %887 = vst [vmem:[%s789 + $0x180] sm:$0xff] %v886
                  %v888 = vld [vmem:[%s788 + $0x308] sm:$0xff]
                  %889 = vst [vmem:[%s789 + $0x188] sm:$0xff] %v888
                  %v890 = vld [vmem:[%s788 + $0x310] sm:$0xff]
                  %891 = vst [vmem:[%s789 + $0x190] sm:$0xff] %v890
                  %v892 = vld [vmem:[%s788 + $0x318] sm:$0xff]
                  %893 = vst [vmem:[%s789 + $0x198] sm:$0xff] %v892
                  %v894 = vld [vmem:[%s788 + $0x320] sm:$0xff]
                  %895 = vst [vmem:[%s789 + $0x1a0] sm:$0xff] %v894
                  %v896 = vld [vmem:[%s788 + $0x328] sm:$0xff]
                  %897 = vst [vmem:[%s789 + $0x1a8] sm:$0xff] %v896
                  %v898 = vld [vmem:[%s788 + $0x330] sm:$0xff]
                  %899 = vst [vmem:[%s789 + $0x1b0] sm:$0xff] %v898
                  %v900 = vld [vmem:[%s788 + $0x338] sm:$0xff]
                  %901 = vst [vmem:[%s789 + $0x1b8] sm:$0xff] %v900
                  %v902 = vld [vmem:[%s788 + $0x380] sm:$0xff]
                  %903 = vst [vmem:[%s789 + $0x1c0] sm:$0xff] %v902
                  %v904 = vld [vmem:[%s788 + $0x388] sm:$0xff]
                  %905 = vst [vmem:[%s789 + $0x1c8] sm:$0xff] %v904
                  %v906 = vld [vmem:[%s788 + $0x390] sm:$0xff]
                  %907 = vst [vmem:[%s789 + $0x1d0] sm:$0xff] %v906
                  %v908 = vld [vmem:[%s788 + $0x398] sm:$0xff]
                  %909 = vst [vmem:[%s789 + $0x1d8] sm:$0xff] %v908
                  %v910 = vld [vmem:[%s788 + $0x3a0] sm:$0xff]
                  %911 = vst [vmem:[%s789 + $0x1e0] sm:$0xff] %v910
                  %v912 = vld [vmem:[%s788 + $0x3a8] sm:$0xff]
                  %913 = vst [vmem:[%s789 + $0x1e8] sm:$0xff] %v912
                  %v914 = vld [vmem:[%s788 + $0x3b0] sm:$0xff]
                  %915 = vst [vmem:[%s789 + $0x1f0] sm:$0xff] %v914
                  %v916 = vld [vmem:[%s788 + $0x3b8] sm:$0xff]
                  %917 = vst [vmem:[%s789 + $0x1f8] sm:$0xff] %v916
                  %v918 = vld [vmem:[%s788 + $0x400] sm:$0xff]
                  %919 = vst [vmem:[%s789 + $0x200] sm:$0xff] %v918
                  %v920 = vld [vmem:[%s788 + $0x408] sm:$0xff]
                  %921 = vst [vmem:[%s789 + $0x208] sm:$0xff] %v920
                  %v922 = vld [vmem:[%s788 + $0x410] sm:$0xff]
                  %923 = vst [vmem:[%s789 + $0x210] sm:$0xff] %v922
                  %v924 = vld [vmem:[%s788 + $0x418] sm:$0xff]
                  %925 = vst [vmem:[%s789 + $0x218] sm:$0xff] %v924
                  %v926 = vld [vmem:[%s788 + $0x420] sm:$0xff]
                  %927 = vst [vmem:[%s789 + $0x220] sm:$0xff] %v926
                  %v928 = vld [vmem:[%s788 + $0x428] sm:$0xff]
                  %929 = vst [vmem:[%s789 + $0x228] sm:$0xff] %v928
                  %v930 = vld [vmem:[%s788 + $0x430] sm:$0xff]
                  %931 = vst [vmem:[%s789 + $0x230] sm:$0xff] %v930
                  %v932 = vld [vmem:[%s788 + $0x438] sm:$0xff]
                  %933 = vst [vmem:[%s789 + $0x238] sm:$0xff] %v932
                  %v934 = vld [vmem:[%s788 + $0x480] sm:$0xff]
                  %935 = vst [vmem:[%s789 + $0x240] sm:$0xff] %v934
                  %v936 = vld [vmem:[%s788 + $0x488] sm:$0xff]
                  %937 = vst [vmem:[%s789 + $0x248] sm:$0xff] %v936
                  %v938 = vld [vmem:[%s788 + $0x490] sm:$0xff]
                  %939 = vst [vmem:[%s789 + $0x250] sm:$0xff] %v938
                  %v940 = vld [vmem:[%s788 + $0x498] sm:$0xff]
                  %941 = vst [vmem:[%s789 + $0x258] sm:$0xff] %v940
                  %v942 = vld [vmem:[%s788 + $0x4a0] sm:$0xff]
                  %943 = vst [vmem:[%s789 + $0x260] sm:$0xff] %v942
                  %v944 = vld [vmem:[%s788 + $0x4a8] sm:$0xff]
                  %945 = vst [vmem:[%s789 + $0x268] sm:$0xff] %v944
                  %v946 = vld [vmem:[%s788 + $0x4b0] sm:$0xff]
                  %947 = vst [vmem:[%s789 + $0x270] sm:$0xff] %v946
                  %v948 = vld [vmem:[%s788 + $0x4b8] sm:$0xff]
                  %949 = vst [vmem:[%s789 + $0x278] sm:$0xff] %v948
                  %v950 = vld [vmem:[%s788 + $0x500] sm:$0xff]
                  %951 = vst [vmem:[%s789 + $0x280] sm:$0xff] %v950
                  %v952 = vld [vmem:[%s788 + $0x508] sm:$0xff]
                  %953 = vst [vmem:[%s789 + $0x288] sm:$0xff] %v952
                  %v954 = vld [vmem:[%s788 + $0x510] sm:$0xff]
                  %955 = vst [vmem:[%s789 + $0x290] sm:$0xff] %v954
                  %v956 = vld [vmem:[%s788 + $0x518] sm:$0xff]
                  %957 = vst [vmem:[%s789 + $0x298] sm:$0xff] %v956
                  %v958 = vld [vmem:[%s788 + $0x520] sm:$0xff]
                  %959 = vst [vmem:[%s789 + $0x2a0] sm:$0xff] %v958
                  %v960 = vld [vmem:[%s788 + $0x528] sm:$0xff]
                  %961 = vst [vmem:[%s789 + $0x2a8] sm:$0xff] %v960
                  %v962 = vld [vmem:[%s788 + $0x530] sm:$0xff]
                  %963 = vst [vmem:[%s789 + $0x2b0] sm:$0xff] %v962
                  %v964 = vld [vmem:[%s788 + $0x538] sm:$0xff]
                  %965 = vst [vmem:[%s789 + $0x2b8] sm:$0xff] %v964
                  %v966 = vld [vmem:[%s788 + $0x580] sm:$0xff]
                  %967 = vst [vmem:[%s789 + $0x2c0] sm:$0xff] %v966
                  %v968 = vld [vmem:[%s788 + $0x588] sm:$0xff]
                  %969 = vst [vmem:[%s789 + $0x2c8] sm:$0xff] %v968
                  %v970 = vld [vmem:[%s788 + $0x590] sm:$0xff]
                  %971 = vst [vmem:[%s789 + $0x2d0] sm:$0xff] %v970
                  %v972 = vld [vmem:[%s788 + $0x598] sm:$0xff]
                  %973 = vst [vmem:[%s789 + $0x2d8] sm:$0xff] %v972
                  %v974 = vld [vmem:[%s788 + $0x5a0] sm:$0xff]
                  %975 = vst [vmem:[%s789 + $0x2e0] sm:$0xff] %v974
                  %v976 = vld [vmem:[%s788 + $0x5a8] sm:$0xff]
                  %977 = vst [vmem:[%s789 + $0x2e8] sm:$0xff] %v976
                  %v978 = vld [vmem:[%s788 + $0x5b0] sm:$0xff]
                  %979 = vst [vmem:[%s789 + $0x2f0] sm:$0xff] %v978
                  %v980 = vld [vmem:[%s788 + $0x5b8] sm:$0xff]
                  %981 = vst [vmem:[%s789 + $0x2f8] sm:$0xff] %v980
                  %v982 = vld [vmem:[%s788 + $0x600] sm:$0xff]
                  %983 = vst [vmem:[%s789 + $0x300] sm:$0xff] %v982
                  %v984 = vld [vmem:[%s788 + $0x608] sm:$0xff]
                  %985 = vst [vmem:[%s789 + $0x308] sm:$0xff] %v984
                  %v986 = vld [vmem:[%s788 + $0x610] sm:$0xff]
                  %987 = vst [vmem:[%s789 + $0x310] sm:$0xff] %v986
                  %v988 = vld [vmem:[%s788 + $0x618] sm:$0xff]
                  %989 = vst [vmem:[%s789 + $0x318] sm:$0xff] %v988
                  %v990 = vld [vmem:[%s788 + $0x620] sm:$0xff]
                  %991 = vst [vmem:[%s789 + $0x320] sm:$0xff] %v990
                  %v992 = vld [vmem:[%s788 + $0x628] sm:$0xff]
                  %993 = vst [vmem:[%s789 + $0x328] sm:$0xff] %v992
                  %v994 = vld [vmem:[%s788 + $0x630] sm:$0xff]
                  %995 = vst [vmem:[%s789 + $0x330] sm:$0xff] %v994
                  %v996 = vld [vmem:[%s788 + $0x638] sm:$0xff]
                  %997 = vst [vmem:[%s789 + $0x338] sm:$0xff] %v996
                  %v998 = vld [vmem:[%s788 + $0x680] sm:$0xff]
                  %999 = vst [vmem:[%s789 + $0x340] sm:$0xff] %v998
                  %v1000 = vld [vmem:[%s788 + $0x688] sm:$0xff]
                  %1001 = vst [vmem:[%s789 + $0x348] sm:$0xff] %v1000
                  %v1002 = vld [vmem:[%s788 + $0x690] sm:$0xff]
                  %1003 = vst [vmem:[%s789 + $0x350] sm:$0xff] %v1002
                  %v1004 = vld [vmem:[%s788 + $0x698] sm:$0xff]
                  %1005 = vst [vmem:[%s789 + $0x358] sm:$0xff] %v1004
                  %v1006 = vld [vmem:[%s788 + $0x6a0] sm:$0xff]
                  %1007 = vst [vmem:[%s789 + $0x360] sm:$0xff] %v1006
                  %v1008 = vld [vmem:[%s788 + $0x6a8] sm:$0xff]
                  %1009 = vst [vmem:[%s789 + $0x368] sm:$0xff] %v1008
                  %v1010 = vld [vmem:[%s788 + $0x6b0] sm:$0xff]
                  %1011 = vst [vmem:[%s789 + $0x370] sm:$0xff] %v1010
                  %v1012 = vld [vmem:[%s788 + $0x6b8] sm:$0xff]
                  %1013 = vst [vmem:[%s789 + $0x378] sm:$0xff] %v1012
                  %v1014 = vld [vmem:[%s788 + $0x700] sm:$0xff]
                  %1015 = vst [vmem:[%s789 + $0x380] sm:$0xff] %v1014
                  %v1016 = vld [vmem:[%s788 + $0x708] sm:$0xff]
                  %1017 = vst [vmem:[%s789 + $0x388] sm:$0xff] %v1016
                  %v1018 = vld [vmem:[%s788 + $0x710] sm:$0xff]
                  %1019 = vst [vmem:[%s789 + $0x390] sm:$0xff] %v1018
                  %v1020 = vld [vmem:[%s788 + $0x718] sm:$0xff]
                  %1021 = vst [vmem:[%s789 + $0x398] sm:$0xff] %v1020
                  %v1022 = vld [vmem:[%s788 + $0x720] sm:$0xff]
                  %1023 = vst [vmem:[%s789 + $0x3a0] sm:$0xff] %v1022
                  %v1024 = vld [vmem:[%s788 + $0x728] sm:$0xff]
                  %1025 = vst [vmem:[%s789 + $0x3a8] sm:$0xff] %v1024
                  %v1026 = vld [vmem:[%s788 + $0x730] sm:$0xff]
                  %1027 = vst [vmem:[%s789 + $0x3b0] sm:$0xff] %v1026
                  %v1028 = vld [vmem:[%s788 + $0x738] sm:$0xff]
                  %1029 = vst [vmem:[%s789 + $0x3b8] sm:$0xff] %v1028
                  %v1030 = vld [vmem:[%s788 + $0x780] sm:$0xff]
                  %1031 = vst [vmem:[%s789 + $0x3c0] sm:$0xff] %v1030
                  %v1032 = vld [vmem:[%s788 + $0x788] sm:$0xff]
                  %1033 = vst [vmem:[%s789 + $0x3c8] sm:$0xff] %v1032
                  %v1034 = vld [vmem:[%s788 + $0x790] sm:$0xff]
                  %1035 = vst [vmem:[%s789 + $0x3d0] sm:$0xff] %v1034
                  %v1036 = vld [vmem:[%s788 + $0x798] sm:$0xff]
                  %1037 = vst [vmem:[%s789 + $0x3d8] sm:$0xff] %v1036
                  %v1038 = vld [vmem:[%s788 + $0x7a0] sm:$0xff]
                  %1039 = vst [vmem:[%s789 + $0x3e0] sm:$0xff] %v1038
                  %v1040 = vld [vmem:[%s788 + $0x7a8] sm:$0xff]
                  %1041 = vst [vmem:[%s789 + $0x3e8] sm:$0xff] %v1040
                  %v1042 = vld [vmem:[%s788 + $0x7b0] sm:$0xff]
                  %1043 = vst [vmem:[%s789 + $0x3f0] sm:$0xff] %v1042
                  %v1044 = vld [vmem:[%s788 + $0x7b8] sm:$0xff]
                  %1045 = vst [vmem:[%s789 + $0x3f8] sm:$0xff] %v1044
                  %v1046 = vld [vmem:[%s788 + $0x800] sm:$0xff]
                  %1047 = vst [vmem:[%s789 + $0x400] sm:$0xff] %v1046
                  %v1048 = vld [vmem:[%s788 + $0x808] sm:$0xff]
                  %1049 = vst [vmem:[%s789 + $0x408] sm:$0xff] %v1048
                  %v1050 = vld [vmem:[%s788 + $0x810] sm:$0xff]
                  %1051 = vst [vmem:[%s789 + $0x410] sm:$0xff] %v1050
                  %v1052 = vld [vmem:[%s788 + $0x818] sm:$0xff]
                  %1053 = vst [vmem:[%s789 + $0x418] sm:$0xff] %v1052
                  %v1054 = vld [vmem:[%s788 + $0x820] sm:$0xff]
                  %1055 = vst [vmem:[%s789 + $0x420] sm:$0xff] %v1054
                  %v1056 = vld [vmem:[%s788 + $0x828] sm:$0xff]
                  %1057 = vst [vmem:[%s789 + $0x428] sm:$0xff] %v1056
                  %v1058 = vld [vmem:[%s788 + $0x830] sm:$0xff]
                  %1059 = vst [vmem:[%s789 + $0x430] sm:$0xff] %v1058
                  %v1060 = vld [vmem:[%s788 + $0x838] sm:$0xff]
                  %1061 = vst [vmem:[%s789 + $0x438] sm:$0xff] %v1060
                  %v1062 = vld [vmem:[%s788 + $0x880] sm:$0xff]
                  %1063 = vst [vmem:[%s789 + $0x440] sm:$0xff] %v1062
                  %v1064 = vld [vmem:[%s788 + $0x888] sm:$0xff]
                  %1065 = vst [vmem:[%s789 + $0x448] sm:$0xff] %v1064
                  %v1066 = vld [vmem:[%s788 + $0x890] sm:$0xff]
                  %1067 = vst [vmem:[%s789 + $0x450] sm:$0xff] %v1066
                  %v1068 = vld [vmem:[%s788 + $0x898] sm:$0xff]
                  %1069 = vst [vmem:[%s789 + $0x458] sm:$0xff] %v1068
                  %v1070 = vld [vmem:[%s788 + $0x8a0] sm:$0xff]
                  %1071 = vst [vmem:[%s789 + $0x460] sm:$0xff] %v1070
                  %v1072 = vld [vmem:[%s788 + $0x8a8] sm:$0xff]
                  %1073 = vst [vmem:[%s789 + $0x468] sm:$0xff] %v1072
                  %v1074 = vld [vmem:[%s788 + $0x8b0] sm:$0xff]
                  %1075 = vst [vmem:[%s789 + $0x470] sm:$0xff] %v1074
                  %v1076 = vld [vmem:[%s788 + $0x8b8] sm:$0xff]
                  %1077 = vst [vmem:[%s789 + $0x478] sm:$0xff] %v1076
                  %v1078 = vld [vmem:[%s788 + $0x900] sm:$0xff]
                  %1079 = vst [vmem:[%s789 + $0x480] sm:$0xff] %v1078
                  %v1080 = vld [vmem:[%s788 + $0x908] sm:$0xff]
                  %1081 = vst [vmem:[%s789 + $0x488] sm:$0xff] %v1080
                  %v1082 = vld [vmem:[%s788 + $0x910] sm:$0xff]
                  %1083 = vst [vmem:[%s789 + $0x490] sm:$0xff] %v1082
                  %v1084 = vld [vmem:[%s788 + $0x918] sm:$0xff]
                  %1085 = vst [vmem:[%s789 + $0x498] sm:$0xff] %v1084
                  %v1086 = vld [vmem:[%s788 + $0x920] sm:$0xff]
                  %1087 = vst [vmem:[%s789 + $0x4a0] sm:$0xff] %v1086
                  %v1088 = vld [vmem:[%s788 + $0x928] sm:$0xff]
                  %1089 = vst [vmem:[%s789 + $0x4a8] sm:$0xff] %v1088
                  %v1090 = vld [vmem:[%s788 + $0x930] sm:$0xff]
                  %1091 = vst [vmem:[%s789 + $0x4b0] sm:$0xff] %v1090
                  %v1092 = vld [vmem:[%s788 + $0x938] sm:$0xff]
                  %1093 = vst [vmem:[%s789 + $0x4b8] sm:$0xff] %v1092
                  %v1094 = vld [vmem:[%s788 + $0x980] sm:$0xff]
                  %1095 = vst [vmem:[%s789 + $0x4c0] sm:$0xff] %v1094
                  %v1096 = vld [vmem:[%s788 + $0x988] sm:$0xff]
                  %1097 = vst [vmem:[%s789 + $0x4c8] sm:$0xff] %v1096
                  %v1098 = vld [vmem:[%s788 + $0x990] sm:$0xff]
                  %1099 = vst [vmem:[%s789 + $0x4d0] sm:$0xff] %v1098
                  %v1100 = vld [vmem:[%s788 + $0x998] sm:$0xff]
                  %1101 = vst [vmem:[%s789 + $0x4d8] sm:$0xff] %v1100
                  %v1102 = vld [vmem:[%s788 + $0x9a0] sm:$0xff]
                  %1103 = vst [vmem:[%s789 + $0x4e0] sm:$0xff] %v1102
                  %v1104 = vld [vmem:[%s788 + $0x9a8] sm:$0xff]
                  %1105 = vst [vmem:[%s789 + $0x4e8] sm:$0xff] %v1104
                  %v1106 = vld [vmem:[%s788 + $0x9b0] sm:$0xff]
                  %1107 = vst [vmem:[%s789 + $0x4f0] sm:$0xff] %v1106
                  %v1108 = vld [vmem:[%s788 + $0x9b8] sm:$0xff]
                  %1109 = vst [vmem:[%s789 + $0x4f8] sm:$0xff] %v1108
                  %v1110 = vld [vmem:[%s788 + $0xa00] sm:$0xff]
                  %1111 = vst [vmem:[%s789 + $0x500] sm:$0xff] %v1110
                  %v1112 = vld [vmem:[%s788 + $0xa08] sm:$0xff]
                  %1113 = vst [vmem:[%s789 + $0x508] sm:$0xff] %v1112
                  %v1114 = vld [vmem:[%s788 + $0xa10] sm:$0xff]
                  %1115 = vst [vmem:[%s789 + $0x510] sm:$0xff] %v1114
                  %v1116 = vld [vmem:[%s788 + $0xa18] sm:$0xff]
                  %1117 = vst [vmem:[%s789 + $0x518] sm:$0xff] %v1116
                  %v1118 = vld [vmem:[%s788 + $0xa20] sm:$0xff]
                  %1119 = vst [vmem:[%s789 + $0x520] sm:$0xff] %v1118
                  %v1120 = vld [vmem:[%s788 + $0xa28] sm:$0xff]
                  %1121 = vst [vmem:[%s789 + $0x528] sm:$0xff] %v1120
                  %v1122 = vld [vmem:[%s788 + $0xa30] sm:$0xff]
                  %1123 = vst [vmem:[%s789 + $0x530] sm:$0xff] %v1122
                  %v1124 = vld [vmem:[%s788 + $0xa38] sm:$0xff]
                  %1125 = vst [vmem:[%s789 + $0x538] sm:$0xff] %v1124
                  %v1126 = vld [vmem:[%s788 + $0xa80] sm:$0xff]
                  %1127 = vst [vmem:[%s789 + $0x540] sm:$0xff] %v1126
                  %v1128 = vld [vmem:[%s788 + $0xa88] sm:$0xff]
                  %1129 = vst [vmem:[%s789 + $0x548] sm:$0xff] %v1128
                  %v1130 = vld [vmem:[%s788 + $0xa90] sm:$0xff]
                  %1131 = vst [vmem:[%s789 + $0x550] sm:$0xff] %v1130
                  %v1132 = vld [vmem:[%s788 + $0xa98] sm:$0xff]
                  %1133 = vst [vmem:[%s789 + $0x558] sm:$0xff] %v1132
                  %v1134 = vld [vmem:[%s788 + $0xaa0] sm:$0xff]
                  %1135 = vst [vmem:[%s789 + $0x560] sm:$0xff] %v1134
                  %v1136 = vld [vmem:[%s788 + $0xaa8] sm:$0xff]
                  %1137 = vst [vmem:[%s789 + $0x568] sm:$0xff] %v1136
                  %v1138 = vld [vmem:[%s788 + $0xab0] sm:$0xff]
                  %1139 = vst [vmem:[%s789 + $0x570] sm:$0xff] %v1138
                  %v1140 = vld [vmem:[%s788 + $0xab8] sm:$0xff]
                  %1141 = vst [vmem:[%s789 + $0x578] sm:$0xff] %v1140
                  %v1142 = vld [vmem:[%s788 + $0xb00] sm:$0xff]
                  %1143 = vst [vmem:[%s789 + $0x580] sm:$0xff] %v1142
                  %v1144 = vld [vmem:[%s788 + $0xb08] sm:$0xff]
                  %1145 = vst [vmem:[%s789 + $0x588] sm:$0xff] %v1144
                  %v1146 = vld [vmem:[%s788 + $0xb10] sm:$0xff]
                  %1147 = vst [vmem:[%s789 + $0x590] sm:$0xff] %v1146
                  %v1148 = vld [vmem:[%s788 + $0xb18] sm:$0xff]
                  %1149 = vst [vmem:[%s789 + $0x598] sm:$0xff] %v1148
                  %v1150 = vld [vmem:[%s788 + $0xb20] sm:$0xff]
                  %1151 = vst [vmem:[%s789 + $0x5a0] sm:$0xff] %v1150
                  %v1152 = vld [vmem:[%s788 + $0xb28] sm:$0xff]
                  %1153 = vst [vmem:[%s789 + $0x5a8] sm:$0xff] %v1152
                  %v1154 = vld [vmem:[%s788 + $0xb30] sm:$0xff]
                  %1155 = vst [vmem:[%s789 + $0x5b0] sm:$0xff] %v1154
                  %v1156 = vld [vmem:[%s788 + $0xb38] sm:$0xff]
                  %1157 = vst [vmem:[%s789 + $0x5b8] sm:$0xff] %v1156
                  %v1158 = vld [vmem:[%s788 + $0xb80] sm:$0xff]
                  %1159 = vst [vmem:[%s789 + $0x5c0] sm:$0xff] %v1158
                  %v1160 = vld [vmem:[%s788 + $0xb88] sm:$0xff]
                  %1161 = vst [vmem:[%s789 + $0x5c8] sm:$0xff] %v1160
                  %v1162 = vld [vmem:[%s788 + $0xb90] sm:$0xff]
                  %1163 = vst [vmem:[%s789 + $0x5d0] sm:$0xff] %v1162
                  %v1164 = vld [vmem:[%s788 + $0xb98] sm:$0xff]
                  %1165 = vst [vmem:[%s789 + $0x5d8] sm:$0xff] %v1164
                  %v1166 = vld [vmem:[%s788 + $0xba0] sm:$0xff]
                  %1167 = vst [vmem:[%s789 + $0x5e0] sm:$0xff] %v1166
                  %v1168 = vld [vmem:[%s788 + $0xba8] sm:$0xff]
                  %1169 = vst [vmem:[%s789 + $0x5e8] sm:$0xff] %v1168
                  %v1170 = vld [vmem:[%s788 + $0xbb0] sm:$0xff]
                  %1171 = vst [vmem:[%s789 + $0x5f0] sm:$0xff] %v1170
                  %v1172 = vld [vmem:[%s788 + $0xbb8] sm:$0xff]
                  %1173 = vst [vmem:[%s789 + $0x5f8] sm:$0xff] %v1172
                  %v1174 = vld [vmem:[%s788 + $0xc00] sm:$0xff]
                  %1175 = vst [vmem:[%s789 + $0x600] sm:$0xff] %v1174
                  %v1176 = vld [vmem:[%s788 + $0xc08] sm:$0xff]
                  %1177 = vst [vmem:[%s789 + $0x608] sm:$0xff] %v1176
                  %v1178 = vld [vmem:[%s788 + $0xc10] sm:$0xff]
                  %1179 = vst [vmem:[%s789 + $0x610] sm:$0xff] %v1178
                  %v1180 = vld [vmem:[%s788 + $0xc18] sm:$0xff]
                  %1181 = vst [vmem:[%s789 + $0x618] sm:$0xff] %v1180
                  %v1182 = vld [vmem:[%s788 + $0xc20] sm:$0xff]
                  %1183 = vst [vmem:[%s789 + $0x620] sm:$0xff] %v1182
                  %v1184 = vld [vmem:[%s788 + $0xc28] sm:$0xff]
                  %1185 = vst [vmem:[%s789 + $0x628] sm:$0xff] %v1184
                  %v1186 = vld [vmem:[%s788 + $0xc30] sm:$0xff]
                  %1187 = vst [vmem:[%s789 + $0x630] sm:$0xff] %v1186
                  %v1188 = vld [vmem:[%s788 + $0xc38] sm:$0xff]
                  %1189 = vst [vmem:[%s789 + $0x638] sm:$0xff] %v1188
                  %v1190 = vld [vmem:[%s788 + $0xc80] sm:$0xff]
                  %1191 = vst [vmem:[%s789 + $0x640] sm:$0xff] %v1190
                  %v1192 = vld [vmem:[%s788 + $0xc88] sm:$0xff]
                  %1193 = vst [vmem:[%s789 + $0x648] sm:$0xff] %v1192
                  %v1194 = vld [vmem:[%s788 + $0xc90] sm:$0xff]
                  %1195 = vst [vmem:[%s789 + $0x650] sm:$0xff] %v1194
                  %v1196 = vld [vmem:[%s788 + $0xc98] sm:$0xff]
                  %1197 = vst [vmem:[%s789 + $0x658] sm:$0xff] %v1196
                  %v1198 = vld [vmem:[%s788 + $0xca0] sm:$0xff]
                  %1199 = vst [vmem:[%s789 + $0x660] sm:$0xff] %v1198
                  %v1200 = vld [vmem:[%s788 + $0xca8] sm:$0xff]
                  %1201 = vst [vmem:[%s789 + $0x668] sm:$0xff] %v1200
                  %v1202 = vld [vmem:[%s788 + $0xcb0] sm:$0xff]
                  %1203 = vst [vmem:[%s789 + $0x670] sm:$0xff] %v1202
                  %v1204 = vld [vmem:[%s788 + $0xcb8] sm:$0xff]
                  %1205 = vst [vmem:[%s789 + $0x678] sm:$0xff] %v1204
                  %v1206 = vld [vmem:[%s788 + $0xd00] sm:$0xff]
                  %1207 = vst [vmem:[%s789 + $0x680] sm:$0xff] %v1206
                  %v1208 = vld [vmem:[%s788 + $0xd08] sm:$0xff]
                  %1209 = vst [vmem:[%s789 + $0x688] sm:$0xff] %v1208
                  %v1210 = vld [vmem:[%s788 + $0xd10] sm:$0xff]
                  %1211 = vst [vmem:[%s789 + $0x690] sm:$0xff] %v1210
                  %v1212 = vld [vmem:[%s788 + $0xd18] sm:$0xff]
                  %1213 = vst [vmem:[%s789 + $0x698] sm:$0xff] %v1212
                  %v1214 = vld [vmem:[%s788 + $0xd20] sm:$0xff]
                  %1215 = vst [vmem:[%s789 + $0x6a0] sm:$0xff] %v1214
                  %v1216 = vld [vmem:[%s788 + $0xd28] sm:$0xff]
                  %1217 = vst [vmem:[%s789 + $0x6a8] sm:$0xff] %v1216
                  %v1218 = vld [vmem:[%s788 + $0xd30] sm:$0xff]
                  %1219 = vst [vmem:[%s789 + $0x6b0] sm:$0xff] %v1218
                  %v1220 = vld [vmem:[%s788 + $0xd38] sm:$0xff]
                  %1221 = vst [vmem:[%s789 + $0x6b8] sm:$0xff] %v1220
                  %v1222 = vld [vmem:[%s788 + $0xd80] sm:$0xff]
                  %1223 = vst [vmem:[%s789 + $0x6c0] sm:$0xff] %v1222
                  %v1224 = vld [vmem:[%s788 + $0xd88] sm:$0xff]
                  %1225 = vst [vmem:[%s789 + $0x6c8] sm:$0xff] %v1224
                  %v1226 = vld [vmem:[%s788 + $0xd90] sm:$0xff]
                  %1227 = vst [vmem:[%s789 + $0x6d0] sm:$0xff] %v1226
                  %v1228 = vld [vmem:[%s788 + $0xd98] sm:$0xff]
                  %1229 = vst [vmem:[%s789 + $0x6d8] sm:$0xff] %v1228
                  %v1230 = vld [vmem:[%s788 + $0xda0] sm:$0xff]
                  %1231 = vst [vmem:[%s789 + $0x6e0] sm:$0xff] %v1230
                  %v1232 = vld [vmem:[%s788 + $0xda8] sm:$0xff]
                  %1233 = vst [vmem:[%s789 + $0x6e8] sm:$0xff] %v1232
                  %v1234 = vld [vmem:[%s788 + $0xdb0] sm:$0xff]
                  %1235 = vst [vmem:[%s789 + $0x6f0] sm:$0xff] %v1234
                  %v1236 = vld [vmem:[%s788 + $0xdb8] sm:$0xff]
                  %1237 = vst [vmem:[%s789 + $0x6f8] sm:$0xff] %v1236
                  %v1238 = vld [vmem:[%s788 + $0xe00] sm:$0xff]
                  %1239 = vst [vmem:[%s789 + $0x700] sm:$0xff] %v1238
                  %v1240 = vld [vmem:[%s788 + $0xe08] sm:$0xff]
                  %1241 = vst [vmem:[%s789 + $0x708] sm:$0xff] %v1240
                  %v1242 = vld [vmem:[%s788 + $0xe10] sm:$0xff]
                  %1243 = vst [vmem:[%s789 + $0x710] sm:$0xff] %v1242
                  %v1244 = vld [vmem:[%s788 + $0xe18] sm:$0xff]
                  %1245 = vst [vmem:[%s789 + $0x718] sm:$0xff] %v1244
                  %v1246 = vld [vmem:[%s788 + $0xe20] sm:$0xff]
                  %1247 = vst [vmem:[%s789 + $0x720] sm:$0xff] %v1246
                  %v1248 = vld [vmem:[%s788 + $0xe28] sm:$0xff]
                  %1249 = vst [vmem:[%s789 + $0x728] sm:$0xff] %v1248
                  %v1250 = vld [vmem:[%s788 + $0xe30] sm:$0xff]
                  %1251 = vst [vmem:[%s789 + $0x730] sm:$0xff] %v1250
                  %v1252 = vld [vmem:[%s788 + $0xe38] sm:$0xff]
                  %1253 = vst [vmem:[%s789 + $0x738] sm:$0xff] %v1252
                  %v1254 = vld [vmem:[%s788 + $0xe80] sm:$0xff]
                  %1255 = vst [vmem:[%s789 + $0x740] sm:$0xff] %v1254
                  %v1256 = vld [vmem:[%s788 + $0xe88] sm:$0xff]
                  %1257 = vst [vmem:[%s789 + $0x748] sm:$0xff] %v1256
                  %v1258 = vld [vmem:[%s788 + $0xe90] sm:$0xff]
                  %1259 = vst [vmem:[%s789 + $0x750] sm:$0xff] %v1258
                  %v1260 = vld [vmem:[%s788 + $0xe98] sm:$0xff]
                  %1261 = vst [vmem:[%s789 + $0x758] sm:$0xff] %v1260
                  %v1262 = vld [vmem:[%s788 + $0xea0] sm:$0xff]
                  %1263 = vst [vmem:[%s789 + $0x760] sm:$0xff] %v1262
                  %v1264 = vld [vmem:[%s788 + $0xea8] sm:$0xff]
                  %1265 = vst [vmem:[%s789 + $0x768] sm:$0xff] %v1264
                  %v1266 = vld [vmem:[%s788 + $0xeb0] sm:$0xff]
                  %1267 = vst [vmem:[%s789 + $0x770] sm:$0xff] %v1266
                  %v1268 = vld [vmem:[%s788 + $0xeb8] sm:$0xff]
                  %1269 = vst [vmem:[%s789 + $0x778] sm:$0xff] %v1268
                  %v1270 = vld [vmem:[%s788 + $0xf00] sm:$0xff]
                  %1271 = vst [vmem:[%s789 + $0x780] sm:$0xff] %v1270
                  %v1272 = vld [vmem:[%s788 + $0xf08] sm:$0xff]
                  %1273 = vst [vmem:[%s789 + $0x788] sm:$0xff] %v1272
                  %v1274 = vld [vmem:[%s788 + $0xf10] sm:$0xff]
                  %1275 = vst [vmem:[%s789 + $0x790] sm:$0xff] %v1274
                  %v1276 = vld [vmem:[%s788 + $0xf18] sm:$0xff]
                  %1277 = vst [vmem:[%s789 + $0x798] sm:$0xff] %v1276
                  %v1278 = vld [vmem:[%s788 + $0xf20] sm:$0xff]
                  %1279 = vst [vmem:[%s789 + $0x7a0] sm:$0xff] %v1278
                  %v1280 = vld [vmem:[%s788 + $0xf28] sm:$0xff]
                  %1281 = vst [vmem:[%s789 + $0x7a8] sm:$0xff] %v1280
                  %v1282 = vld [vmem:[%s788 + $0xf30] sm:$0xff]
                  %1283 = vst [vmem:[%s789 + $0x7b0] sm:$0xff] %v1282
                  %v1284 = vld [vmem:[%s788 + $0xf38] sm:$0xff]
                  %1285 = vst [vmem:[%s789 + $0x7b8] sm:$0xff] %v1284
                  %v1286 = vld [vmem:[%s788 + $0xf80] sm:$0xff]
                  %1287 = vst [vmem:[%s789 + $0x7c0] sm:$0xff] %v1286
                  %v1288 = vld [vmem:[%s788 + $0xf88] sm:$0xff]
                  %1289 = vst [vmem:[%s789 + $0x7c8] sm:$0xff] %v1288
                  %v1290 = vld [vmem:[%s788 + $0xf90] sm:$0xff]
                  %1291 = vst [vmem:[%s789 + $0x7d0] sm:$0xff] %v1290
                  %v1292 = vld [vmem:[%s788 + $0xf98] sm:$0xff]
                  %1293 = vst [vmem:[%s789 + $0x7d8] sm:$0xff] %v1292
                  %v1294 = vld [vmem:[%s788 + $0xfa0] sm:$0xff]
                  %1295 = vst [vmem:[%s789 + $0x7e0] sm:$0xff] %v1294
                  %v1296 = vld [vmem:[%s788 + $0xfa8] sm:$0xff]
                  %1297 = vst [vmem:[%s789 + $0x7e8] sm:$0xff] %v1296
                  %v1298 = vld [vmem:[%s788 + $0xfb0] sm:$0xff]
                  %1299 = vst [vmem:[%s789 + $0x7f0] sm:$0xff] %v1298
                  %v1300 = vld [vmem:[%s788 + $0xfb8] sm:$0xff]
                  %1301 = vst [vmem:[%s789 + $0x7f8] sm:$0xff] %v1300
                $region56: #{network_forward.1} parent=50 // loop_footer
                  %s787 = sadd.s32 1, %s783
                $region57: #{network_forward.1} parent=50 // loop_footer_branch
                  %782 = sbr.rel target = $region53
                $region58: #{network_forward.1} parent=50 // loop_exit
                  _
              $region51: #{network_forward.1} parent=35 // pred_fallthru
                _
              // Predicated region
              $region59: #{network_forward.1} parent=35 // pred_check
                _
              $region60: #{network_forward.1} parent=35 // pred_check_branch
                %1303 = sbr.rel target = $region62
              $region61: #{network_forward.1} parent=35 // pred_region
                _
              $region62: #{network_forward.1} parent=35 // pred_fallthru
                _
            $region36: #{network_forward.1} parent=31 // pred_fallthru
              _
            // Predicated region
            $region37: #{network_forward.1} parent=31 // pred_check
              _
            $region38: #{network_forward.1} parent=31 // pred_check_branch
              %258 = sbr.rel target = $region40
            $region39: #{network_forward.1} parent=31 // pred_region
              loop: start=0, step=1, limit=1
              $region41: #{network_forward.1} parent=39 // loop_pre_header
                _
              $region42: #{network_forward.1} parent=39 // loop_header
                %s261 = sphi 0, %s265
                %p262 = scmp.ge.s32.totalorder %s261, 1
                %s266 = sphi %s252, %s252
                %s267 = sphi %s249, %s249
              $region43: #{network_forward.1} parent=39 // loop_header_branch
                %264 = sbr.rel (%p262) target = $region47
              $region44: #{network_forward.1} parent=39 // loop_body
                %v268 = vld [vmem:[%s266] sm:$0xff]
                %269 = vst [vmem:[%s267] sm:$0xff] %v268
                %v270 = vld [vmem:[%s266 + $0x8] sm:$0xff]
                %271 = vst [vmem:[%s267 + $0x8] sm:$0xff] %v270
                %v272 = vld [vmem:[%s266 + $0x10] sm:$0xff]
                %273 = vst [vmem:[%s267 + $0x10] sm:$0xff] %v272
                %v274 = vld [vmem:[%s266 + $0x18] sm:$0xff]
                %275 = vst [vmem:[%s267 + $0x18] sm:$0xff] %v274
                %v276 = vld [vmem:[%s266 + $0x20] sm:$0xff]
                %277 = vst [vmem:[%s267 + $0x20] sm:$0xff] %v276
                %v278 = vld [vmem:[%s266 + $0x28] sm:$0xff]
                %279 = vst [vmem:[%s267 + $0x28] sm:$0xff] %v278
                %v280 = vld [vmem:[%s266 + $0x30] sm:$0xff]
                %281 = vst [vmem:[%s267 + $0x30] sm:$0xff] %v280
                %v282 = vld [vmem:[%s266 + $0x38] sm:$0xff]
                %283 = vst [vmem:[%s267 + $0x38] sm:$0xff] %v282
                %v284 = vld [vmem:[%s266 + $0x80] sm:$0xff]
                %285 = vst [vmem:[%s267 + $0x40] sm:$0xff] %v284
                %v286 = vld [vmem:[%s266 + $0x88] sm:$0xff]
                %287 = vst [vmem:[%s267 + $0x48] sm:$0xff] %v286
                %v288 = vld [vmem:[%s266 + $0x90] sm:$0xff]
                %289 = vst [vmem:[%s267 + $0x50] sm:$0xff] %v288
                %v290 = vld [vmem:[%s266 + $0x98] sm:$0xff]
                %291 = vst [vmem:[%s267 + $0x58] sm:$0xff] %v290
                %v292 = vld [vmem:[%s266 + $0xa0] sm:$0xff]
                %293 = vst [vmem:[%s267 + $0x60] sm:$0xff] %v292
                %v294 = vld [vmem:[%s266 + $0xa8] sm:$0xff]
                %295 = vst [vmem:[%s267 + $0x68] sm:$0xff] %v294
                %v296 = vld [vmem:[%s266 + $0xb0] sm:$0xff]
                %297 = vst [vmem:[%s267 + $0x70] sm:$0xff] %v296
                %v298 = vld [vmem:[%s266 + $0xb8] sm:$0xff]
                %299 = vst [vmem:[%s267 + $0x78] sm:$0xff] %v298
                %v300 = vld [vmem:[%s266 + $0x100] sm:$0xff]
                %301 = vst [vmem:[%s267 + $0x80] sm:$0xff] %v300
                %v302 = vld [vmem:[%s266 + $0x108] sm:$0xff]
                %303 = vst [vmem:[%s267 + $0x88] sm:$0xff] %v302
                %v304 = vld [vmem:[%s266 + $0x110] sm:$0xff]
                %305 = vst [vmem:[%s267 + $0x90] sm:$0xff] %v304
                %v306 = vld [vmem:[%s266 + $0x118] sm:$0xff]
                %307 = vst [vmem:[%s267 + $0x98] sm:$0xff] %v306
                %v308 = vld [vmem:[%s266 + $0x120] sm:$0xff]
                %309 = vst [vmem:[%s267 + $0xa0] sm:$0xff] %v308
                %v310 = vld [vmem:[%s266 + $0x128] sm:$0xff]
                %311 = vst [vmem:[%s267 + $0xa8] sm:$0xff] %v310
                %v312 = vld [vmem:[%s266 + $0x130] sm:$0xff]
                %313 = vst [vmem:[%s267 + $0xb0] sm:$0xff] %v312
                %v314 = vld [vmem:[%s266 + $0x138] sm:$0xff]
                %315 = vst [vmem:[%s267 + $0xb8] sm:$0xff] %v314
                %v316 = vld [vmem:[%s266 + $0x180] sm:$0xff]
                %317 = vst [vmem:[%s267 + $0xc0] sm:$0xff] %v316
                %v318 = vld [vmem:[%s266 + $0x188] sm:$0xff]
                %319 = vst [vmem:[%s267 + $0xc8] sm:$0xff] %v318
                %v320 = vld [vmem:[%s266 + $0x190] sm:$0xff]
                %321 = vst [vmem:[%s267 + $0xd0] sm:$0xff] %v320
                %v322 = vld [vmem:[%s266 + $0x198] sm:$0xff]
                %323 = vst [vmem:[%s267 + $0xd8] sm:$0xff] %v322
                %v324 = vld [vmem:[%s266 + $0x1a0] sm:$0xff]
                %325 = vst [vmem:[%s267 + $0xe0] sm:$0xff] %v324
                %v326 = vld [vmem:[%s266 + $0x1a8] sm:$0xff]
                %327 = vst [vmem:[%s267 + $0xe8] sm:$0xff] %v326
                %v328 = vld [vmem:[%s266 + $0x1b0] sm:$0xff]
                %329 = vst [vmem:[%s267 + $0xf0] sm:$0xff] %v328
                %v330 = vld [vmem:[%s266 + $0x1b8] sm:$0xff]
                %331 = vst [vmem:[%s267 + $0xf8] sm:$0xff] %v330
                %v332 = vld [vmem:[%s266 + $0x200] sm:$0xff]
                %333 = vst [vmem:[%s267 + $0x100] sm:$0xff] %v332
                %v334 = vld [vmem:[%s266 + $0x208] sm:$0xff]
                %335 = vst [vmem:[%s267 + $0x108] sm:$0xff] %v334
                %v336 = vld [vmem:[%s266 + $0x210] sm:$0xff]
                %337 = vst [vmem:[%s267 + $0x110] sm:$0xff] %v336
                %v338 = vld [vmem:[%s266 + $0x218] sm:$0xff]
                %339 = vst [vmem:[%s267 + $0x118] sm:$0xff] %v338
                %v340 = vld [vmem:[%s266 + $0x220] sm:$0xff]
                %341 = vst [vmem:[%s267 + $0x120] sm:$0xff] %v340
                %v342 = vld [vmem:[%s266 + $0x228] sm:$0xff]
                %343 = vst [vmem:[%s267 + $0x128] sm:$0xff] %v342
                %v344 = vld [vmem:[%s266 + $0x230] sm:$0xff]
                %345 = vst [vmem:[%s267 + $0x130] sm:$0xff] %v344
                %v346 = vld [vmem:[%s266 + $0x238] sm:$0xff]
                %347 = vst [vmem:[%s267 + $0x138] sm:$0xff] %v346
                %v348 = vld [vmem:[%s266 + $0x280] sm:$0xff]
                %349 = vst [vmem:[%s267 + $0x140] sm:$0xff] %v348
                %v350 = vld [vmem:[%s266 + $0x288] sm:$0xff]
                %351 = vst [vmem:[%s267 + $0x148] sm:$0xff] %v350
                %v352 = vld [vmem:[%s266 + $0x290] sm:$0xff]
                %353 = vst [vmem:[%s267 + $0x150] sm:$0xff] %v352
                %v354 = vld [vmem:[%s266 + $0x298] sm:$0xff]
                %355 = vst [vmem:[%s267 + $0x158] sm:$0xff] %v354
                %v356 = vld [vmem:[%s266 + $0x2a0] sm:$0xff]
                %357 = vst [vmem:[%s267 + $0x160] sm:$0xff] %v356
                %v358 = vld [vmem:[%s266 + $0x2a8] sm:$0xff]
                %359 = vst [vmem:[%s267 + $0x168] sm:$0xff] %v358
                %v360 = vld [vmem:[%s266 + $0x2b0] sm:$0xff]
                %361 = vst [vmem:[%s267 + $0x170] sm:$0xff] %v360
                %v362 = vld [vmem:[%s266 + $0x2b8] sm:$0xff]
                %363 = vst [vmem:[%s267 + $0x178] sm:$0xff] %v362
                %v364 = vld [vmem:[%s266 + $0x300] sm:$0xff]
                %365 = vst [vmem:[%s267 + $0x180] sm:$0xff] %v364
                %v366 = vld [vmem:[%s266 + $0x308] sm:$0xff]
                %367 = vst [vmem:[%s267 + $0x188] sm:$0xff] %v366
                %v368 = vld [vmem:[%s266 + $0x310] sm:$0xff]
                %369 = vst [vmem:[%s267 + $0x190] sm:$0xff] %v368
                %v370 = vld [vmem:[%s266 + $0x318] sm:$0xff]
                %371 = vst [vmem:[%s267 + $0x198] sm:$0xff] %v370
                %v372 = vld [vmem:[%s266 + $0x320] sm:$0xff]
                %373 = vst [vmem:[%s267 + $0x1a0] sm:$0xff] %v372
                %v374 = vld [vmem:[%s266 + $0x328] sm:$0xff]
                %375 = vst [vmem:[%s267 + $0x1a8] sm:$0xff] %v374
                %v376 = vld [vmem:[%s266 + $0x330] sm:$0xff]
                %377 = vst [vmem:[%s267 + $0x1b0] sm:$0xff] %v376
                %v378 = vld [vmem:[%s266 + $0x338] sm:$0xff]
                %379 = vst [vmem:[%s267 + $0x1b8] sm:$0xff] %v378
                %v380 = vld [vmem:[%s266 + $0x380] sm:$0xff]
                %381 = vst [vmem:[%s267 + $0x1c0] sm:$0xff] %v380
                %v382 = vld [vmem:[%s266 + $0x388] sm:$0xff]
                %383 = vst [vmem:[%s267 + $0x1c8] sm:$0xff] %v382
                %v384 = vld [vmem:[%s266 + $0x390] sm:$0xff]
                %385 = vst [vmem:[%s267 + $0x1d0] sm:$0xff] %v384
                %v386 = vld [vmem:[%s266 + $0x398] sm:$0xff]
                %387 = vst [vmem:[%s267 + $0x1d8] sm:$0xff] %v386
                %v388 = vld [vmem:[%s266 + $0x3a0] sm:$0xff]
                %389 = vst [vmem:[%s267 + $0x1e0] sm:$0xff] %v388
                %v390 = vld [vmem:[%s266 + $0x3a8] sm:$0xff]
                %391 = vst [vmem:[%s267 + $0x1e8] sm:$0xff] %v390
                %v392 = vld [vmem:[%s266 + $0x3b0] sm:$0xff]
                %393 = vst [vmem:[%s267 + $0x1f0] sm:$0xff] %v392
                %v394 = vld [vmem:[%s266 + $0x3b8] sm:$0xff]
                %395 = vst [vmem:[%s267 + $0x1f8] sm:$0xff] %v394
                %v396 = vld [vmem:[%s266 + $0x400] sm:$0xff]
                %397 = vst [vmem:[%s267 + $0x200] sm:$0xff] %v396
                %v398 = vld [vmem:[%s266 + $0x408] sm:$0xff]
                %399 = vst [vmem:[%s267 + $0x208] sm:$0xff] %v398
                %v400 = vld [vmem:[%s266 + $0x410] sm:$0xff]
                %401 = vst [vmem:[%s267 + $0x210] sm:$0xff] %v400
                %v402 = vld [vmem:[%s266 + $0x418] sm:$0xff]
                %403 = vst [vmem:[%s267 + $0x218] sm:$0xff] %v402
                %v404 = vld [vmem:[%s266 + $0x420] sm:$0xff]
                %405 = vst [vmem:[%s267 + $0x220] sm:$0xff] %v404
                %v406 = vld [vmem:[%s266 + $0x428] sm:$0xff]
                %407 = vst [vmem:[%s267 + $0x228] sm:$0xff] %v406
                %v408 = vld [vmem:[%s266 + $0x430] sm:$0xff]
                %409 = vst [vmem:[%s267 + $0x230] sm:$0xff] %v408
                %v410 = vld [vmem:[%s266 + $0x438] sm:$0xff]
                %411 = vst [vmem:[%s267 + $0x238] sm:$0xff] %v410
                %v412 = vld [vmem:[%s266 + $0x480] sm:$0xff]
                %413 = vst [vmem:[%s267 + $0x240] sm:$0xff] %v412
                %v414 = vld [vmem:[%s266 + $0x488] sm:$0xff]
                %415 = vst [vmem:[%s267 + $0x248] sm:$0xff] %v414
                %v416 = vld [vmem:[%s266 + $0x490] sm:$0xff]
                %417 = vst [vmem:[%s267 + $0x250] sm:$0xff] %v416
                %v418 = vld [vmem:[%s266 + $0x498] sm:$0xff]
                %419 = vst [vmem:[%s267 + $0x258] sm:$0xff] %v418
                %v420 = vld [vmem:[%s266 + $0x4a0] sm:$0xff]
                %421 = vst [vmem:[%s267 + $0x260] sm:$0xff] %v420
                %v422 = vld [vmem:[%s266 + $0x4a8] sm:$0xff]
                %423 = vst [vmem:[%s267 + $0x268] sm:$0xff] %v422
                %v424 = vld [vmem:[%s266 + $0x4b0] sm:$0xff]
                %425 = vst [vmem:[%s267 + $0x270] sm:$0xff] %v424
                %v426 = vld [vmem:[%s266 + $0x4b8] sm:$0xff]
                %427 = vst [vmem:[%s267 + $0x278] sm:$0xff] %v426
                %v428 = vld [vmem:[%s266 + $0x500] sm:$0xff]
                %429 = vst [vmem:[%s267 + $0x280] sm:$0xff] %v428
                %v430 = vld [vmem:[%s266 + $0x508] sm:$0xff]
                %431 = vst [vmem:[%s267 + $0x288] sm:$0xff] %v430
                %v432 = vld [vmem:[%s266 + $0x510] sm:$0xff]
                %433 = vst [vmem:[%s267 + $0x290] sm:$0xff] %v432
                %v434 = vld [vmem:[%s266 + $0x518] sm:$0xff]
                %435 = vst [vmem:[%s267 + $0x298] sm:$0xff] %v434
                %v436 = vld [vmem:[%s266 + $0x520] sm:$0xff]
                %437 = vst [vmem:[%s267 + $0x2a0] sm:$0xff] %v436
                %v438 = vld [vmem:[%s266 + $0x528] sm:$0xff]
                %439 = vst [vmem:[%s267 + $0x2a8] sm:$0xff] %v438
                %v440 = vld [vmem:[%s266 + $0x530] sm:$0xff]
                %441 = vst [vmem:[%s267 + $0x2b0] sm:$0xff] %v440
                %v442 = vld [vmem:[%s266 + $0x538] sm:$0xff]
                %443 = vst [vmem:[%s267 + $0x2b8] sm:$0xff] %v442
                %v444 = vld [vmem:[%s266 + $0x580] sm:$0xff]
                %445 = vst [vmem:[%s267 + $0x2c0] sm:$0xff] %v444
                %v446 = vld [vmem:[%s266 + $0x588] sm:$0xff]
                %447 = vst [vmem:[%s267 + $0x2c8] sm:$0xff] %v446
                %v448 = vld [vmem:[%s266 + $0x590] sm:$0xff]
                %449 = vst [vmem:[%s267 + $0x2d0] sm:$0xff] %v448
                %v450 = vld [vmem:[%s266 + $0x598] sm:$0xff]
                %451 = vst [vmem:[%s267 + $0x2d8] sm:$0xff] %v450
                %v452 = vld [vmem:[%s266 + $0x5a0] sm:$0xff]
                %453 = vst [vmem:[%s267 + $0x2e0] sm:$0xff] %v452
                %v454 = vld [vmem:[%s266 + $0x5a8] sm:$0xff]
                %455 = vst [vmem:[%s267 + $0x2e8] sm:$0xff] %v454
                %v456 = vld [vmem:[%s266 + $0x5b0] sm:$0xff]
                %457 = vst [vmem:[%s267 + $0x2f0] sm:$0xff] %v456
                %v458 = vld [vmem:[%s266 + $0x5b8] sm:$0xff]
                %459 = vst [vmem:[%s267 + $0x2f8] sm:$0xff] %v458
                %v460 = vld [vmem:[%s266 + $0x600] sm:$0xff]
                %461 = vst [vmem:[%s267 + $0x300] sm:$0xff] %v460
                %v462 = vld [vmem:[%s266 + $0x608] sm:$0xff]
                %463 = vst [vmem:[%s267 + $0x308] sm:$0xff] %v462
                %v464 = vld [vmem:[%s266 + $0x610] sm:$0xff]
                %465 = vst [vmem:[%s267 + $0x310] sm:$0xff] %v464
                %v466 = vld [vmem:[%s266 + $0x618] sm:$0xff]
                %467 = vst [vmem:[%s267 + $0x318] sm:$0xff] %v466
                %v468 = vld [vmem:[%s266 + $0x620] sm:$0xff]
                %469 = vst [vmem:[%s267 + $0x320] sm:$0xff] %v468
                %v470 = vld [vmem:[%s266 + $0x628] sm:$0xff]
                %471 = vst [vmem:[%s267 + $0x328] sm:$0xff] %v470
                %v472 = vld [vmem:[%s266 + $0x630] sm:$0xff]
                %473 = vst [vmem:[%s267 + $0x330] sm:$0xff] %v472
                %v474 = vld [vmem:[%s266 + $0x638] sm:$0xff]
                %475 = vst [vmem:[%s267 + $0x338] sm:$0xff] %v474
                %v476 = vld [vmem:[%s266 + $0x680] sm:$0xff]
                %477 = vst [vmem:[%s267 + $0x340] sm:$0xff] %v476
                %v478 = vld [vmem:[%s266 + $0x688] sm:$0xff]
                %479 = vst [vmem:[%s267 + $0x348] sm:$0xff] %v478
                %v480 = vld [vmem:[%s266 + $0x690] sm:$0xff]
                %481 = vst [vmem:[%s267 + $0x350] sm:$0xff] %v480
                %v482 = vld [vmem:[%s266 + $0x698] sm:$0xff]
                %483 = vst [vmem:[%s267 + $0x358] sm:$0xff] %v482
                %v484 = vld [vmem:[%s266 + $0x6a0] sm:$0xff]
                %485 = vst [vmem:[%s267 + $0x360] sm:$0xff] %v484
                %v486 = vld [vmem:[%s266 + $0x6a8] sm:$0xff]
                %487 = vst [vmem:[%s267 + $0x368] sm:$0xff] %v486
                %v488 = vld [vmem:[%s266 + $0x6b0] sm:$0xff]
                %489 = vst [vmem:[%s267 + $0x370] sm:$0xff] %v488
                %v490 = vld [vmem:[%s266 + $0x6b8] sm:$0xff]
                %491 = vst [vmem:[%s267 + $0x378] sm:$0xff] %v490
                %v492 = vld [vmem:[%s266 + $0x700] sm:$0xff]
                %493 = vst [vmem:[%s267 + $0x380] sm:$0xff] %v492
                %v494 = vld [vmem:[%s266 + $0x708] sm:$0xff]
                %495 = vst [vmem:[%s267 + $0x388] sm:$0xff] %v494
                %v496 = vld [vmem:[%s266 + $0x710] sm:$0xff]
                %497 = vst [vmem:[%s267 + $0x390] sm:$0xff] %v496
                %v498 = vld [vmem:[%s266 + $0x718] sm:$0xff]
                %499 = vst [vmem:[%s267 + $0x398] sm:$0xff] %v498
                %v500 = vld [vmem:[%s266 + $0x720] sm:$0xff]
                %501 = vst [vmem:[%s267 + $0x3a0] sm:$0xff] %v500
                %v502 = vld [vmem:[%s266 + $0x728] sm:$0xff]
                %503 = vst [vmem:[%s267 + $0x3a8] sm:$0xff] %v502
                %v504 = vld [vmem:[%s266 + $0x730] sm:$0xff]
                %505 = vst [vmem:[%s267 + $0x3b0] sm:$0xff] %v504
                %v506 = vld [vmem:[%s266 + $0x738] sm:$0xff]
                %507 = vst [vmem:[%s267 + $0x3b8] sm:$0xff] %v506
                %v508 = vld [vmem:[%s266 + $0x780] sm:$0xff]
                %509 = vst [vmem:[%s267 + $0x3c0] sm:$0xff] %v508
                %v510 = vld [vmem:[%s266 + $0x788] sm:$0xff]
                %511 = vst [vmem:[%s267 + $0x3c8] sm:$0xff] %v510
                %v512 = vld [vmem:[%s266 + $0x790] sm:$0xff]
                %513 = vst [vmem:[%s267 + $0x3d0] sm:$0xff] %v512
                %v514 = vld [vmem:[%s266 + $0x798] sm:$0xff]
                %515 = vst [vmem:[%s267 + $0x3d8] sm:$0xff] %v514
                %v516 = vld [vmem:[%s266 + $0x7a0] sm:$0xff]
                %517 = vst [vmem:[%s267 + $0x3e0] sm:$0xff] %v516
                %v518 = vld [vmem:[%s266 + $0x7a8] sm:$0xff]
                %519 = vst [vmem:[%s267 + $0x3e8] sm:$0xff] %v518
                %v520 = vld [vmem:[%s266 + $0x7b0] sm:$0xff]
                %521 = vst [vmem:[%s267 + $0x3f0] sm:$0xff] %v520
                %v522 = vld [vmem:[%s266 + $0x7b8] sm:$0xff]
                %523 = vst [vmem:[%s267 + $0x3f8] sm:$0xff] %v522
                %v524 = vld [vmem:[%s266 + $0x800] sm:$0xff]
                %525 = vst [vmem:[%s267 + $0x400] sm:$0xff] %v524
                %v526 = vld [vmem:[%s266 + $0x808] sm:$0xff]
                %527 = vst [vmem:[%s267 + $0x408] sm:$0xff] %v526
                %v528 = vld [vmem:[%s266 + $0x810] sm:$0xff]
                %529 = vst [vmem:[%s267 + $0x410] sm:$0xff] %v528
                %v530 = vld [vmem:[%s266 + $0x818] sm:$0xff]
                %531 = vst [vmem:[%s267 + $0x418] sm:$0xff] %v530
                %v532 = vld [vmem:[%s266 + $0x820] sm:$0xff]
                %533 = vst [vmem:[%s267 + $0x420] sm:$0xff] %v532
                %v534 = vld [vmem:[%s266 + $0x828] sm:$0xff]
                %535 = vst [vmem:[%s267 + $0x428] sm:$0xff] %v534
                %v536 = vld [vmem:[%s266 + $0x830] sm:$0xff]
                %537 = vst [vmem:[%s267 + $0x430] sm:$0xff] %v536
                %v538 = vld [vmem:[%s266 + $0x838] sm:$0xff]
                %539 = vst [vmem:[%s267 + $0x438] sm:$0xff] %v538
                %v540 = vld [vmem:[%s266 + $0x880] sm:$0xff]
                %541 = vst [vmem:[%s267 + $0x440] sm:$0xff] %v540
                %v542 = vld [vmem:[%s266 + $0x888] sm:$0xff]
                %543 = vst [vmem:[%s267 + $0x448] sm:$0xff] %v542
                %v544 = vld [vmem:[%s266 + $0x890] sm:$0xff]
                %545 = vst [vmem:[%s267 + $0x450] sm:$0xff] %v544
                %v546 = vld [vmem:[%s266 + $0x898] sm:$0xff]
                %547 = vst [vmem:[%s267 + $0x458] sm:$0xff] %v546
                %v548 = vld [vmem:[%s266 + $0x8a0] sm:$0xff]
                %549 = vst [vmem:[%s267 + $0x460] sm:$0xff] %v548
                %v550 = vld [vmem:[%s266 + $0x8a8] sm:$0xff]
                %551 = vst [vmem:[%s267 + $0x468] sm:$0xff] %v550
                %v552 = vld [vmem:[%s266 + $0x8b0] sm:$0xff]
                %553 = vst [vmem:[%s267 + $0x470] sm:$0xff] %v552
                %v554 = vld [vmem:[%s266 + $0x8b8] sm:$0xff]
                %555 = vst [vmem:[%s267 + $0x478] sm:$0xff] %v554
                %v556 = vld [vmem:[%s266 + $0x900] sm:$0xff]
                %557 = vst [vmem:[%s267 + $0x480] sm:$0xff] %v556
                %v558 = vld [vmem:[%s266 + $0x908] sm:$0xff]
                %559 = vst [vmem:[%s267 + $0x488] sm:$0xff] %v558
                %v560 = vld [vmem:[%s266 + $0x910] sm:$0xff]
                %561 = vst [vmem:[%s267 + $0x490] sm:$0xff] %v560
                %v562 = vld [vmem:[%s266 + $0x918] sm:$0xff]
                %563 = vst [vmem:[%s267 + $0x498] sm:$0xff] %v562
                %v564 = vld [vmem:[%s266 + $0x920] sm:$0xff]
                %565 = vst [vmem:[%s267 + $0x4a0] sm:$0xff] %v564
                %v566 = vld [vmem:[%s266 + $0x928] sm:$0xff]
                %567 = vst [vmem:[%s267 + $0x4a8] sm:$0xff] %v566
                %v568 = vld [vmem:[%s266 + $0x930] sm:$0xff]
                %569 = vst [vmem:[%s267 + $0x4b0] sm:$0xff] %v568
                %v570 = vld [vmem:[%s266 + $0x938] sm:$0xff]
                %571 = vst [vmem:[%s267 + $0x4b8] sm:$0xff] %v570
                %v572 = vld [vmem:[%s266 + $0x980] sm:$0xff]
                %573 = vst [vmem:[%s267 + $0x4c0] sm:$0xff] %v572
                %v574 = vld [vmem:[%s266 + $0x988] sm:$0xff]
                %575 = vst [vmem:[%s267 + $0x4c8] sm:$0xff] %v574
                %v576 = vld [vmem:[%s266 + $0x990] sm:$0xff]
                %577 = vst [vmem:[%s267 + $0x4d0] sm:$0xff] %v576
                %v578 = vld [vmem:[%s266 + $0x998] sm:$0xff]
                %579 = vst [vmem:[%s267 + $0x4d8] sm:$0xff] %v578
                %v580 = vld [vmem:[%s266 + $0x9a0] sm:$0xff]
                %581 = vst [vmem:[%s267 + $0x4e0] sm:$0xff] %v580
                %v582 = vld [vmem:[%s266 + $0x9a8] sm:$0xff]
                %583 = vst [vmem:[%s267 + $0x4e8] sm:$0xff] %v582
                %v584 = vld [vmem:[%s266 + $0x9b0] sm:$0xff]
                %585 = vst [vmem:[%s267 + $0x4f0] sm:$0xff] %v584
                %v586 = vld [vmem:[%s266 + $0x9b8] sm:$0xff]
                %587 = vst [vmem:[%s267 + $0x4f8] sm:$0xff] %v586
                %v588 = vld [vmem:[%s266 + $0xa00] sm:$0xff]
                %589 = vst [vmem:[%s267 + $0x500] sm:$0xff] %v588
                %v590 = vld [vmem:[%s266 + $0xa08] sm:$0xff]
                %591 = vst [vmem:[%s267 + $0x508] sm:$0xff] %v590
                %v592 = vld [vmem:[%s266 + $0xa10] sm:$0xff]
                %593 = vst [vmem:[%s267 + $0x510] sm:$0xff] %v592
                %v594 = vld [vmem:[%s266 + $0xa18] sm:$0xff]
                %595 = vst [vmem:[%s267 + $0x518] sm:$0xff] %v594
                %v596 = vld [vmem:[%s266 + $0xa20] sm:$0xff]
                %597 = vst [vmem:[%s267 + $0x520] sm:$0xff] %v596
                %v598 = vld [vmem:[%s266 + $0xa28] sm:$0xff]
                %599 = vst [vmem:[%s267 + $0x528] sm:$0xff] %v598
                %v600 = vld [vmem:[%s266 + $0xa30] sm:$0xff]
                %601 = vst [vmem:[%s267 + $0x530] sm:$0xff] %v600
                %v602 = vld [vmem:[%s266 + $0xa38] sm:$0xff]
                %603 = vst [vmem:[%s267 + $0x538] sm:$0xff] %v602
                %v604 = vld [vmem:[%s266 + $0xa80] sm:$0xff]
                %605 = vst [vmem:[%s267 + $0x540] sm:$0xff] %v604
                %v606 = vld [vmem:[%s266 + $0xa88] sm:$0xff]
                %607 = vst [vmem:[%s267 + $0x548] sm:$0xff] %v606
                %v608 = vld [vmem:[%s266 + $0xa90] sm:$0xff]
                %609 = vst [vmem:[%s267 + $0x550] sm:$0xff] %v608
                %v610 = vld [vmem:[%s266 + $0xa98] sm:$0xff]
                %611 = vst [vmem:[%s267 + $0x558] sm:$0xff] %v610
                %v612 = vld [vmem:[%s266 + $0xaa0] sm:$0xff]
                %613 = vst [vmem:[%s267 + $0x560] sm:$0xff] %v612
                %v614 = vld [vmem:[%s266 + $0xaa8] sm:$0xff]
                %615 = vst [vmem:[%s267 + $0x568] sm:$0xff] %v614
                %v616 = vld [vmem:[%s266 + $0xab0] sm:$0xff]
                %617 = vst [vmem:[%s267 + $0x570] sm:$0xff] %v616
                %v618 = vld [vmem:[%s266 + $0xab8] sm:$0xff]
                %619 = vst [vmem:[%s267 + $0x578] sm:$0xff] %v618
                %v620 = vld [vmem:[%s266 + $0xb00] sm:$0xff]
                %621 = vst [vmem:[%s267 + $0x580] sm:$0xff] %v620
                %v622 = vld [vmem:[%s266 + $0xb08] sm:$0xff]
                %623 = vst [vmem:[%s267 + $0x588] sm:$0xff] %v622
                %v624 = vld [vmem:[%s266 + $0xb10] sm:$0xff]
                %625 = vst [vmem:[%s267 + $0x590] sm:$0xff] %v624
                %v626 = vld [vmem:[%s266 + $0xb18] sm:$0xff]
                %627 = vst [vmem:[%s267 + $0x598] sm:$0xff] %v626
                %v628 = vld [vmem:[%s266 + $0xb20] sm:$0xff]
                %629 = vst [vmem:[%s267 + $0x5a0] sm:$0xff] %v628
                %v630 = vld [vmem:[%s266 + $0xb28] sm:$0xff]
                %631 = vst [vmem:[%s267 + $0x5a8] sm:$0xff] %v630
                %v632 = vld [vmem:[%s266 + $0xb30] sm:$0xff]
                %633 = vst [vmem:[%s267 + $0x5b0] sm:$0xff] %v632
                %v634 = vld [vmem:[%s266 + $0xb38] sm:$0xff]
                %635 = vst [vmem:[%s267 + $0x5b8] sm:$0xff] %v634
                %v636 = vld [vmem:[%s266 + $0xb80] sm:$0xff]
                %637 = vst [vmem:[%s267 + $0x5c0] sm:$0xff] %v636
                %v638 = vld [vmem:[%s266 + $0xb88] sm:$0xff]
                %639 = vst [vmem:[%s267 + $0x5c8] sm:$0xff] %v638
                %v640 = vld [vmem:[%s266 + $0xb90] sm:$0xff]
                %641 = vst [vmem:[%s267 + $0x5d0] sm:$0xff] %v640
                %v642 = vld [vmem:[%s266 + $0xb98] sm:$0xff]
                %643 = vst [vmem:[%s267 + $0x5d8] sm:$0xff] %v642
                %v644 = vld [vmem:[%s266 + $0xba0] sm:$0xff]
                %645 = vst [vmem:[%s267 + $0x5e0] sm:$0xff] %v644
                %v646 = vld [vmem:[%s266 + $0xba8] sm:$0xff]
                %647 = vst [vmem:[%s267 + $0x5e8] sm:$0xff] %v646
                %v648 = vld [vmem:[%s266 + $0xbb0] sm:$0xff]
                %649 = vst [vmem:[%s267 + $0x5f0] sm:$0xff] %v648
                %v650 = vld [vmem:[%s266 + $0xbb8] sm:$0xff]
                %651 = vst [vmem:[%s267 + $0x5f8] sm:$0xff] %v650
                %v652 = vld [vmem:[%s266 + $0xc00] sm:$0xff]
                %653 = vst [vmem:[%s267 + $0x600] sm:$0xff] %v652
                %v654 = vld [vmem:[%s266 + $0xc08] sm:$0xff]
                %655 = vst [vmem:[%s267 + $0x608] sm:$0xff] %v654
                %v656 = vld [vmem:[%s266 + $0xc10] sm:$0xff]
                %657 = vst [vmem:[%s267 + $0x610] sm:$0xff] %v656
                %v658 = vld [vmem:[%s266 + $0xc18] sm:$0xff]
                %659 = vst [vmem:[%s267 + $0x618] sm:$0xff] %v658
                %v660 = vld [vmem:[%s266 + $0xc20] sm:$0xff]
                %661 = vst [vmem:[%s267 + $0x620] sm:$0xff] %v660
                %v662 = vld [vmem:[%s266 + $0xc28] sm:$0xff]
                %663 = vst [vmem:[%s267 + $0x628] sm:$0xff] %v662
                %v664 = vld [vmem:[%s266 + $0xc30] sm:$0xff]
                %665 = vst [vmem:[%s267 + $0x630] sm:$0xff] %v664
                %v666 = vld [vmem:[%s266 + $0xc38] sm:$0xff]
                %667 = vst [vmem:[%s267 + $0x638] sm:$0xff] %v666
                %v668 = vld [vmem:[%s266 + $0xc80] sm:$0xff]
                %669 = vst [vmem:[%s267 + $0x640] sm:$0xff] %v668
                %v670 = vld [vmem:[%s266 + $0xc88] sm:$0xff]
                %671 = vst [vmem:[%s267 + $0x648] sm:$0xff] %v670
                %v672 = vld [vmem:[%s266 + $0xc90] sm:$0xff]
                %673 = vst [vmem:[%s267 + $0x650] sm:$0xff] %v672
                %v674 = vld [vmem:[%s266 + $0xc98] sm:$0xff]
                %675 = vst [vmem:[%s267 + $0x658] sm:$0xff] %v674
                %v676 = vld [vmem:[%s266 + $0xca0] sm:$0xff]
                %677 = vst [vmem:[%s267 + $0x660] sm:$0xff] %v676
                %v678 = vld [vmem:[%s266 + $0xca8] sm:$0xff]
                %679 = vst [vmem:[%s267 + $0x668] sm:$0xff] %v678
                %v680 = vld [vmem:[%s266 + $0xcb0] sm:$0xff]
                %681 = vst [vmem:[%s267 + $0x670] sm:$0xff] %v680
                %v682 = vld [vmem:[%s266 + $0xcb8] sm:$0xff]
                %683 = vst [vmem:[%s267 + $0x678] sm:$0xff] %v682
                %v684 = vld [vmem:[%s266 + $0xd00] sm:$0xff]
                %685 = vst [vmem:[%s267 + $0x680] sm:$0xff] %v684
                %v686 = vld [vmem:[%s266 + $0xd08] sm:$0xff]
                %687 = vst [vmem:[%s267 + $0x688] sm:$0xff] %v686
                %v688 = vld [vmem:[%s266 + $0xd10] sm:$0xff]
                %689 = vst [vmem:[%s267 + $0x690] sm:$0xff] %v688
                %v690 = vld [vmem:[%s266 + $0xd18] sm:$0xff]
                %691 = vst [vmem:[%s267 + $0x698] sm:$0xff] %v690
                %v692 = vld [vmem:[%s266 + $0xd20] sm:$0xff]
                %693 = vst [vmem:[%s267 + $0x6a0] sm:$0xff] %v692
                %v694 = vld [vmem:[%s266 + $0xd28] sm:$0xff]
                %695 = vst [vmem:[%s267 + $0x6a8] sm:$0xff] %v694
                %v696 = vld [vmem:[%s266 + $0xd30] sm:$0xff]
                %697 = vst [vmem:[%s267 + $0x6b0] sm:$0xff] %v696
                %v698 = vld [vmem:[%s266 + $0xd38] sm:$0xff]
                %699 = vst [vmem:[%s267 + $0x6b8] sm:$0xff] %v698
                %v700 = vld [vmem:[%s266 + $0xd80] sm:$0xff]
                %701 = vst [vmem:[%s267 + $0x6c0] sm:$0xff] %v700
                %v702 = vld [vmem:[%s266 + $0xd88] sm:$0xff]
                %703 = vst [vmem:[%s267 + $0x6c8] sm:$0xff] %v702
                %v704 = vld [vmem:[%s266 + $0xd90] sm:$0xff]
                %705 = vst [vmem:[%s267 + $0x6d0] sm:$0xff] %v704
                %v706 = vld [vmem:[%s266 + $0xd98] sm:$0xff]
                %707 = vst [vmem:[%s267 + $0x6d8] sm:$0xff] %v706
                %v708 = vld [vmem:[%s266 + $0xda0] sm:$0xff]
                %709 = vst [vmem:[%s267 + $0x6e0] sm:$0xff] %v708
                %v710 = vld [vmem:[%s266 + $0xda8] sm:$0xff]
                %711 = vst [vmem:[%s267 + $0x6e8] sm:$0xff] %v710
                %v712 = vld [vmem:[%s266 + $0xdb0] sm:$0xff]
                %713 = vst [vmem:[%s267 + $0x6f0] sm:$0xff] %v712
                %v714 = vld [vmem:[%s266 + $0xdb8] sm:$0xff]
                %715 = vst [vmem:[%s267 + $0x6f8] sm:$0xff] %v714
                %v716 = vld [vmem:[%s266 + $0xe00] sm:$0xff]
                %717 = vst [vmem:[%s267 + $0x700] sm:$0xff] %v716
                %v718 = vld [vmem:[%s266 + $0xe08] sm:$0xff]
                %719 = vst [vmem:[%s267 + $0x708] sm:$0xff] %v718
                %v720 = vld [vmem:[%s266 + $0xe10] sm:$0xff]
                %721 = vst [vmem:[%s267 + $0x710] sm:$0xff] %v720
                %v722 = vld [vmem:[%s266 + $0xe18] sm:$0xff]
                %723 = vst [vmem:[%s267 + $0x718] sm:$0xff] %v722
                %v724 = vld [vmem:[%s266 + $0xe20] sm:$0xff]
                %725 = vst [vmem:[%s267 + $0x720] sm:$0xff] %v724
                %v726 = vld [vmem:[%s266 + $0xe28] sm:$0xff]
                %727 = vst [vmem:[%s267 + $0x728] sm:$0xff] %v726
                %v728 = vld [vmem:[%s266 + $0xe30] sm:$0xff]
                %729 = vst [vmem:[%s267 + $0x730] sm:$0xff] %v728
                %v730 = vld [vmem:[%s266 + $0xe38] sm:$0xff]
                %731 = vst [vmem:[%s267 + $0x738] sm:$0xff] %v730
                %v732 = vld [vmem:[%s266 + $0xe80] sm:$0xff]
                %733 = vst [vmem:[%s267 + $0x740] sm:$0xff] %v732
                %v734 = vld [vmem:[%s266 + $0xe88] sm:$0xff]
                %735 = vst [vmem:[%s267 + $0x748] sm:$0xff] %v734
                %v736 = vld [vmem:[%s266 + $0xe90] sm:$0xff]
                %737 = vst [vmem:[%s267 + $0x750] sm:$0xff] %v736
                %v738 = vld [vmem:[%s266 + $0xe98] sm:$0xff]
                %739 = vst [vmem:[%s267 + $0x758] sm:$0xff] %v738
                %v740 = vld [vmem:[%s266 + $0xea0] sm:$0xff]
                %741 = vst [vmem:[%s267 + $0x760] sm:$0xff] %v740
                %v742 = vld [vmem:[%s266 + $0xea8] sm:$0xff]
                %743 = vst [vmem:[%s267 + $0x768] sm:$0xff] %v742
                %v744 = vld [vmem:[%s266 + $0xeb0] sm:$0xff]
                %745 = vst [vmem:[%s267 + $0x770] sm:$0xff] %v744
                %v746 = vld [vmem:[%s266 + $0xeb8] sm:$0xff]
                %747 = vst [vmem:[%s267 + $0x778] sm:$0xff] %v746
                %v748 = vld [vmem:[%s266 + $0xf00] sm:$0xff]
                %749 = vst [vmem:[%s267 + $0x780] sm:$0xff] %v748
                %v750 = vld [vmem:[%s266 + $0xf08] sm:$0xff]
                %751 = vst [vmem:[%s267 + $0x788] sm:$0xff] %v750
                %v752 = vld [vmem:[%s266 + $0xf10] sm:$0xff]
                %753 = vst [vmem:[%s267 + $0x790] sm:$0xff] %v752
                %v754 = vld [vmem:[%s266 + $0xf18] sm:$0xff]
                %755 = vst [vmem:[%s267 + $0x798] sm:$0xff] %v754
                %v756 = vld [vmem:[%s266 + $0xf20] sm:$0xff]
                %757 = vst [vmem:[%s267 + $0x7a0] sm:$0xff] %v756
                %v758 = vld [vmem:[%s266 + $0xf28] sm:$0xff]
                %759 = vst [vmem:[%s267 + $0x7a8] sm:$0xff] %v758
                %v760 = vld [vmem:[%s266 + $0xf30] sm:$0xff]
                %761 = vst [vmem:[%s267 + $0x7b0] sm:$0xff] %v760
                %v762 = vld [vmem:[%s266 + $0xf38] sm:$0xff]
                %763 = vst [vmem:[%s267 + $0x7b8] sm:$0xff] %v762
                %v764 = vld [vmem:[%s266 + $0xf80] sm:$0xff]
                %765 = vst [vmem:[%s267 + $0x7c0] sm:$0xff] %v764
                %v766 = vld [vmem:[%s266 + $0xf88] sm:$0xff]
                %767 = vst [vmem:[%s267 + $0x7c8] sm:$0xff] %v766
                %v768 = vld [vmem:[%s266 + $0xf90] sm:$0xff]
                %769 = vst [vmem:[%s267 + $0x7d0] sm:$0xff] %v768
                %v770 = vld [vmem:[%s266 + $0xf98] sm:$0xff]
                %771 = vst [vmem:[%s267 + $0x7d8] sm:$0xff] %v770
                %v772 = vld [vmem:[%s266 + $0xfa0] sm:$0xff]
                %773 = vst [vmem:[%s267 + $0x7e0] sm:$0xff] %v772
                %v774 = vld [vmem:[%s266 + $0xfa8] sm:$0xff]
                %775 = vst [vmem:[%s267 + $0x7e8] sm:$0xff] %v774
                %v776 = vld [vmem:[%s266 + $0xfb0] sm:$0xff]
                %777 = vst [vmem:[%s267 + $0x7f0] sm:$0xff] %v776
                %v778 = vld [vmem:[%s266 + $0xfb8] sm:$0xff]
                %779 = vst [vmem:[%s267 + $0x7f8] sm:$0xff] %v778
              $region45: #{network_forward.1} parent=39 // loop_footer
                %s265 = sadd.s32 1, %s261
              $region46: #{network_forward.1} parent=39 // loop_footer_branch
                %260 = sbr.rel target = $region42
              $region47: #{network_forward.1} parent=39 // loop_exit
                _
            $region40: #{network_forward.1} parent=31 // pred_fallthru
              _
          $region32: #{network_forward.1} parent=27 // pred_fallthru
            _
          %1304 = vnop
        $region28: #{network_forward.1} parent=23 // pred_fallthru
          _
        // Predicated region
        $region63: #{network_forward.1} parent=23 // pred_check
          %p1305 = pneg %p66
        $region64: #{network_forward.1} parent=23 // pred_check_branch
          %1307 = sbr.rel (%p1305) target = $region66
        $region65: #{network_forward.1} parent=23 // pred_region
          %s1308 = smul.u32 8, %s20
          %p1309 = scmp.lt.s32.totalorder %s1308, 15
          %s1310 = scalar_select %p1309, %s1308, 15
          %s1311 = smul.addr %s1310, 8
          %s1312 = scalar_lea.vmem %s1, %s1311
          %s1313 = smul.u32 8, %s20
        $region66: #{network_forward.1} parent=23 // pred_fallthru
          _
        // Predicated region
        $region67: #{network_forward.1} parent=23 // pred_check
          %p1314 = pneg %p92
        $region68: #{network_forward.1} parent=23 // pred_check_branch
          %1316 = sbr.rel (%p1314) target = $region70
        $region69: #{network_forward.1} parent=23 // pred_region
          %s1317 = smul.u32 8, %s20
          %p1318 = scmp.lt.s32.totalorder %s1317, 15
          %s1319 = scalar_select %p1318, %s1317, 15
          %s1320 = smul.addr %s1319, 8
          %s1321 = scalar_lea.vmem %s2, %s1320
          %s1322 = smul.u32 8, %s20
        $region70: #{network_forward.1} parent=23 // pred_fallthru
          _
      $region24: #{network_forward.1} parent=5 // pred_fallthru
        _
      %p1323 = scmp.le.s32.totalorder 1, %s20
      %p1324 = scmp.lt.s32.totalorder %s20, 3
      %p1325 = pnand %p1323, %p1324
      %p1326 = pneg %p1325
      // Predicated region
      $region71: #{network_forward.1} parent=5 // pred_check
        _
      $region72: #{network_forward.1} parent=5 // pred_check_branch
        %1328 = sbr.rel (%p1325) target = $region74
      $region73: #{network_forward.1} parent=5 // pred_region
        %s1329 = ssub.s32 %s20, 1
        %s1330 = sand.u32 %s33, 1
        %s1331 = sand.u32 %s33, 1
        %s1332 = smul.addr %s1331, 2048
        %s1333 = scalar_lea.vmem [#allocation4], %s1332
        // Predicated region
        $region75: #{network_forward.1} parent=73 // pred_check
          %p1334 = pneg %p46
        $region76: #{network_forward.1} parent=73 // pred_check_branch
          %1336 = sbr.rel (%p1334) target = $region78
        $region77: #{network_forward.1} parent=73 // pred_region
          _
        $region78: #{network_forward.1} parent=73 // pred_fallthru
          _
        %s1337 = sand.u32 %s33, 1
        %s1338 = sand.u32 %s33, 1
        %s1339 = smul.addr %s1338, 2048
        %s1340 = scalar_lea.vmem [#allocation4], %s1339
        %p1341 = pneg %p46
        %p1342 = pneg %p43
        %s1343 = smul.u32 8, %s25
        %p1344 = scmp.lt.s32.totalorder %s1343, 15
        %s1345 = scalar_select %p1344, %s1343, 15
        %s1346 = smul.addr %s1345, 8
        %s1347 = scalar_lea.vmem %s1, %s1346
        %p1348 = pneg %p72
        %p1349 = pneg %p69
        %s1350 = smul.u32 8, %s25
        %p1351 = scmp.lt.s32.totalorder %s1350, 15
        %s1352 = scalar_select %p1351, %s1350, 15
        %s1353 = smul.addr %s1352, 8
        %s1354 = scalar_lea.vmem %s2, %s1353
        %p1355 = pneg %p98
        %p1356 = pneg %p95
        %p1357 = pneg %p119
        %p1358 = pneg %p116
        %p1359 = pneg %p140
        %p1360 = pneg %p137
        %p1361 = pneg %p166
        %p1362 = pneg %p163
        %s1363 = sand.u32 %s153, 1
        %s1364 = sand.u32 %s153, 1
        %s1365 = smul.addr %s1364, 2048
        %s1366 = scalar_lea.vmem [#allocation5], %s1365
        %p1367 = pneg %p192
        %p1368 = pneg %p189
        %s1369 = sand.u32 %s179, 1
        %s1370 = scalar_lea.sflag [#allocation7], %s1369
        %s1371 = sand.u32 %s179, 1
        %s1372 = smul.addr %s1371, 64
        %s1373 = scalar_lea.vmem [#allocation6], %s1372
        %p1374 = pneg %p218
        %p1375 = pneg %p215
        %s1376 = sand.u32 %s205, 1
        %s1377 = scalar_lea.sflag [#allocation9], %s1376
        %s1378 = sand.u32 %s205, 1
        %s1379 = smul.addr %s1378, 64
        %s1380 = scalar_lea.vmem [#allocation8], %s1379
        %s1381 = smul.u32 8, %s25
        %s1382 = smul.u32 8, %s25
        %p1383 = scmp.lt.s32.totalorder %s1382, 15
        %s1384 = scalar_select %p1383, %s1382, 15
        %s1385 = smul.addr %s1384, 8
        %s1386 = scalar_lea.vmem %s1, %s1385
        %s1387 = smul.u32 8, %s25
        %s1388 = smul.u32 8, %s25
        %p1389 = scmp.lt.s32.totalorder %s1388, 15
        %s1390 = scalar_select %p1389, %s1388, 15
        %s1391 = smul.addr %s1390, 8
        %s1392 = scalar_lea.vmem %s2, %s1391
        %s1393 = smul.u32 8, %s25
        %s1394 = smul.u32 8, %s25
        %s1395 = smul.u32 8, %s25
        %s1396 = smul.u32 8, %s25
        %v1398 = vld [vmem:[%s1386] sm:$0xff]
        %v1399 = vld [vmem:[%s1386 + $0x8] sm:$0xff]
        %v1400 = vld [vmem:[%s1386 + $0x10] sm:$0xff]
        %v1401 = vld [vmem:[%s1386 + $0x18] sm:$0xff]
        %v1402 = vld [vmem:[%s1386 + $0x20] sm:$0xff]
        %v1403 = vld [vmem:[%s1386 + $0x28] sm:$0xff]
        %v1404 = vld [vmem:[%s1386 + $0x30] sm:$0xff]
        %v1405 = vld [vmem:[%s1386 + $0x38] sm:$0xff]
        %1406 = vst [vmem:[#allocation2] sm:$0xff] %v1398
        %1407 = vst [vmem:[#allocation2 + $0x8] sm:$0xff] %v1399
        %1408 = vst [vmem:[#allocation2 + $0x10] sm:$0xff] %v1400
        %1409 = vst [vmem:[#allocation2 + $0x18] sm:$0xff] %v1401
        %1410 = vst [vmem:[#allocation2 + $0x20] sm:$0xff] %v1402
        %1411 = vst [vmem:[#allocation2 + $0x28] sm:$0xff] %v1403
        %1412 = vst [vmem:[#allocation2 + $0x30] sm:$0xff] %v1404
        %1413 = vst [vmem:[#allocation2 + $0x38] sm:$0xff] %v1405
        %v1414 = vld [vmem:[%s1392] sm:$0xff]
        %v1415 = vld [vmem:[%s1392 + $0x8] sm:$0xff]
        %v1416 = vld [vmem:[%s1392 + $0x10] sm:$0xff]
        %v1417 = vld [vmem:[%s1392 + $0x18] sm:$0xff]
        %v1418 = vld [vmem:[%s1392 + $0x20] sm:$0xff]
        %v1419 = vld [vmem:[%s1392 + $0x28] sm:$0xff]
        %v1420 = vld [vmem:[%s1392 + $0x30] sm:$0xff]
        %v1421 = vld [vmem:[%s1392 + $0x38] sm:$0xff]
        %1422 = vst [vmem:[#allocation3] sm:$0xff] %v1414
        %1423 = vst [vmem:[#allocation3 + $0x8] sm:$0xff] %v1415
        %1424 = vst [vmem:[#allocation3 + $0x10] sm:$0xff] %v1416
        %1425 = vst [vmem:[#allocation3 + $0x18] sm:$0xff] %v1417
        %1426 = vst [vmem:[#allocation3 + $0x20] sm:$0xff] %v1418
        %1427 = vst [vmem:[#allocation3 + $0x28] sm:$0xff] %v1419
        %1428 = vst [vmem:[#allocation3 + $0x30] sm:$0xff] %v1420
        %1429 = vst [vmem:[#allocation3 + $0x38] sm:$0xff] %v1421
        loop: start=0, step=1, limit=32
        $region79: #{network_forward.1} parent=73 // loop_pre_header
          _
        $region80: #{network_forward.1} parent=73 // loop_header
          %s1431 = sphi 0, %s1435
          %p1432 = scmp.ge.s32.totalorder %s1431, 32
        $region81: #{network_forward.1} parent=73 // loop_header_branch
          %1434 = sbr.rel (%p1432) target = $region85
        $region82: #{network_forward.1} parent=73 // loop_body
          %s1436 = smul.u32 %s1431, 64
          %s1437 = scalar_lea.vmem %s1333, %s1436 [#allocation4]
          %v1438 = vld [vmem:[%s1437] sm:$0xff]
          %v1439 = vld [vmem:[%s1437 + $0x8] sm:$0xff]
          %v1440 = vld [vmem:[%s1437 + $0x10] sm:$0xff]
          %v1441 = vld [vmem:[%s1437 + $0x18] sm:$0xff]
          %v1442 = vld [vmem:[%s1437 + $0x20] sm:$0xff]
          %v1443 = vld [vmem:[%s1437 + $0x28] sm:$0xff]
          %v1444 = vld [vmem:[%s1437 + $0x30] sm:$0xff]
          %v1445 = vld [vmem:[%s1437 + $0x38] sm:$0xff]
          %v1446 = vpack.c.bf16 %v1439, %v1438
          %v1447 = vpack.c.bf16 %v1441, %v1440
          %v1448 = vpack.c.bf16 %v1443, %v1442
          %v1449 = vpack.c.bf16 %v1445, %v1444
          %v1450 = vld [vmem:[%s3] sm:$0xff]
          %v1451 = vld [vmem:[%s3 + $0x10] sm:$0xff]
          %v1452 = vld [vmem:[%s3 + $0x20] sm:$0xff]
          %v1453 = vld [vmem:[%s3 + $0x30] sm:$0xff]
          %v1454 = vld [vmem:[%s4] sm:$0xff]
          %v1455 = vld [vmem:[%s4 + $0x8] sm:$0xff]
          %v1456 = vld [vmem:[%s4 + $0x58] sm:$0xff]
          %v1457 = vld [vmem:[%s4 + $0x60] sm:$0xff]
          %v1458 = vld [vmem:[%s4 + $0xb0] sm:$0xff]
          %v1459 = vld [vmem:[%s4 + $0xb8] sm:$0xff]
          %v1460 = vld [vmem:[%s4 + $0x108] sm:$0xff]
          %v1461 = vld [vmem:[%s4 + $0x110] sm:$0xff]
          %v1462 = vld [vmem:[%s4 + $0x160] sm:$0xff]
          %v1463 = vld [vmem:[%s4 + $0x168] sm:$0xff]
          %v1464 = vld [vmem:[%s4 + $0x1b8] sm:$0xff]
          %v1465 = vld [vmem:[%s4 + $0x1c0] sm:$0xff]
          %v1466 = vld [vmem:[%s4 + $0x210] sm:$0xff]
          %v1467 = vld [vmem:[%s4 + $0x218] sm:$0xff]
          %v1468 = vld [vmem:[%s4 + $0x268] sm:$0xff]
          %v1469 = vld [vmem:[%s4 + $0x270] sm:$0xff]
          %v1474 = vunpack.c.l.b16 %v1450
          %v1475 = vunpack.c.h.b16 %v1450
          %v1476 = vunpack.c.l.b16 %v1451
          %v1477 = vunpack.c.h.b16 %v1451
          %v1478 = vunpack.c.l.b16 %v1452
          %v1479 = vunpack.c.h.b16 %v1452
          %v1480 = vunpack.c.l.b16 %v1453
          %v1481 = vunpack.c.h.b16 %v1453
          %v1482 = vpack.c.b16 %v1476, %v1474
          %v1483 = vpack.c.b16 %v1477, %v1475
          %v1484 = vpack.c.b16 %v1480, %v1478
          %v1485 = vpack.c.b16 %v1481, %v1479
          %vm1490 = vcmask 261120
          %v1492 = vsel %vm1490, %v1446, 0
          %v1495 = vsel %vm1490, %v1447, 0
          %v1498 = vsel %vm1490, %v1448, 0
          %v1501 = vsel %vm1490, %v1449, 0
          %1503 = vmatprep.subr.bf16.mxu0 %v1483
          %1504 = vmatpush1.bf16.msra.mxu0 %v1482
          %1505 = vmatprep.subr.bf16.mxu0 %v1485
          %1506 = vmatpush1.bf16.msra.mxu0 %v1484
          %1507 = vmatprep.subr.bf16.mxu0 0
          %1508 = vmatpush1.bf16.msra.mxu0 0
          %1509 = vmatprep.subr.bf16.mxu0 0
          %1510 = vmatpush1.bf16.msra.mxu0 0
          %1511 = vmatprep.subr.bf16.mxu0 0
          %1512 = vmatpush1.bf16.msra.mxu0 0
          %1513 = vmatprep.subr.bf16.mxu0 0
          %1514 = vmatpush1.bf16.msra.mxu0 0
          %1515 = vmatprep.subr.bf16.mxu0 0
          %1516 = vmatpush1.bf16.msra.mxu0 0
          %1517 = vmatprep.subr.bf16.mxu0 0
          %1518 = vmatpush1.bf16.msra.mxu0 0
          %1519 = vmatprep.subr.bf16.mxu0 0
          %1520 = vmatpush1.bf16.msra.mxu0 0
          %1521 = vmatprep.subr.bf16.mxu0 0
          %1522 = vmatpush1.bf16.msra.mxu0 0
          %1523 = vmatprep.subr.bf16.mxu0 0
          %1524 = vmatpush1.bf16.msra.mxu0 0
          %1525 = vmatprep.subr.bf16.mxu0 0
          %1526 = vmatpush1.bf16.msra.mxu0 0
          %1527 = vmatprep.subr.bf16.mxu0 0
          %1528 = vmatpush1.bf16.msra.mxu0 0
          %1529 = vmatprep.subr.bf16.mxu0 0
          %1530 = vmatpush1.bf16.msra.mxu0 0
          %1531 = vmatprep.subr.bf16.mxu0 0
          %1532 = vmatpush1.bf16.msra.mxu0 0
          %1533 = vmatprep.subr.bf16.mxu0 0
          %1534 = vmatpush1.bf16.msra.mxu0 0
          %1535 = vmatprep.mubr.bf16.mxu0 0
          %1536 = vmatmul.mubr.bf16.gmra.mrb[0].mxu0 %v1492
          %v1537 = vpop.f32.mrb[0].mxu0
          %v1538 = vadd.f32 %v1454, %v1537
          %v1539 = vpop.f32.mrb[0].mxu0
          %v1540 = vadd.f32 %v1455, %v1539
          %v1541 = vpop.f32.mrb[0].mxu0
          %v1542 = vadd.f32 %v1456, %v1541
          %v1543 = vpop.f32.mrb[0].mxu0
          %v1544 = vadd.f32 %v1457, %v1543
          %1545 = vmatprep.mubr.bf16.mxu0 0
          %1546 = vmatmul.mubr.bf16.gmra.mrb[0].mxu0 %v1495
          %v1547 = vpop.f32.mrb[0].mxu0
          %v1548 = vadd.f32 %v1458, %v1547
          %v1549 = vpop.f32.mrb[0].mxu0
          %v1550 = vadd.f32 %v1459, %v1549
          %v1551 = vpop.f32.mrb[0].mxu0
          %v1552 = vadd.f32 %v1460, %v1551
          %v1553 = vpop.f32.mrb[0].mxu0
          %v1554 = vadd.f32 %v1461, %v1553
          %1555 = vmatprep.mubr.bf16.mxu0 0
          %1556 = vmatmul.mubr.bf16.gmra.mrb[0].mxu0 %v1498
          %v1557 = vpop.f32.mrb[0].mxu0
          %v1558 = vadd.f32 %v1462, %v1557
          %v1559 = vpop.f32.mrb[0].mxu0
          %v1560 = vadd.f32 %v1463, %v1559
          %v1561 = vpop.f32.mrb[0].mxu0
          %v1562 = vadd.f32 %v1464, %v1561
          %v1563 = vpop.f32.mrb[0].mxu0
          %v1564 = vadd.f32 %v1465, %v1563
          %1565 = vmatprep.mubr.bf16.mxu0 0
          %1566 = vmatmul.mubr.bf16.gmra.mrb[0].mxu0 %v1501
          %v1567 = vpop.f32.mrb[0].mxu0
          %v1568 = vadd.f32 %v1466, %v1567
          %v1569 = vpop.f32.mrb[0].mxu0
          %v1570 = vadd.f32 %v1467, %v1569
          %v1571 = vpop.f32.mrb[0].mxu0
          %v1572 = vadd.f32 %v1468, %v1571
          %v1573 = vpop.f32.mrb[0].mxu0
          %v1574 = vadd.f32 %v1469, %v1573
          %1575 = vdwg.mxu0
          %v1576 = vmul.f32 %v1538, 0.1
          %v1577 = vmul.f32 %v1540, 0.1
          %v1578 = vmul.f32 %v1542, 0.1
          %v1579 = vmul.f32 %v1544, 0.1
          %v1580 = vmul.f32 %v1548, 0.1
          %v1581 = vmul.f32 %v1550, 0.1
          %v1582 = vmul.f32 %v1552, 0.1
          %v1583 = vmul.f32 %v1554, 0.1
          %v1584 = vmul.f32 %v1558, 0.1
          %v1585 = vmul.f32 %v1560, 0.1
          %v1586 = vmul.f32 %v1562, 0.1
          %v1587 = vmul.f32 %v1564, 0.1
          %v1588 = vmul.f32 %v1568, 0.1
          %v1589 = vmul.f32 %v1570, 0.1
          %v1590 = vmul.f32 %v1572, 0.1
          %v1591 = vmul.f32 %v1574, 0.1
          %v1592 = vmax.f32 %v1538, %v1576
          %v1593 = vmax.f32 %v1540, %v1577
          %v1594 = vmax.f32 %v1542, %v1578
          %v1595 = vmax.f32 %v1544, %v1579
          %v1596 = vmax.f32 %v1548, %v1580
          %v1597 = vmax.f32 %v1550, %v1581
          %v1598 = vmax.f32 %v1552, %v1582
          %v1599 = vmax.f32 %v1554, %v1583
          %v1600 = vmax.f32 %v1558, %v1584
          %v1601 = vmax.f32 %v1560, %v1585
          %v1602 = vmax.f32 %v1562, %v1586
          %v1603 = vmax.f32 %v1564, %v1587
          %v1604 = vmax.f32 %v1568, %v1588
          %v1605 = vmax.f32 %v1570, %v1589
          %v1606 = vmax.f32 %v1572, %v1590
          %v1607 = vmax.f32 %v1574, %v1591
          %v1608 = vpack.c.bf16 %v1594, %v1592
          %v1609 = vpack.c.bf16 %v1595, %v1593
          %v1610 = vpack.c.bf16 %v1598, %v1596
          %v1611 = vpack.c.bf16 %v1599, %v1597
          %v1612 = vpack.c.bf16 %v1602, %v1600
          %v1613 = vpack.c.bf16 %v1603, %v1601
          %v1614 = vpack.c.bf16 %v1606, %v1604
          %v1615 = vpack.c.bf16 %v1607, %v1605
          %v1616 = vld [vmem:[%s3 + $0x40] sm:$0xff]
          %v1617 = vld [vmem:[%s3 + $0x50] sm:$0xff]
          %v1618 = vld [vmem:[%s3 + $0x60] sm:$0xff]
          %v1619 = vld [vmem:[%s3 + $0x70] sm:$0xff]
          %v1620 = vld [vmem:[%s3 + $0x80] sm:$0xff]
          %v1621 = vld [vmem:[%s3 + $0x90] sm:$0xff]
          %v1622 = vld [vmem:[%s3 + $0xa0] sm:$0xff]
          %v1623 = vld [vmem:[%s3 + $0xb0] sm:$0xff]
          %v1624 = vld [vmem:[%s3 + $0xc0] sm:$0xff]
          %v1625 = vld [vmem:[%s3 + $0xd0] sm:$0xff]
          %v1626 = vld [vmem:[%s3 + $0xe0] sm:$0xff]
          %v1627 = vld [vmem:[%s3 + $0xf0] sm:$0xff]
          %v1628 = vld [vmem:[%s3 + $0x100] sm:$0xff]
          %v1629 = vld [vmem:[%s3 + $0x110] sm:$0xff]
          %v1630 = vld [vmem:[%s3 + $0x120] sm:$0xff]
          %v1631 = vld [vmem:[%s3 + $0x130] sm:$0xff]
          %v1632 = vld [vmem:[%s3 + $0x140] sm:$0xff]
          %v1633 = vld [vmem:[%s3 + $0x150] sm:$0xff]
          %v1634 = vld [vmem:[%s3 + $0x160] sm:$0xff]
          %v1635 = vld [vmem:[%s3 + $0x170] sm:$0xff]
          %v1636 = vld [vmem:[%s3 + $0x180] sm:$0xff]
          %v1637 = vld [vmem:[%s3 + $0x190] sm:$0xff]
          %v1638 = vld [vmem:[%s3 + $0x1a0] sm:$0xff]
          %v1639 = vld [vmem:[%s3 + $0x1b0] sm:$0xff]
          %v1640 = vld [vmem:[%s3 + $0x1c0] sm:$0xff]
          %v1641 = vld [vmem:[%s3 + $0x1d0] sm:$0xff]
          %v1642 = vld [vmem:[%s3 + $0x1e0] sm:$0xff]
          %v1643 = vld [vmem:[%s3 + $0x1f0] sm:$0xff]
          %v1644 = vld [vmem:[%s3 + $0x200] sm:$0xff]
          %v1645 = vld [vmem:[%s3 + $0x210] sm:$0xff]
          %v1646 = vld [vmem:[%s3 + $0x220] sm:$0xff]
          %v1647 = vld [vmem:[%s3 + $0x230] sm:$0xff]
          %v1648 = vld [vmem:[%s4 + $0x10] sm:$0xff]
          %v1649 = vld [vmem:[%s4 + $0x18] sm:$0xff]
          %v1650 = vld [vmem:[%s4 + $0x68] sm:$0xff]
          %v1651 = vld [vmem:[%s4 + $0x70] sm:$0xff]
          %v1652 = vld [vmem:[%s4 + $0xc0] sm:$0xff]
          %v1653 = vld [vmem:[%s4 + $0xc8] sm:$0xff]
          %v1654 = vld [vmem:[%s4 + $0x118] sm:$0xff]
          %v1655 = vld [vmem:[%s4 + $0x120] sm:$0xff]
          %v1656 = vld [vmem:[%s4 + $0x170] sm:$0xff]
          %v1657 = vld [vmem:[%s4 + $0x178] sm:$0xff]
          %v1658 = vld [vmem:[%s4 + $0x1c8] sm:$0xff]
          %v1659 = vld [vmem:[%s4 + $0x1d0] sm:$0xff]
          %v1660 = vld [vmem:[%s4 + $0x220] sm:$0xff]
          %v1661 = vld [vmem:[%s4 + $0x228] sm:$0xff]
          %v1662 = vld [vmem:[%s4 + $0x278] sm:$0xff]
          %v1663 = vld [vmem:[%s4 + $0x280] sm:$0xff]
          %v1696 = vunpack.c.l.b16 %v1616
          %v1697 = vunpack.c.h.b16 %v1616
          %v1698 = vunpack.c.l.b16 %v1617
          %v1699 = vunpack.c.h.b16 %v1617
          %v1700 = vunpack.c.l.b16 %v1618
          %v1701 = vunpack.c.h.b16 %v1618
          %v1702 = vunpack.c.l.b16 %v1619
          %v1703 = vunpack.c.h.b16 %v1619
          %v1704 = vunpack.c.l.b16 %v1620
          %v1705 = vunpack.c.h.b16 %v1620
          %v1706 = vunpack.c.l.b16 %v1621
          %v1707 = vunpack.c.h.b16 %v1621
          %v1708 = vunpack.c.l.b16 %v1622
          %v1709 = vunpack.c.h.b16 %v1622
          %v1710 = vunpack.c.l.b16 %v1623
          %v1711 = vunpack.c.h.b16 %v1623
          %v1712 = vunpack.c.l.b16 %v1624
          %v1713 = vunpack.c.h.b16 %v1624
          %v1714 = vunpack.c.l.b16 %v1625
          %v1715 = vunpack.c.h.b16 %v1625
          %v1716 = vunpack.c.l.b16 %v1626
          %v1717 = vunpack.c.h.b16 %v1626
          %v1718 = vunpack.c.l.b16 %v1627
          %v1719 = vunpack.c.h.b16 %v1627
          %v1720 = vunpack.c.l.b16 %v1628
          %v1721 = vunpack.c.h.b16 %v1628
          %v1722 = vunpack.c.l.b16 %v1629
          %v1723 = vunpack.c.h.b16 %v1629
          %v1724 = vunpack.c.l.b16 %v1630
          %v1725 = vunpack.c.h.b16 %v1630
          %v1726 = vunpack.c.l.b16 %v1631
          %v1727 = vunpack.c.h.b16 %v1631
          %v1728 = vunpack.c.l.b16 %v1632
          %v1729 = vunpack.c.h.b16 %v1632
          %v1730 = vunpack.c.l.b16 %v1633
          %v1731 = vunpack.c.h.b16 %v1633
          %v1732 = vunpack.c.l.b16 %v1634
          %v1733 = vunpack.c.h.b16 %v1634
          %v1734 = vunpack.c.l.b16 %v1635
          %v1735 = vunpack.c.h.b16 %v1635
          %v1736 = vunpack.c.l.b16 %v1636
          %v1737 = vunpack.c.h.b16 %v1636
          %v1738 = vunpack.c.l.b16 %v1637
          %v1739 = vunpack.c.h.b16 %v1637
          %v1740 = vunpack.c.l.b16 %v1638
          %v1741 = vunpack.c.h.b16 %v1638
          %v1742 = vunpack.c.l.b16 %v1639
          %v1743 = vunpack.c.h.b16 %v1639
          %v1744 = vunpack.c.l.b16 %v1640
          %v1745 = vunpack.c.h.b16 %v1640
          %v1746 = vunpack.c.l.b16 %v1641
          %v1747 = vunpack.c.h.b16 %v1641
          %v1748 = vunpack.c.l.b16 %v1642
          %v1749 = vunpack.c.h.b16 %v1642
          %v1750 = vunpack.c.l.b16 %v1643
          %v1751 = vunpack.c.h.b16 %v1643
          %v1752 = vunpack.c.l.b16 %v1644
          %v1753 = vunpack.c.h.b16 %v1644
          %v1754 = vunpack.c.l.b16 %v1645
          %v1755 = vunpack.c.h.b16 %v1645
          %v1756 = vunpack.c.l.b16 %v1646
          %v1757 = vunpack.c.h.b16 %v1646
          %v1758 = vunpack.c.l.b16 %v1647
          %v1759 = vunpack.c.h.b16 %v1647
          %v1760 = vpack.c.b16 %v1698, %v1696
          %v1761 = vpack.c.b16 %v1699, %v1697
          %v1762 = vpack.c.b16 %v1702, %v1700
          %v1763 = vpack.c.b16 %v1703, %v1701
          %v1764 = vpack.c.b16 %v1706, %v1704
          %v1765 = vpack.c.b16 %v1707, %v1705
          %v1766 = vpack.c.b16 %v1710, %v1708
          %v1767 = vpack.c.b16 %v1711, %v1709
          %v1768 = vpack.c.b16 %v1714, %v1712
          %v1769 = vpack.c.b16 %v1715, %v1713
          %v1770 = vpack.c.b16 %v1718, %v1716
          %v1771 = vpack.c.b16 %v1719, %v1717
          %v1772 = vpack.c.b16 %v1722, %v1720
          %v1773 = vpack.c.b16 %v1723, %v1721
          %v1774 = vpack.c.b16 %v1726, %v1724
          %v1775 = vpack.c.b16 %v1727, %v1725
          %v1776 = vpack.c.b16 %v1730, %v1728
          %v1777 = vpack.c.b16 %v1731, %v1729
          %v1778 = vpack.c.b16 %v1734, %v1732
          %v1779 = vpack.c.b16 %v1735, %v1733
          %v1780 = vpack.c.b16 %v1738, %v1736
          %v1781 = vpack.c.b16 %v1739, %v1737
          %v1782 = vpack.c.b16 %v1742, %v1740
          %v1783 = vpack.c.b16 %v1743, %v1741
          %v1784 = vpack.c.b16 %v1746, %v1744
          %v1785 = vpack.c.b16 %v1747, %v1745
          %v1786 = vpack.c.b16 %v1750, %v1748
          %v1787 = vpack.c.b16 %v1751, %v1749
          %v1788 = vpack.c.b16 %v1754, %v1752
          %v1789 = vpack.c.b16 %v1755, %v1753
          %v1790 = vpack.c.b16 %v1758, %v1756
          %v1791 = vpack.c.b16 %v1759, %v1757
          %1824 = vmatprep.subr.bf16.mxu0 %v1761
          %1825 = vmatpush1.bf16.msra.mxu0 %v1760
          %1826 = vmatprep.subr.bf16.mxu0 %v1763
          %1827 = vmatpush1.bf16.msra.mxu0 %v1762
          %1828 = vmatprep.subr.bf16.mxu0 %v1765
          %1829 = vmatpush1.bf16.msra.mxu0 %v1764
          %1830 = vmatprep.subr.bf16.mxu0 %v1767
          %1831 = vmatpush1.bf16.msra.mxu0 %v1766
          %1832 = vmatprep.subr.bf16.mxu0 %v1769
          %1833 = vmatpush1.bf16.msra.mxu0 %v1768
          %1834 = vmatprep.subr.bf16.mxu0 %v1771
          %1835 = vmatpush1.bf16.msra.mxu0 %v1770
          %1836 = vmatprep.subr.bf16.mxu0 %v1773
          %1837 = vmatpush1.bf16.msra.mxu0 %v1772
          %1838 = vmatprep.subr.bf16.mxu0 %v1775
          %1839 = vmatpush1.bf16.msra.mxu0 %v1774
          %1840 = vmatprep.subr.bf16.mxu0 %v1777
          %1841 = vmatpush1.bf16.msra.mxu0 %v1776
          %1842 = vmatprep.subr.bf16.mxu0 %v1779
          %1843 = vmatpush1.bf16.msra.mxu0 %v1778
          %1844 = vmatprep.subr.bf16.mxu0 %v1781
          %1845 = vmatpush1.bf16.msra.mxu0 %v1780
          %1846 = vmatprep.subr.bf16.mxu0 %v1783
          %1847 = vmatpush1.bf16.msra.mxu0 %v1782
          %1848 = vmatprep.subr.bf16.mxu0 %v1785
          %1849 = vmatpush1.bf16.msra.mxu0 %v1784
          %1850 = vmatprep.subr.bf16.mxu0 %v1787
          %1851 = vmatpush1.bf16.msra.mxu0 %v1786
          %1852 = vmatprep.subr.bf16.mxu0 %v1789
          %1853 = vmatpush1.bf16.msra.mxu0 %v1788
          %1854 = vmatprep.subr.bf16.mxu0 %v1791
          %1855 = vmatpush1.bf16.msra.mxu0 %v1790
          %1856 = vmatprep.mubr.bf16.mxu0 %v1609
          %1857 = vmatmul.mubr.bf16.gmra.mrb[0].mxu0 %v1608
          %v1858 = vpop.f32.mrb[0].mxu0
          %v1859 = vadd.f32 %v1648, %v1858
          %v1860 = vpop.f32.mrb[0].mxu0
          %v1861 = vadd.f32 %v1649, %v1860
          %v1862 = vpop.f32.mrb[0].mxu0
          %v1863 = vadd.f32 %v1650, %v1862
          %v1864 = vpop.f32.mrb[0].mxu0
          %v1865 = vadd.f32 %v1651, %v1864
          %1866 = vmatprep.mubr.bf16.mxu0 %v1611
          %1867 = vmatmul.mubr.bf16.gmra.mrb[0].mxu0 %v1610
          %v1868 = vpop.f32.mrb[0].mxu0
          %v1869 = vadd.f32 %v1652, %v1868
          %v1870 = vpop.f32.mrb[0].mxu0
          %v1871 = vadd.f32 %v1653, %v1870
          %v1872 = vpop.f32.mrb[0].mxu0
          %v1873 = vadd.f32 %v1654, %v1872
          %v1874 = vpop.f32.mrb[0].mxu0
          %v1875 = vadd.f32 %v1655, %v1874
          %1876 = vmatprep.mubr.bf16.mxu0 %v1613
          %1877 = vmatmul.mubr.bf16.gmra.mrb[0].mxu0 %v1612
          %v1878 = vpop.f32.mrb[0].mxu0
          %v1879 = vadd.f32 %v1656, %v1878
          %v1880 = vpop.f32.mrb[0].mxu0
          %v1881 = vadd.f32 %v1657, %v1880
          %v1882 = vpop.f32.mrb[0].mxu0
          %v1883 = vadd.f32 %v1658, %v1882
          %v1884 = vpop.f32.mrb[0].mxu0
          %v1885 = vadd.f32 %v1659, %v1884
          %1886 = vmatprep.mubr.bf16.mxu0 %v1615
          %1887 = vmatmul.mubr.bf16.gmra.mrb[0].mxu0 %v1614
          %v1888 = vpop.f32.mrb[0].mxu0
          %v1889 = vadd.f32 %v1660, %v1888
          %v1890 = vpop.f32.mrb[0].mxu0
          %v1891 = vadd.f32 %v1661, %v1890
          %v1892 = vpop.f32.mrb[0].mxu0
          %v1893 = vadd.f32 %v1662, %v1892
          %v1894 = vpop.f32.mrb[0].mxu0
          %v1895 = vadd.f32 %v1663, %v1894
          %1896 = vdwg.mxu0
          %v1897 = vmul.f32 %v1859, 0.1
          %v1898 = vmul.f32 %v1861, 0.1
          %v1899 = vmul.f32 %v1863, 0.1
          %v1900 = vmul.f32 %v1865, 0.1
          %v1901 = vmul.f32 %v1869, 0.1
          %v1902 = vmul.f32 %v1871, 0.1
          %v1903 = vmul.f32 %v1873, 0.1
          %v1904 = vmul.f32 %v1875, 0.1
          %v1905 = vmul.f32 %v1879, 0.1
          %v1906 = vmul.f32 %v1881, 0.1
          %v1907 = vmul.f32 %v1883, 0.1
          %v1908 = vmul.f32 %v1885, 0.1
          %v1909 = vmul.f32 %v1889, 0.1
          %v1910 = vmul.f32 %v1891, 0.1
          %v1911 = vmul.f32 %v1893, 0.1
          %v1912 = vmul.f32 %v1895, 0.1
          %v1913 = vmax.f32 %v1859, %v1897
          %v1914 = vmax.f32 %v1861, %v1898
          %v1915 = vmax.f32 %v1863, %v1899
          %v1916 = vmax.f32 %v1865, %v1900
          %v1917 = vmax.f32 %v1869, %v1901
          %v1918 = vmax.f32 %v1871, %v1902
          %v1919 = vmax.f32 %v1873, %v1903
          %v1920 = vmax.f32 %v1875, %v1904
          %v1921 = vmax.f32 %v1879, %v1905
          %v1922 = vmax.f32 %v1881, %v1906
          %v1923 = vmax.f32 %v1883, %v1907
          %v1924 = vmax.f32 %v1885, %v1908
          %v1925 = vmax.f32 %v1889, %v1909
          %v1926 = vmax.f32 %v1891, %v1910
          %v1927 = vmax.f32 %v1893, %v1911
          %v1928 = vmax.f32 %v1895, %v1912
          %v1929 = vpack.c.bf16 %v1915, %v1913
          %v1930 = vpack.c.bf16 %v1916, %v1914
          %v1931 = vpack.c.bf16 %v1919, %v1917
          %v1932 = vpack.c.bf16 %v1920, %v1918
          %v1933 = vpack.c.bf16 %v1923, %v1921
          %v1934 = vpack.c.bf16 %v1924, %v1922
          %v1935 = vpack.c.bf16 %v1927, %v1925
          %v1936 = vpack.c.bf16 %v1928, %v1926
          %v1937 = vld [vmem:[%s3 + $0x240] sm:$0xf]
          %v1938 = vld [vmem:[%s3 + $0x250] sm:$0xf]
          %v1939 = vld [vmem:[%s3 + $0x260] sm:$0xf]
          %v1940 = vld [vmem:[%s3 + $0x270] sm:$0xf]
          %v1941 = vld [vmem:[%s3 + $0x280] sm:$0xf]
          %v1942 = vld [vmem:[%s3 + $0x290] sm:$0xf]
          %v1943 = vld [vmem:[%s3 + $0x2a0] sm:$0xf]
          %v1944 = vld [vmem:[%s3 + $0x2b0] sm:$0xf]
          %v1945 = vld [vmem:[%s3 + $0x2c0] sm:$0xf]
          %v1946 = vld [vmem:[%s3 + $0x2d0] sm:$0xf]
          %v1947 = vld [vmem:[%s3 + $0x2e0] sm:$0xf]
          %v1948 = vld [vmem:[%s3 + $0x2f0] sm:$0xf]
          %v1949 = vld [vmem:[%s3 + $0x300] sm:$0xf]
          %v1950 = vld [vmem:[%s3 + $0x310] sm:$0xf]
          %v1951 = vld [vmem:[%s3 + $0x320] sm:$0xf]
          %v1952 = vld [vmem:[%s3 + $0x330] sm:$0xf]
          %v1953 = vld [vmem:[%s3 + $0x340] sm:$0xf]
          %v1954 = vld [vmem:[%s3 + $0x350] sm:$0xf]
          %v1955 = vld [vmem:[%s3 + $0x360] sm:$0xf]
          %v1956 = vld [vmem:[%s3 + $0x370] sm:$0xf]
          %v1957 = vld [vmem:[%s3 + $0x380] sm:$0xf]
          %v1958 = vld [vmem:[%s3 + $0x390] sm:$0xf]
          %v1959 = vld [vmem:[%s3 + $0x3a0] sm:$0xf]
          %v1960 = vld [vmem:[%s3 + $0x3b0] sm:$0xf]
          %v1961 = vld [vmem:[%s3 + $0x3c0] sm:$0xf]
          %v1962 = vld [vmem:[%s3 + $0x3d0] sm:$0xf]
          %v1963 = vld [vmem:[%s3 + $0x3e0] sm:$0xf]
          %v1964 = vld [vmem:[%s3 + $0x3f0] sm:$0xf]
          %v1965 = vld [vmem:[%s3 + $0x400] sm:$0xf]
          %v1966 = vld [vmem:[%s3 + $0x410] sm:$0xf]
          %v1967 = vld [vmem:[%s3 + $0x420] sm:$0xf]
          %v1968 = vld [vmem:[%s3 + $0x430] sm:$0xf]
          %v1969 = vld [vmem:[%s4 + $0x20] sm:$0xff]
          %v1970 = vld [vmem:[%s4 + $0x78] sm:$0xff]
          %v1971 = vld [vmem:[%s4 + $0xd0] sm:$0xff]
          %v1972 = vld [vmem:[%s4 + $0x128] sm:$0xff]
          %v1973 = vld [vmem:[%s4 + $0x180] sm:$0xff]
          %v1974 = vld [vmem:[%s4 + $0x1d8] sm:$0xff]
          %v1975 = vld [vmem:[%s4 + $0x230] sm:$0xff]
          %v1976 = vld [vmem:[%s4 + $0x288] sm:$0xff]
          %v2009 = vunpack.c.l.b16 %v1937
          %v2010 = vunpack.c.l.b16 %v1938
          %v2011 = vunpack.c.l.b16 %v1939
          %v2012 = vunpack.c.l.b16 %v1940
          %v2013 = vunpack.c.l.b16 %v1941
          %v2014 = vunpack.c.l.b16 %v1942
          %v2015 = vunpack.c.l.b16 %v1943
          %v2016 = vunpack.c.l.b16 %v1944
          %v2017 = vunpack.c.l.b16 %v1945
          %v2018 = vunpack.c.l.b16 %v1946
          %v2019 = vunpack.c.l.b16 %v1947
          %v2020 = vunpack.c.l.b16 %v1948
          %v2021 = vunpack.c.l.b16 %v1949
          %v2022 = vunpack.c.l.b16 %v1950
          %v2023 = vunpack.c.l.b16 %v1951
          %v2024 = vunpack.c.l.b16 %v1952
          %v2025 = vunpack.c.l.b16 %v1953
          %v2026 = vunpack.c.l.b16 %v1954
          %v2027 = vunpack.c.l.b16 %v1955
          %v2028 = vunpack.c.l.b16 %v1956
          %v2029 = vunpack.c.l.b16 %v1957
          %v2030 = vunpack.c.l.b16 %v1958
          %v2031 = vunpack.c.l.b16 %v1959
          %v2032 = vunpack.c.l.b16 %v1960
          %v2033 = vunpack.c.l.b16 %v1961
          %v2034 = vunpack.c.l.b16 %v1962
          %v2035 = vunpack.c.l.b16 %v1963
          %v2036 = vunpack.c.l.b16 %v1964
          %v2037 = vunpack.c.l.b16 %v1965
          %v2038 = vunpack.c.l.b16 %v1966
          %v2039 = vunpack.c.l.b16 %v1967
          %v2040 = vunpack.c.l.b16 %v1968
          %v2041 = vpack.c.b16 %v2010, %v2009
          %v2042 = vpack.c.b16 %v2012, %v2011
          %v2043 = vpack.c.b16 %v2014, %v2013
          %v2044 = vpack.c.b16 %v2016, %v2015
          %v2045 = vpack.c.b16 %v2018, %v2017
          %v2046 = vpack.c.b16 %v2020, %v2019
          %v2047 = vpack.c.b16 %v2022, %v2021
          %v2048 = vpack.c.b16 %v2024, %v2023
          %v2049 = vpack.c.b16 %v2026, %v2025
          %v2050 = vpack.c.b16 %v2028, %v2027
          %v2051 = vpack.c.b16 %v2030, %v2029
          %v2052 = vpack.c.b16 %v2032, %v2031
          %v2053 = vpack.c.b16 %v2034, %v2033
          %v2054 = vpack.c.b16 %v2036, %v2035
          %v2055 = vpack.c.b16 %v2038, %v2037
          %v2056 = vpack.c.b16 %v2040, %v2039
          %2073 = vmatprep.subr.bf16.mxu0 0
          %2074 = vmatpush1.bf16.msra.mxu0 %v2041
          %2075 = vmatprep.subr.bf16.mxu0 0
          %2076 = vmatpush1.bf16.msra.mxu0 %v2042
          %2077 = vmatprep.subr.bf16.mxu0 0
          %2078 = vmatpush1.bf16.msra.mxu0 %v2043
          %2079 = vmatprep.subr.bf16.mxu0 0
          %2080 = vmatpush1.bf16.msra.mxu0 %v2044
          %2081 = vmatprep.subr.bf16.mxu0 0
          %2082 = vmatpush1.bf16.msra.mxu0 %v2045
          %2083 = vmatprep.subr.bf16.mxu0 0
          %2084 = vmatpush1.bf16.msra.mxu0 %v2046
          %2085 = vmatprep.subr.bf16.mxu0 0
          %2086 = vmatpush1.bf16.msra.mxu0 %v2047
          %2087 = vmatprep.subr.bf16.mxu0 0
          %2088 = vmatpush1.bf16.msra.mxu0 %v2048
          %2089 = vmatprep.subr.bf16.mxu0 0
          %2090 = vmatpush1.bf16.msra.mxu0 %v2049
          %2091 = vmatprep.subr.bf16.mxu0 0
          %2092 = vmatpush1.bf16.msra.mxu0 %v2050
          %2093 = vmatprep.subr.bf16.mxu0 0
          %2094 = vmatpush1.bf16.msra.mxu0 %v2051
          %2095 = vmatprep.subr.bf16.mxu0 0
          %2096 = vmatpush1.bf16.msra.mxu0 %v2052
          %2097 = vmatprep.subr.bf16.mxu0 0
          %2098 = vmatpush1.bf16.msra.mxu0 %v2053
          %2099 = vmatprep.subr.bf16.mxu0 0
          %2100 = vmatpush1.bf16.msra.mxu0 %v2054
          %2101 = vmatprep.subr.bf16.mxu0 0
          %2102 = vmatpush1.bf16.msra.mxu0 %v2055
          %2103 = vmatprep.subr.bf16.mxu0 0
          %2104 = vmatpush1.bf16.msra.mxu0 %v2056
          %2105 = vmatprep.mubr.bf16.mxu0 %v1930
          %2106 = vmatmul.mubr.bf16.gmra.mrb[0].mxu0 %v1929
          %v2107 = vpop.f32.mrb[0].mxu0
          %v2108 = vadd.f32 %v1969, %v2107
          %v2109 = vpop.f32.mrb[0].mxu0
          %v2110 = vpop.f32.mrb[0].mxu0
          %v2111 = vadd.f32 %v1970, %v2110
          %v2112 = vpop.f32.mrb[0].mxu0
          %2113 = vmatprep.mubr.bf16.mxu0 %v1932
          %2114 = vmatmul.mubr.bf16.gmra.mrb[0].mxu0 %v1931
          %v2115 = vpop.f32.mrb[0].mxu0
          %v2116 = vadd.f32 %v1971, %v2115
          %v2117 = vpop.f32.mrb[0].mxu0
          %v2118 = vpop.f32.mrb[0].mxu0
          %v2119 = vadd.f32 %v1972, %v2118
          %v2120 = vpop.f32.mrb[0].mxu0
          %2121 = vmatprep.mubr.bf16.mxu0 %v1934
          %2122 = vmatmul.mubr.bf16.gmra.mrb[0].mxu0 %v1933
          %v2123 = vpop.f32.mrb[0].mxu0
          %v2124 = vadd.f32 %v1973, %v2123
          %v2125 = vpop.f32.mrb[0].mxu0
          %v2126 = vpop.f32.mrb[0].mxu0
          %v2127 = vadd.f32 %v1974, %v2126
          %v2128 = vpop.f32.mrb[0].mxu0
          %2129 = vmatprep.mubr.bf16.mxu0 %v1936
          %2130 = vmatmul.mubr.bf16.gmra.mrb[0].mxu0 %v1935
          %v2131 = vpop.f32.mrb[0].mxu0
          %v2132 = vadd.f32 %v1975, %v2131
          %v2133 = vpop.f32.mrb[0].mxu0
          %v2134 = vpop.f32.mrb[0].mxu0
          %v2135 = vadd.f32 %v1976, %v2134
          %v2136 = vpop.f32.mrb[0].mxu0
          %2137 = vdwg.mxu0
          %v2138 = vmul.f32 %v2108, 0.1
          %v2139 = vmul.f32 %v2111, 0.1
          %v2140 = vmul.f32 %v2116, 0.1
          %v2141 = vmul.f32 %v2119, 0.1
          %v2142 = vmul.f32 %v2124, 0.1
          %v2143 = vmul.f32 %v2127, 0.1
          %v2144 = vmul.f32 %v2132, 0.1
          %v2145 = vmul.f32 %v2135, 0.1
          %v2146 = vmax.f32 %v2108, %v2138
          %v2147 = vmax.f32 %v2111, %v2139
          %v2148 = vmax.f32 %v2116, %v2140
          %v2149 = vmax.f32 %v2119, %v2141
          %v2150 = vmax.f32 %v2124, %v2142
          %v2151 = vmax.f32 %v2127, %v2143
          %v2152 = vmax.f32 %v2132, %v2144
          %v2153 = vmax.f32 %v2135, %v2145
          %v2154 = vpack.c.bf16 %v2147, %v2146
          %v2155 = vpack.c.bf16 %v2149, %v2148
          %v2156 = vpack.c.bf16 %v2151, %v2150
          %v2157 = vpack.c.bf16 %v2153, %v2152
          %v2158 = vld [vmem:[%s3 + $0x440] sm:$0xf]
          %v2159 = vld [vmem:[%s3 + $0x450] sm:$0xf]
          %v2160 = vld [vmem:[%s3 + $0x460] sm:$0xf]
          %v2161 = vld [vmem:[%s3 + $0x470] sm:$0xf]
          %v2162 = vld [vmem:[%s3 + $0x480] sm:$0xf]
          %v2163 = vld [vmem:[%s3 + $0x490] sm:$0xf]
          %v2164 = vld [vmem:[%s3 + $0x4a0] sm:$0xf]
          %v2165 = vld [vmem:[%s3 + $0x4b0] sm:$0xf]
          %v2166 = vld [vmem:[%s3 + $0x4c0] sm:$0xf]
          %v2167 = vld [vmem:[%s3 + $0x4d0] sm:$0xf]
          %v2168 = vld [vmem:[%s3 + $0x4e0] sm:$0xf]
          %v2169 = vld [vmem:[%s3 + $0x4f0] sm:$0xf]
          %v2170 = vld [vmem:[%s3 + $0x500] sm:$0xf]
          %v2171 = vld [vmem:[%s3 + $0x510] sm:$0xf]
          %v2172 = vld [vmem:[%s3 + $0x520] sm:$0xf]
          %v2173 = vld [vmem:[%s3 + $0x530] sm:$0xf]
          %v2174 = vld [vmem:[%s4 + $0x28] sm:$0xff]
          %v2175 = vld [vmem:[%s4 + $0x80] sm:$0xff]
          %v2176 = vld [vmem:[%s4 + $0xd8] sm:$0xff]
          %v2177 = vld [vmem:[%s4 + $0x130] sm:$0xff]
          %v2178 = vld [vmem:[%s4 + $0x188] sm:$0xff]
          %v2179 = vld [vmem:[%s4 + $0x1e0] sm:$0xff]
          %v2180 = vld [vmem:[%s4 + $0x238] sm:$0xff]
          %v2181 = vld [vmem:[%s4 + $0x290] sm:$0xff]
          %v2198 = vunpack.c.l.b16 %v2158
          %v2199 = vunpack.c.l.b16 %v2159
          %v2200 = vunpack.c.l.b16 %v2160
          %v2201 = vunpack.c.l.b16 %v2161
          %v2202 = vunpack.c.l.b16 %v2162
          %v2203 = vunpack.c.l.b16 %v2163
          %v2204 = vunpack.c.l.b16 %v2164
          %v2205 = vunpack.c.l.b16 %v2165
          %v2206 = vunpack.c.l.b16 %v2166
          %v2207 = vunpack.c.l.b16 %v2167
          %v2208 = vunpack.c.l.b16 %v2168
          %v2209 = vunpack.c.l.b16 %v2169
          %v2210 = vunpack.c.l.b16 %v2170
          %v2211 = vunpack.c.l.b16 %v2171
          %v2212 = vunpack.c.l.b16 %v2172
          %v2213 = vunpack.c.l.b16 %v2173
          %v2214 = vpack.c.b16 %v2199, %v2198
          %v2215 = vpack.c.b16 %v2201, %v2200
          %v2216 = vpack.c.b16 %v2203, %v2202
          %v2217 = vpack.c.b16 %v2205, %v2204
          %v2218 = vpack.c.b16 %v2207, %v2206
          %v2219 = vpack.c.b16 %v2209, %v2208
          %v2220 = vpack.c.b16 %v2211, %v2210
          %v2221 = vpack.c.b16 %v2213, %v2212
          %2230 = vmatprep.subr.bf16.mxu0 0
          %2231 = vmatpush1.bf16.msra.mxu0 %v2214
          %2232 = vmatprep.subr.bf16.mxu0 0
          %2233 = vmatpush1.bf16.msra.mxu0 %v2215
          %2234 = vmatprep.subr.bf16.mxu0 0
          %2235 = vmatpush1.bf16.msra.mxu0 %v2216
          %2236 = vmatprep.subr.bf16.mxu0 0
          %2237 = vmatpush1.bf16.msra.mxu0 %v2217
          %2238 = vmatprep.subr.bf16.mxu0 0
          %2239 = vmatpush1.bf16.msra.mxu0 %v2218
          %2240 = vmatprep.subr.bf16.mxu0 0
          %2241 = vmatpush1.bf16.msra.mxu0 %v2219
          %2242 = vmatprep.subr.bf16.mxu0 0
          %2243 = vmatpush1.bf16.msra.mxu0 %v2220
          %2244 = vmatprep.subr.bf16.mxu0 0
          %2245 = vmatpush1.bf16.msra.mxu0 %v2221
          %2246 = vmatprep.subr.bf16.mxu0 0
          %2247 = vmatpush1.bf16.msra.mxu0 0
          %2248 = vmatprep.subr.bf16.mxu0 0
          %2249 = vmatpush1.bf16.msra.mxu0 0
          %2250 = vmatprep.subr.bf16.mxu0 0
          %2251 = vmatpush1.bf16.msra.mxu0 0
          %2252 = vmatprep.subr.bf16.mxu0 0
          %2253 = vmatpush1.bf16.msra.mxu0 0
          %2254 = vmatprep.subr.bf16.mxu0 0
          %2255 = vmatpush1.bf16.msra.mxu0 0
          %2256 = vmatprep.subr.bf16.mxu0 0
          %2257 = vmatpush1.bf16.msra.mxu0 0
          %2258 = vmatprep.subr.bf16.mxu0 0
          %2259 = vmatpush1.bf16.msra.mxu0 0
          %2260 = vmatprep.subr.bf16.mxu0 0
          %2261 = vmatpush1.bf16.msra.mxu0 0
          %2262 = vmatprep.mubr.bf16.mxu0 0
          %2263 = vmatmul.mubr.bf16.gmra.mrb[0].mxu0 %v2154
          %v2264 = vpop.f32.mrb[0].mxu0
          %v2265 = vadd.f32 %v2174, %v2264
          %v2266 = vpop.f32.mrb[0].mxu0
          %v2267 = vpop.f32.mrb[0].mxu0
          %v2268 = vadd.f32 %v2175, %v2267
          %v2269 = vpop.f32.mrb[0].mxu0
          %2270 = vmatprep.mubr.bf16.mxu0 0
          %2271 = vmatmul.mubr.bf16.gmra.mrb[0].mxu0 %v2155
          %v2272 = vpop.f32.mrb[0].mxu0
          %v2273 = vadd.f32 %v2176, %v2272
          %v2274 = vpop.f32.mrb[0].mxu0
          %v2275 = vpop.f32.mrb[0].mxu0
          %v2276 = vadd.f32 %v2177, %v2275
          %v2277 = vpop.f32.mrb[0].mxu0
          %2278 = vmatprep.mubr.bf16.mxu0 0
          %2279 = vmatmul.mubr.bf16.gmra.mrb[0].mxu0 %v2156
          %v2280 = vpop.f32.mrb[0].mxu0
          %v2281 = vadd.f32 %v2178, %v2280
          %v2282 = vpop.f32.mrb[0].mxu0
          %v2283 = vpop.f32.mrb[0].mxu0
          %v2284 = vadd.f32 %v2179, %v2283
          %v2285 = vpop.f32.mrb[0].mxu0
          %2286 = vmatprep.mubr.bf16.mxu0 0
          %2287 = vmatmul.mubr.bf16.gmra.mrb[0].mxu0 %v2157
          %v2288 = vpop.f32.mrb[0].mxu0
          %v2289 = vadd.f32 %v2180, %v2288
          %v2290 = vpop.f32.mrb[0].mxu0
          %v2291 = vpop.f32.mrb[0].mxu0
          %v2292 = vadd.f32 %v2181, %v2291
          %v2293 = vpop.f32.mrb[0].mxu0
          %2294 = vdwg.mxu0
          %v2295 = vmul.f32 %v2265, 0.1
          %v2296 = vmul.f32 %v2268, 0.1
          %v2297 = vmul.f32 %v2273, 0.1
          %v2298 = vmul.f32 %v2276, 0.1
          %v2299 = vmul.f32 %v2281, 0.1
          %v2300 = vmul.f32 %v2284, 0.1
          %v2301 = vmul.f32 %v2289, 0.1
          %v2302 = vmul.f32 %v2292, 0.1
          %v2303 = vmax.f32 %v2265, %v2295
          %v2304 = vmax.f32 %v2268, %v2296
          %v2305 = vmax.f32 %v2273, %v2297
          %v2306 = vmax.f32 %v2276, %v2298
          %v2307 = vmax.f32 %v2281, %v2299
          %v2308 = vmax.f32 %v2284, %v2300
          %v2309 = vmax.f32 %v2289, %v2301
          %v2310 = vmax.f32 %v2292, %v2302
          %v2311 = vpack.c.bf16 %v2304, %v2303
          %v2312 = vpack.c.bf16 %v2306, %v2305
          %v2313 = vpack.c.bf16 %v2308, %v2307
          %v2314 = vpack.c.bf16 %v2310, %v2309
          %v2315 = vld [vmem:[#allocation2] sm:$0xff]
          %v2316 = vld [vmem:[#allocation2 + $0x8] sm:$0xff]
          %v2317 = vld [vmem:[#allocation2 + $0x10] sm:$0xff]
          %v2318 = vld [vmem:[#allocation2 + $0x18] sm:$0xff]
          %v2319 = vld [vmem:[#allocation2 + $0x20] sm:$0xff]
          %v2320 = vld [vmem:[#allocation2 + $0x28] sm:$0xff]
          %v2321 = vld [vmem:[#allocation2 + $0x30] sm:$0xff]
          %v2322 = vld [vmem:[#allocation2 + $0x38] sm:$0xff]
          %v2323 = vld [vmem:[#allocation3] sm:$0xff]
          %v2324 = vld [vmem:[#allocation3 + $0x8] sm:$0xff]
          %v2325 = vld [vmem:[#allocation3 + $0x10] sm:$0xff]
          %v2326 = vld [vmem:[#allocation3 + $0x18] sm:$0xff]
          %v2327 = vld [vmem:[#allocation3 + $0x20] sm:$0xff]
          %v2328 = vld [vmem:[#allocation3 + $0x28] sm:$0xff]
          %v2329 = vld [vmem:[#allocation3 + $0x30] sm:$0xff]
          %v2330 = vld [vmem:[#allocation3 + $0x38] sm:$0xff]
          %v2331 = vpack.c.bf16 %v2316, %v2315
          %v2332 = vpack.c.bf16 %v2318, %v2317
          %v2333 = vpack.c.bf16 %v2320, %v2319
          %v2334 = vpack.c.bf16 %v2322, %v2321
          %v2335 = vld [vmem:[%s3 + $0x540] sm:$0xff]
          %v2336 = vld [vmem:[%s3 + $0x548] sm:$0xff]
          %v2337 = vld [vmem:[%s3 + $0x550] sm:$0xff]
          %v2338 = vld [vmem:[%s3 + $0x558] sm:$0xff]
          %v2339 = vld [vmem:[%s3 + $0x560] sm:$0xff]
          %v2340 = vld [vmem:[%s3 + $0x568] sm:$0xff]
          %v2341 = vld [vmem:[%s3 + $0x570] sm:$0xff]
          %v2342 = vld [vmem:[%s3 + $0x578] sm:$0xff]
          %v2343 = vld [vmem:[%s3 + $0x580] sm:$0xff]
          %v2344 = vld [vmem:[%s3 + $0x588] sm:$0xff]
          %v2345 = vld [vmem:[%s3 + $0x590] sm:$0xff]
          %v2346 = vld [vmem:[%s3 + $0x598] sm:$0xff]
          %v2347 = vld [vmem:[%s3 + $0x5a0] sm:$0xff]
          %v2348 = vld [vmem:[%s3 + $0x5a8] sm:$0xff]
          %v2349 = vld [vmem:[%s3 + $0x5b0] sm:$0xff]
          %v2350 = vld [vmem:[%s3 + $0x5b8] sm:$0xff]
          %v2351 = vld [vmem:[%s3 + $0x5c0] sm:$0xff]
          %v2352 = vld [vmem:[%s3 + $0x5c8] sm:$0xff]
          %v2353 = vld [vmem:[%s3 + $0x5d0] sm:$0xff]
          %v2354 = vld [vmem:[%s3 + $0x5d8] sm:$0xff]
          %v2355 = vld [vmem:[%s3 + $0x5e0] sm:$0xff]
          %v2356 = vld [vmem:[%s3 + $0x5e8] sm:$0xff]
          %v2357 = vld [vmem:[%s3 + $0x5f0] sm:$0xff]
          %v2358 = vld [vmem:[%s3 + $0x5f8] sm:$0xff]
          %v2359 = vld [vmem:[%s3 + $0x600] sm:$0xff]
          %v2360 = vld [vmem:[%s3 + $0x608] sm:$0xff]
          %v2361 = vld [vmem:[%s3 + $0x610] sm:$0xff]
          %v2362 = vld [vmem:[%s3 + $0x618] sm:$0xff]
          %v2363 = vld [vmem:[%s3 + $0x620] sm:$0xff]
          %v2364 = vld [vmem:[%s3 + $0x628] sm:$0xff]
          %v2365 = vld [vmem:[%s3 + $0x630] sm:$0xff]
          %v2366 = vld [vmem:[%s3 + $0x638] sm:$0xff]
          %v2367 = vld [vmem:[%s3 + $0x640] sm:$0xff]
          %v2368 = vld [vmem:[%s3 + $0x648] sm:$0xff]
          %v2369 = vld [vmem:[%s3 + $0x650] sm:$0xff]
          %v2370 = vld [vmem:[%s3 + $0x658] sm:$0xff]
          %v2371 = vld [vmem:[%s3 + $0x660] sm:$0xff]
          %v2372 = vld [vmem:[%s3 + $0x668] sm:$0xff]
          %v2373 = vld [vmem:[%s3 + $0x670] sm:$0xff]
          %v2374 = vld [vmem:[%s3 + $0x678] sm:$0xff]
          %v2375 = vld [vmem:[%s3 + $0x680] sm:$0xff]
          %v2376 = vld [vmem:[%s3 + $0x688] sm:$0xff]
          %v2377 = vld [vmem:[%s3 + $0x690] sm:$0xff]
          %v2378 = vld [vmem:[%s3 + $0x698] sm:$0xff]
          %v2379 = vld [vmem:[%s3 + $0x6a0] sm:$0xff]
          %v2380 = vld [vmem:[%s3 + $0x6a8] sm:$0xff]
          %v2381 = vld [vmem:[%s3 + $0x6b0] sm:$0xff]
          %v2382 = vld [vmem:[%s3 + $0x6b8] sm:$0xff]
          %v2383 = vld [vmem:[%s3 + $0x6c0] sm:$0xff]
          %v2384 = vld [vmem:[%s3 + $0x6c8] sm:$0xff]
          %v2385 = vld [vmem:[%s3 + $0x6d0] sm:$0xff]
          %v2386 = vld [vmem:[%s3 + $0x6d8] sm:$0xff]
          %v2387 = vld [vmem:[%s3 + $0x6e0] sm:$0xff]
          %v2388 = vld [vmem:[%s3 + $0x6e8] sm:$0xff]
          %v2389 = vld [vmem:[%s3 + $0x6f0] sm:$0xff]
          %v2390 = vld [vmem:[%s3 + $0x6f8] sm:$0xff]
          %v2391 = vld [vmem:[%s3 + $0x700] sm:$0xff]
          %v2392 = vld [vmem:[%s3 + $0x708] sm:$0xff]
          %v2393 = vld [vmem:[%s3 + $0x710] sm:$0xff]
          %v2394 = vld [vmem:[%s3 + $0x718] sm:$0xff]
          %v2395 = vld [vmem:[%s3 + $0x720] sm:$0xff]
          %v2396 = vld [vmem:[%s3 + $0x728] sm:$0xff]
          %v2397 = vld [vmem:[%s3 + $0x730] sm:$0xff]
          %v2398 = vld [vmem:[%s3 + $0x738] sm:$0xff]
          %v2399 = vld [vmem:[%s4 + $0x30] sm:$0xff]
          %v2400 = vld [vmem:[%s4 + $0x38] sm:$0xff]
          %v2401 = vld [vmem:[%s4 + $0x40] sm:$0xff]
          %v2402 = vld [vmem:[%s4 + $0x48] sm:$0xff]
          %v2403 = vld [vmem:[%s4 + $0x88] sm:$0xff]
          %v2404 = vld [vmem:[%s4 + $0x90] sm:$0xff]
          %v2405 = vld [vmem:[%s4 + $0x98] sm:$0xff]
          %v2406 = vld [vmem:[%s4 + $0xa0] sm:$0xff]
          %v2407 = vld [vmem:[%s4 + $0xe0] sm:$0xff]
          %v2408 = vld [vmem:[%s4 + $0xe8] sm:$0xff]
          %v2409 = vld [vmem:[%s4 + $0xf0] sm:$0xff]
          %v2410 = vld [vmem:[%s4 + $0xf8] sm:$0xff]
          %v2411 = vld [vmem:[%s4 + $0x138] sm:$0xff]
          %v2412 = vld [vmem:[%s4 + $0x140] sm:$0xff]
          %v2413 = vld [vmem:[%s4 + $0x148] sm:$0xff]
          %v2414 = vld [vmem:[%s4 + $0x150] sm:$0xff]
          %v2415 = vld [vmem:[%s4 + $0x190] sm:$0xff]
          %v2416 = vld [vmem:[%s4 + $0x198] sm:$0xff]
          %v2417 = vld [vmem:[%s4 + $0x1a0] sm:$0xff]
          %v2418 = vld [vmem:[%s4 + $0x1a8] sm:$0xff]
          %v2419 = vld [vmem:[%s4 + $0x1e8] sm:$0xff]
          %v2420 = vld [vmem:[%s4 + $0x1f0] sm:$0xff]
          %v2421 = vld [vmem:[%s4 + $0x1f8] sm:$0xff]
          %v2422 = vld [vmem:[%s4 + $0x200] sm:$0xff]
          %v2423 = vld [vmem:[%s4 + $0x240] sm:$0xff]
          %v2424 = vld [vmem:[%s4 + $0x248] sm:$0xff]
          %v2425 = vld [vmem:[%s4 + $0x250] sm:$0xff]
          %v2426 = vld [vmem:[%s4 + $0x258] sm:$0xff]
          %v2427 = vld [vmem:[%s4 + $0x298] sm:$0xff]
          %v2428 = vld [vmem:[%s4 + $0x2a0] sm:$0xff]
          %v2429 = vld [vmem:[%s4 + $0x2a8] sm:$0xff]
          %v2430 = vld [vmem:[%s4 + $0x2b0] sm:$0xff]
          %v2495 = vunpack.c.l.b16 %v2335
          %v2496 = vunpack.c.h.b16 %v2335
          %v2497 = vunpack.c.l.b16 %v2336
          %v2498 = vunpack.c.h.b16 %v2336
          %v2499 = vunpack.c.l.b16 %v2337
          %v2500 = vunpack.c.h.b16 %v2337
          %v2501 = vunpack.c.l.b16 %v2338
          %v2502 = vunpack.c.h.b16 %v2338
          %v2503 = vunpack.c.l.b16 %v2339
          %v2504 = vunpack.c.h.b16 %v2339
          %v2505 = vunpack.c.l.b16 %v2340
          %v2506 = vunpack.c.h.b16 %v2340
          %v2507 = vunpack.c.l.b16 %v2341
          %v2508 = vunpack.c.h.b16 %v2341
          %v2509 = vunpack.c.l.b16 %v2342
          %v2510 = vunpack.c.h.b16 %v2342
          %v2511 = vunpack.c.l.b16 %v2343
          %v2512 = vunpack.c.h.b16 %v2343
          %v2513 = vunpack.c.l.b16 %v2344
          %v2514 = vunpack.c.h.b16 %v2344
          %v2515 = vunpack.c.l.b16 %v2345
          %v2516 = vunpack.c.h.b16 %v2345
          %v2517 = vunpack.c.l.b16 %v2346
          %v2518 = vunpack.c.h.b16 %v2346
          %v2519 = vunpack.c.l.b16 %v2347
          %v2520 = vunpack.c.h.b16 %v2347
          %v2521 = vunpack.c.l.b16 %v2348
          %v2522 = vunpack.c.h.b16 %v2348
          %v2523 = vunpack.c.l.b16 %v2349
          %v2524 = vunpack.c.h.b16 %v2349
          %v2525 = vunpack.c.l.b16 %v2350
          %v2526 = vunpack.c.h.b16 %v2350
          %v2527 = vunpack.c.l.b16 %v2351
          %v2528 = vunpack.c.h.b16 %v2351
          %v2529 = vunpack.c.l.b16 %v2352
          %v2530 = vunpack.c.h.b16 %v2352
          %v2531 = vunpack.c.l.b16 %v2353
          %v2532 = vunpack.c.h.b16 %v2353
          %v2533 = vunpack.c.l.b16 %v2354
          %v2534 = vunpack.c.h.b16 %v2354
          %v2535 = vunpack.c.l.b16 %v2355
          %v2536 = vunpack.c.h.b16 %v2355
          %v2537 = vunpack.c.l.b16 %v2356
          %v2538 = vunpack.c.h.b16 %v2356
          %v2539 = vunpack.c.l.b16 %v2357
          %v2540 = vunpack.c.h.b16 %v2357
          %v2541 = vunpack.c.l.b16 %v2358
          %v2542 = vunpack.c.h.b16 %v2358
          %v2543 = vunpack.c.l.b16 %v2359
          %v2544 = vunpack.c.h.b16 %v2359
          %v2545 = vunpack.c.l.b16 %v2360
          %v2546 = vunpack.c.h.b16 %v2360
          %v2547 = vunpack.c.l.b16 %v2361
          %v2548 = vunpack.c.h.b16 %v2361
          %v2549 = vunpack.c.l.b16 %v2362
          %v2550 = vunpack.c.h.b16 %v2362
          %v2551 = vunpack.c.l.b16 %v2363
          %v2552 = vunpack.c.h.b16 %v2363
          %v2553 = vunpack.c.l.b16 %v2364
          %v2554 = vunpack.c.h.b16 %v2364
          %v2555 = vunpack.c.l.b16 %v2365
          %v2556 = vunpack.c.h.b16 %v2365
          %v2557 = vunpack.c.l.b16 %v2366
          %v2558 = vunpack.c.h.b16 %v2366
          %v2559 = vunpack.c.l.b16 %v2367
          %v2560 = vunpack.c.h.b16 %v2367
          %v2561 = vunpack.c.l.b16 %v2368
          %v2562 = vunpack.c.h.b16 %v2368
          %v2563 = vunpack.c.l.b16 %v2369
          %v2564 = vunpack.c.h.b16 %v2369
          %v2565 = vunpack.c.l.b16 %v2370
          %v2566 = vunpack.c.h.b16 %v2370
          %v2567 = vunpack.c.l.b16 %v2371
          %v2568 = vunpack.c.h.b16 %v2371
          %v2569 = vunpack.c.l.b16 %v2372
          %v2570 = vunpack.c.h.b16 %v2372
          %v2571 = vunpack.c.l.b16 %v2373
          %v2572 = vunpack.c.h.b16 %v2373
          %v2573 = vunpack.c.l.b16 %v2374
          %v2574 = vunpack.c.h.b16 %v2374
          %v2575 = vunpack.c.l.b16 %v2375
          %v2576 = vunpack.c.h.b16 %v2375
          %v2577 = vunpack.c.l.b16 %v2376
          %v2578 = vunpack.c.h.b16 %v2376
          %v2579 = vunpack.c.l.b16 %v2377
          %v2580 = vunpack.c.h.b16 %v2377
          %v2581 = vunpack.c.l.b16 %v2378
          %v2582 = vunpack.c.h.b16 %v2378
          %v2583 = vunpack.c.l.b16 %v2379
          %v2584 = vunpack.c.h.b16 %v2379
          %v2585 = vunpack.c.l.b16 %v2380
          %v2586 = vunpack.c.h.b16 %v2380
          %v2587 = vunpack.c.l.b16 %v2381
          %v2588 = vunpack.c.h.b16 %v2381
          %v2589 = vunpack.c.l.b16 %v2382
          %v2590 = vunpack.c.h.b16 %v2382
          %v2591 = vunpack.c.l.b16 %v2383
          %v2592 = vunpack.c.h.b16 %v2383
          %v2593 = vunpack.c.l.b16 %v2384
          %v2594 = vunpack.c.h.b16 %v2384
          %v2595 = vunpack.c.l.b16 %v2385
          %v2596 = vunpack.c.h.b16 %v2385
          %v2597 = vunpack.c.l.b16 %v2386
          %v2598 = vunpack.c.h.b16 %v2386
          %v2599 = vunpack.c.l.b16 %v2387
          %v2600 = vunpack.c.h.b16 %v2387
          %v2601 = vunpack.c.l.b16 %v2388
          %v2602 = vunpack.c.h.b16 %v2388
          %v2603 = vunpack.c.l.b16 %v2389
          %v2604 = vunpack.c.h.b16 %v2389
          %v2605 = vunpack.c.l.b16 %v2390
          %v2606 = vunpack.c.h.b16 %v2390
          %v2607 = vunpack.c.l.b16 %v2391
          %v2608 = vunpack.c.h.b16 %v2391
          %v2609 = vunpack.c.l.b16 %v2392
          %v2610 = vunpack.c.h.b16 %v2392
          %v2611 = vunpack.c.l.b16 %v2393
          %v2612 = vunpack.c.h.b16 %v2393
          %v2613 = vunpack.c.l.b16 %v2394
          %v2614 = vunpack.c.h.b16 %v2394
          %v2615 = vunpack.c.l.b16 %v2395
          %v2616 = vunpack.c.h.b16 %v2395
          %v2617 = vunpack.c.l.b16 %v2396
          %v2618 = vunpack.c.h.b16 %v2396
          %v2619 = vunpack.c.l.b16 %v2397
          %v2620 = vunpack.c.h.b16 %v2397
          %v2621 = vunpack.c.l.b16 %v2398
          %v2622 = vunpack.c.h.b16 %v2398
          %v2623 = vpack.c.b16 %v2499, %v2495
          %v2624 = vpack.c.b16 %v2500, %v2496
          %v2625 = vpack.c.b16 %v2501, %v2497
          %v2626 = vpack.c.b16 %v2502, %v2498
          %v2627 = vpack.c.b16 %v2507, %v2503
          %v2628 = vpack.c.b16 %v2508, %v2504
          %v2629 = vpack.c.b16 %v2509, %v2505
          %v2630 = vpack.c.b16 %v2510, %v2506
          %v2631 = vpack.c.b16 %v2515, %v2511
          %v2632 = vpack.c.b16 %v2516, %v2512
          %v2633 = vpack.c.b16 %v2517, %v2513
          %v2634 = vpack.c.b16 %v2518, %v2514
          %v2635 = vpack.c.b16 %v2523, %v2519
          %v2636 = vpack.c.b16 %v2524, %v2520
          %v2637 = vpack.c.b16 %v2525, %v2521
          %v2638 = vpack.c.b16 %v2526, %v2522
          %v2639 = vpack.c.b16 %v2531, %v2527
          %v2640 = vpack.c.b16 %v2532, %v2528
          %v2641 = vpack.c.b16 %v2533, %v2529
          %v2642 = vpack.c.b16 %v2534, %v2530
          %v2643 = vpack.c.b16 %v2539, %v2535
          %v2644 = vpack.c.b16 %v2540, %v2536
          %v2645 = vpack.c.b16 %v2541, %v2537
          %v2646 = vpack.c.b16 %v2542, %v2538
          %v2647 = vpack.c.b16 %v2547, %v2543
          %v2648 = vpack.c.b16 %v2548, %v2544
          %v2649 = vpack.c.b16 %v2549, %v2545
          %v2650 = vpack.c.b16 %v2550, %v2546
          %v2651 = vpack.c.b16 %v2555, %v2551
          %v2652 = vpack.c.b16 %v2556, %v2552
          %v2653 = vpack.c.b16 %v2557, %v2553
          %v2654 = vpack.c.b16 %v2558, %v2554
          %v2655 = vpack.c.b16 %v2563, %v2559
          %v2656 = vpack.c.b16 %v2564, %v2560
          %v2657 = vpack.c.b16 %v2565, %v2561
          %v2658 = vpack.c.b16 %v2566, %v2562
          %v2659 = vpack.c.b16 %v2571, %v2567
          %v2660 = vpack.c.b16 %v2572, %v2568
          %v2661 = vpack.c.b16 %v2573, %v2569
          %v2662 = vpack.c.b16 %v2574, %v2570
          %v2663 = vpack.c.b16 %v2579, %v2575
          %v2664 = vpack.c.b16 %v2580, %v2576
          %v2665 = vpack.c.b16 %v2581, %v2577
          %v2666 = vpack.c.b16 %v2582, %v2578
          %v2667 = vpack.c.b16 %v2587, %v2583
          %v2668 = vpack.c.b16 %v2588, %v2584
          %v2669 = vpack.c.b16 %v2589, %v2585
          %v2670 = vpack.c.b16 %v2590, %v2586
          %v2671 = vpack.c.b16 %v2595, %v2591
          %v2672 = vpack.c.b16 %v2596, %v2592
          %v2673 = vpack.c.b16 %v2597, %v2593
          %v2674 = vpack.c.b16 %v2598, %v2594
          %v2675 = vpack.c.b16 %v2603, %v2599
          %v2676 = vpack.c.b16 %v2604, %v2600
          %v2677 = vpack.c.b16 %v2605, %v2601
          %v2678 = vpack.c.b16 %v2606, %v2602
          %v2679 = vpack.c.b16 %v2611, %v2607
          %v2680 = vpack.c.b16 %v2612, %v2608
          %v2681 = vpack.c.b16 %v2613, %v2609
          %v2682 = vpack.c.b16 %v2614, %v2610
          %v2683 = vpack.c.b16 %v2619, %v2615
          %v2684 = vpack.c.b16 %v2620, %v2616
          %v2685 = vpack.c.b16 %v2621, %v2617
          %v2686 = vpack.c.b16 %v2622, %v2618
          %2751 = vmatprep.subr.bf16.mxu0 %v2624
          %2752 = vmatpush1.bf16.msra.mxu0 %v2623
          %2753 = vmatprep.subr.bf16.mxu0 %v2628
          %2754 = vmatpush1.bf16.msra.mxu0 %v2627
          %2755 = vmatprep.subr.bf16.mxu0 %v2632
          %2756 = vmatpush1.bf16.msra.mxu0 %v2631
          %2757 = vmatprep.subr.bf16.mxu0 %v2636
          %2758 = vmatpush1.bf16.msra.mxu0 %v2635
          %2759 = vmatprep.subr.bf16.mxu0 %v2640
          %2760 = vmatpush1.bf16.msra.mxu0 %v2639
          %2761 = vmatprep.subr.bf16.mxu0 %v2644
          %2762 = vmatpush1.bf16.msra.mxu0 %v2643
          %2763 = vmatprep.subr.bf16.mxu0 %v2648
          %2764 = vmatpush1.bf16.msra.mxu0 %v2647
          %2765 = vmatprep.subr.bf16.mxu0 %v2652
          %2766 = vmatpush1.bf16.msra.mxu0 %v2651
          %2767 = vmatprep.subr.bf16.mxu0 %v2656
          %2768 = vmatpush1.bf16.msra.mxu0 %v2655
          %2769 = vmatprep.subr.bf16.mxu0 %v2660
          %2770 = vmatpush1.bf16.msra.mxu0 %v2659
          %2771 = vmatprep.subr.bf16.mxu0 %v2664
          %2772 = vmatpush1.bf16.msra.mxu0 %v2663
          %2773 = vmatprep.subr.bf16.mxu0 %v2668
          %2774 = vmatpush1.bf16.msra.mxu0 %v2667
          %2775 = vmatprep.subr.bf16.mxu0 %v2672
          %2776 = vmatpush1.bf16.msra.mxu0 %v2671
          %2777 = vmatprep.subr.bf16.mxu0 %v2676
          %2778 = vmatpush1.bf16.msra.mxu0 %v2675
          %2779 = vmatprep.subr.bf16.mxu0 %v2680
          %2780 = vmatpush1.bf16.msra.mxu0 %v2679
          %2781 = vmatprep.subr.bf16.mxu0 %v2684
          %2782 = vmatpush1.bf16.msra.mxu0 %v2683
          %2783 = vmatprep.mubr.bf16.mxu0 %v2331
          %2784 = vmatmul.mubr.bf16.gmra.mrb[0].mxu0 %v2311
          %v2785 = vpop.f32.mrb[0].mxu0
          %v2786 = vadd.f32 %v2399, %v2785
          %v2787 = vpop.f32.mrb[0].mxu0
          %v2788 = vadd.f32 %v2400, %v2787
          %v2789 = vpop.f32.mrb[0].mxu0
          %v2790 = vadd.f32 %v2403, %v2789
          %v2791 = vpop.f32.mrb[0].mxu0
          %v2792 = vadd.f32 %v2404, %v2791
          %2793 = vmatprep.mubr.bf16.mxu0 %v2332
          %2794 = vmatmul.mubr.bf16.gmra.mrb[0].mxu0 %v2312
          %v2795 = vpop.f32.mrb[0].mxu0
          %v2796 = vadd.f32 %v2407, %v2795
          %v2797 = vpop.f32.mrb[0].mxu0
          %v2798 = vadd.f32 %v2408, %v2797
          %v2799 = vpop.f32.mrb[0].mxu0
          %v2800 = vadd.f32 %v2411, %v2799
          %v2801 = vpop.f32.mrb[0].mxu0
          %v2802 = vadd.f32 %v2412, %v2801
          %2803 = vmatprep.mubr.bf16.mxu0 %v2333
          %2804 = vmatmul.mubr.bf16.gmra.mrb[0].mxu0 %v2313
          %v2805 = vpop.f32.mrb[0].mxu0
          %v2806 = vadd.f32 %v2415, %v2805
          %v2807 = vpop.f32.mrb[0].mxu0
          %v2808 = vadd.f32 %v2416, %v2807
          %v2809 = vpop.f32.mrb[0].mxu0
          %v2810 = vadd.f32 %v2419, %v2809
          %v2811 = vpop.f32.mrb[0].mxu0
          %v2812 = vadd.f32 %v2420, %v2811
          %2813 = vmatprep.mubr.bf16.mxu0 %v2334
          %2814 = vmatmul.mubr.bf16.gmra.mrb[0].mxu0 %v2314
          %v2815 = vpop.f32.mrb[0].mxu0
          %v2816 = vadd.f32 %v2423, %v2815
          %v2817 = vpop.f32.mrb[0].mxu0
          %v2818 = vadd.f32 %v2424, %v2817
          %v2819 = vpop.f32.mrb[0].mxu0
          %v2820 = vadd.f32 %v2427, %v2819
          %v2821 = vpop.f32.mrb[0].mxu0
          %v2822 = vadd.f32 %v2428, %v2821
          %2823 = vdwg.mxu0
          %2824 = vmatprep.subr.bf16.mxu0 %v2626
          %2825 = vmatpush1.bf16.msra.mxu0 %v2625
          %2826 = vmatprep.subr.bf16.mxu0 %v2630
          %2827 = vmatpush1.bf16.msra.mxu0 %v2629
          %2828 = vmatprep.subr.bf16.mxu0 %v2634
          %2829 = vmatpush1.bf16.msra.mxu0 %v2633
          %2830 = vmatprep.subr.bf16.mxu0 %v2638
          %2831 = vmatpush1.bf16.msra.mxu0 %v2637
          %2832 = vmatprep.subr.bf16.mxu0 %v2642
          %2833 = vmatpush1.bf16.msra.mxu0 %v2641
          %2834 = vmatprep.subr.bf16.mxu0 %v2646
          %2835 = vmatpush1.bf16.msra.mxu0 %v2645
          %2836 = vmatprep.subr.bf16.mxu0 %v2650
          %2837 = vmatpush1.bf16.msra.mxu0 %v2649
          %2838 = vmatprep.subr.bf16.mxu0 %v2654
          %2839 = vmatpush1.bf16.msra.mxu0 %v2653
          %2840 = vmatprep.subr.bf16.mxu0 %v2658
          %2841 = vmatpush1.bf16.msra.mxu0 %v2657
          %2842 = vmatprep.subr.bf16.mxu0 %v2662
          %2843 = vmatpush1.bf16.msra.mxu0 %v2661
          %2844 = vmatprep.subr.bf16.mxu0 %v2666
          %2845 = vmatpush1.bf16.msra.mxu0 %v2665
          %2846 = vmatprep.subr.bf16.mxu0 %v2670
          %2847 = vmatpush1.bf16.msra.mxu0 %v2669
          %2848 = vmatprep.subr.bf16.mxu0 %v2674
          %2849 = vmatpush1.bf16.msra.mxu0 %v2673
          %2850 = vmatprep.subr.bf16.mxu0 %v2678
          %2851 = vmatpush1.bf16.msra.mxu0 %v2677
          %2852 = vmatprep.subr.bf16.mxu0 %v2682
          %2853 = vmatpush1.bf16.msra.mxu0 %v2681
          %2854 = vmatprep.subr.bf16.mxu0 %v2686
          %2855 = vmatpush1.bf16.msra.mxu0 %v2685
          %2856 = vmatprep.mubr.bf16.mxu0 %v2331
          %2857 = vmatmul.mubr.bf16.gmra.mrb[0].mxu0 %v2311
          %v2858 = vpop.f32.mrb[0].mxu0
          %v2859 = vadd.f32 %v2401, %v2858
          %v2860 = vpop.f32.mrb[0].mxu0
          %v2861 = vadd.f32 %v2402, %v2860
          %v2862 = vpop.f32.mrb[0].mxu0
          %v2863 = vadd.f32 %v2405, %v2862
          %v2864 = vpop.f32.mrb[0].mxu0
          %v2865 = vadd.f32 %v2406, %v2864
          %2866 = vmatprep.mubr.bf16.mxu0 %v2332
          %2867 = vmatmul.mubr.bf16.gmra.mrb[0].mxu0 %v2312
          %v2868 = vpop.f32.mrb[0].mxu0
          %v2869 = vadd.f32 %v2409, %v2868
          %v2870 = vpop.f32.mrb[0].mxu0
          %v2871 = vadd.f32 %v2410, %v2870
          %v2872 = vpop.f32.mrb[0].mxu0
          %v2873 = vadd.f32 %v2413, %v2872
          %v2874 = vpop.f32.mrb[0].mxu0
          %v2875 = vadd.f32 %v2414, %v2874
          %2876 = vmatprep.mubr.bf16.mxu0 %v2333
          %2877 = vmatmul.mubr.bf16.gmra.mrb[0].mxu0 %v2313
          %v2878 = vpop.f32.mrb[0].mxu0
          %v2879 = vadd.f32 %v2417, %v2878
          %v2880 = vpop.f32.mrb[0].mxu0
          %v2881 = vadd.f32 %v2418, %v2880
          %v2882 = vpop.f32.mrb[0].mxu0
          %v2883 = vadd.f32 %v2421, %v2882
          %v2884 = vpop.f32.mrb[0].mxu0
          %v2885 = vadd.f32 %v2422, %v2884
          %2886 = vmatprep.mubr.bf16.mxu0 %v2334
          %2887 = vmatmul.mubr.bf16.gmra.mrb[0].mxu0 %v2314
          %v2888 = vpop.f32.mrb[0].mxu0
          %v2889 = vadd.f32 %v2425, %v2888
          %v2890 = vpop.f32.mrb[0].mxu0
          %v2891 = vadd.f32 %v2426, %v2890
          %v2892 = vpop.f32.mrb[0].mxu0
          %v2893 = vadd.f32 %v2429, %v2892
          %v2894 = vpop.f32.mrb[0].mxu0
          %v2895 = vadd.f32 %v2430, %v2894
          %2896 = vdwg.mxu0
          %v2897 = vxor.u32 %v2786, 2147483648
          %v2898 = vxor.u32 %v2790, 2147483648
          %v2899 = vxor.u32 %v2796, 2147483648
          %v2900 = vxor.u32 %v2800, 2147483648
          %v2901 = vxor.u32 %v2806, 2147483648
          %v2902 = vxor.u32 %v2810, 2147483648
          %v2903 = vxor.u32 %v2816, 2147483648
          %v2904 = vxor.u32 %v2820, 2147483648
          %v2905 = vmul.f32 %v2897, 1.442695
          %v2906 = vpow.pop %v2905
          %v2907 = vmul.f32 %v2898, 1.442695
          %v2908 = vpow.pop %v2907
          %v2909 = vmul.f32 %v2899, 1.442695
          %v2910 = vpow.pop %v2909
          %v2911 = vmul.f32 %v2900, 1.442695
          %v2912 = vpow.pop %v2911
          %v2913 = vmul.f32 %v2901, 1.442695
          %v2914 = vpow.pop %v2913
          %v2915 = vmul.f32 %v2902, 1.442695
          %v2916 = vpow.pop %v2915
          %v2917 = vmul.f32 %v2903, 1.442695
          %v2918 = vpow.pop %v2917
          %v2919 = vmul.f32 %v2904, 1.442695
          %v2920 = vpow.pop %v2919
          %v2921 = vadd.f32 %v2906, 1.0
          %v2922 = vadd.f32 %v2908, 1.0
          %v2923 = vadd.f32 %v2910, 1.0
          %v2924 = vadd.f32 %v2912, 1.0
          %v2925 = vadd.f32 %v2914, 1.0
          %v2926 = vadd.f32 %v2916, 1.0
          %v2927 = vadd.f32 %v2918, 1.0
          %v2928 = vadd.f32 %v2920, 1.0
          %v2929 = vrcp.pop %v2921
          %v2930 = vmul.f32 1.0, %v2929
          %v2931 = vrcp.pop %v2922
          %v2932 = vmul.f32 1.0, %v2931
          %v2933 = vrcp.pop %v2923
          %v2934 = vmul.f32 1.0, %v2933
          %v2935 = vrcp.pop %v2924
          %v2936 = vmul.f32 1.0, %v2935
          %v2937 = vrcp.pop %v2925
          %v2938 = vmul.f32 1.0, %v2937
          %v2939 = vrcp.pop %v2926
          %v2940 = vmul.f32 1.0, %v2939
          %v2941 = vrcp.pop %v2927
          %v2942 = vmul.f32 1.0, %v2941
          %v2943 = vrcp.pop %v2928
          %v2944 = vmul.f32 1.0, %v2943
          %v2945 = vxor.u32 %v2788, 2147483648
          %v2946 = vxor.u32 %v2792, 2147483648
          %v2947 = vxor.u32 %v2798, 2147483648
          %v2948 = vxor.u32 %v2802, 2147483648
          %v2949 = vxor.u32 %v2808, 2147483648
          %v2950 = vxor.u32 %v2812, 2147483648
          %v2951 = vxor.u32 %v2818, 2147483648
          %v2952 = vxor.u32 %v2822, 2147483648
          %v2953 = vmul.f32 %v2945, 1.442695
          %v2954 = vpow.pop %v2953
          %v2955 = vmul.f32 %v2946, 1.442695
          %v2956 = vpow.pop %v2955
          %v2957 = vmul.f32 %v2947, 1.442695
          %v2958 = vpow.pop %v2957
          %v2959 = vmul.f32 %v2948, 1.442695
          %v2960 = vpow.pop %v2959
          %v2961 = vmul.f32 %v2949, 1.442695
          %v2962 = vpow.pop %v2961
          %v2963 = vmul.f32 %v2950, 1.442695
          %v2964 = vpow.pop %v2963
          %v2965 = vmul.f32 %v2951, 1.442695
          %v2966 = vpow.pop %v2965
          %v2967 = vmul.f32 %v2952, 1.442695
          %v2968 = vpow.pop %v2967
          %v2969 = vadd.f32 %v2954, 1.0
          %v2970 = vadd.f32 %v2956, 1.0
          %v2971 = vadd.f32 %v2958, 1.0
          %v2972 = vadd.f32 %v2960, 1.0
          %v2973 = vadd.f32 %v2962, 1.0
          %v2974 = vadd.f32 %v2964, 1.0
          %v2975 = vadd.f32 %v2966, 1.0
          %v2976 = vadd.f32 %v2968, 1.0
          %v2977 = vrcp.pop %v2969
          %v2978 = vmul.f32 1.0, %v2977
          %v2979 = vrcp.pop %v2970
          %v2980 = vmul.f32 1.0, %v2979
          %v2981 = vrcp.pop %v2971
          %v2982 = vmul.f32 1.0, %v2981
          %v2983 = vrcp.pop %v2972
          %v2984 = vmul.f32 1.0, %v2983
          %v2985 = vrcp.pop %v2973
          %v2986 = vmul.f32 1.0, %v2985
          %v2987 = vrcp.pop %v2974
          %v2988 = vmul.f32 1.0, %v2987
          %v2989 = vrcp.pop %v2975
          %v2990 = vmul.f32 1.0, %v2989
          %v2991 = vrcp.pop %v2976
          %v2992 = vmul.f32 1.0, %v2991
          %v2993 = vtanh.pop %v2859
          %v2994 = vtanh.pop %v2863
          %v2995 = vtanh.pop %v2869
          %v2996 = vtanh.pop %v2873
          %v2997 = vtanh.pop %v2879
          %v2998 = vtanh.pop %v2883
          %v2999 = vtanh.pop %v2889
          %v3000 = vtanh.pop %v2893
          %v3001 = vxor.u32 %v2861, 2147483648
          %v3002 = vxor.u32 %v2865, 2147483648
          %v3003 = vxor.u32 %v2871, 2147483648
          %v3004 = vxor.u32 %v2875, 2147483648
          %v3005 = vxor.u32 %v2881, 2147483648
          %v3006 = vxor.u32 %v2885, 2147483648
          %v3007 = vxor.u32 %v2891, 2147483648
          %v3008 = vxor.u32 %v2895, 2147483648
          %v3009 = vmul.f32 %v3001, 1.442695
          %v3010 = vpow.pop %v3009
          %v3011 = vmul.f32 %v3002, 1.442695
          %v3012 = vpow.pop %v3011
          %v3013 = vmul.f32 %v3003, 1.442695
          %v3014 = vpow.pop %v3013
          %v3015 = vmul.f32 %v3004, 1.442695
          %v3016 = vpow.pop %v3015
          %v3017 = vmul.f32 %v3005, 1.442695
          %v3018 = vpow.pop %v3017
          %v3019 = vmul.f32 %v3006, 1.442695
          %v3020 = vpow.pop %v3019
          %v3021 = vmul.f32 %v3007, 1.442695
          %v3022 = vpow.pop %v3021
          %v3023 = vmul.f32 %v3008, 1.442695
          %v3024 = vpow.pop %v3023
          %v3025 = vadd.f32 %v3010, 1.0
          %v3026 = vadd.f32 %v3012, 1.0
          %v3027 = vadd.f32 %v3014, 1.0
          %v3028 = vadd.f32 %v3016, 1.0
          %v3029 = vadd.f32 %v3018, 1.0
          %v3030 = vadd.f32 %v3020, 1.0
          %v3031 = vadd.f32 %v3022, 1.0
          %v3032 = vadd.f32 %v3024, 1.0
          %v3033 = vrcp.pop %v3025
          %v3034 = vmul.f32 1.0, %v3033
          %v3035 = vrcp.pop %v3026
          %v3036 = vmul.f32 1.0, %v3035
          %v3037 = vrcp.pop %v3027
          %v3038 = vmul.f32 1.0, %v3037
          %v3039 = vrcp.pop %v3028
          %v3040 = vmul.f32 1.0, %v3039
          %v3041 = vrcp.pop %v3029
          %v3042 = vmul.f32 1.0, %v3041
          %v3043 = vrcp.pop %v3030
          %v3044 = vmul.f32 1.0, %v3043
          %v3045 = vrcp.pop %v3031
          %v3046 = vmul.f32 1.0, %v3045
          %v3047 = vrcp.pop %v3032
          %v3048 = vmul.f32 1.0, %v3047
          %v3049 = vmul.f32 %v2978, %v2323
          %v3050 = vmul.f32 %v2980, %v2324
          %v3051 = vmul.f32 %v2982, %v2325
          %v3052 = vmul.f32 %v2984, %v2326
          %v3053 = vmul.f32 %v2986, %v2327
          %v3054 = vmul.f32 %v2988, %v2328
          %v3055 = vmul.f32 %v2990, %v2329
          %v3056 = vmul.f32 %v2992, %v2330
          %v3057 = vmul.f32 %v2930, %v2993
          %v3058 = vmul.f32 %v2932, %v2994
          %v3059 = vmul.f32 %v2934, %v2995
          %v3060 = vmul.f32 %v2936, %v2996
          %v3061 = vmul.f32 %v2938, %v2997
          %v3062 = vmul.f32 %v2940, %v2998
          %v3063 = vmul.f32 %v2942, %v2999
          %v3064 = vmul.f32 %v2944, %v3000
          %v3065 = vadd.f32 %v3049, %v3057
          %v3066 = vadd.f32 %v3050, %v3058
          %v3067 = vadd.f32 %v3051, %v3059
          %v3068 = vadd.f32 %v3052, %v3060
          %v3069 = vadd.f32 %v3053, %v3061
          %v3070 = vadd.f32 %v3054, %v3062
          %v3071 = vadd.f32 %v3055, %v3063
          %v3072 = vadd.f32 %v3056, %v3064
          %v3073 = vtanh.pop %v3065
          %v3074 = vtanh.pop %v3066
          %v3075 = vtanh.pop %v3067
          %v3076 = vtanh.pop %v3068
          %v3077 = vtanh.pop %v3069
          %v3078 = vtanh.pop %v3070
          %v3079 = vtanh.pop %v3071
          %v3080 = vtanh.pop %v3072
          %v3081 = vmul.f32 %v3034, %v3073
          %v3082 = vmul.f32 %v3036, %v3074
          %v3083 = vmul.f32 %v3038, %v3075
          %v3084 = vmul.f32 %v3040, %v3076
          %v3085 = vmul.f32 %v3042, %v3077
          %v3086 = vmul.f32 %v3044, %v3078
          %v3087 = vmul.f32 %v3046, %v3079
          %v3088 = vmul.f32 %v3048, %v3080
          %v3089 = vpack.c.bf16 %v3082, %v3081
          %v3090 = vpack.c.bf16 %v3084, %v3083
          %v3091 = vpack.c.bf16 %v3086, %v3085
          %v3092 = vpack.c.bf16 %v3088, %v3087
          %v3093 = vld [vmem:[%s3 + $0x740] sm:$0xf]
          %v3094 = vld [vmem:[%s3 + $0x750] sm:$0xf]
          %v3095 = vld [vmem:[%s3 + $0x760] sm:$0xf]
          %v3096 = vld [vmem:[%s3 + $0x770] sm:$0xf]
          %v3097 = vld [vmem:[%s3 + $0x780] sm:$0xf]
          %v3098 = vld [vmem:[%s3 + $0x790] sm:$0xf]
          %v3099 = vld [vmem:[%s3 + $0x7a0] sm:$0xf]
          %v3100 = vld [vmem:[%s3 + $0x7b0] sm:$0xf]
          %v3101 = vld [vmem:[%s3 + $0x7c0] sm:$0xf]
          %v3102 = vld [vmem:[%s3 + $0x7d0] sm:$0xf]
          %v3103 = vld [vmem:[%s3 + $0x7e0] sm:$0xf]
          %v3104 = vld [vmem:[%s3 + $0x7f0] sm:$0xf]
          %v3105 = vld [vmem:[%s3 + $0x800] sm:$0xf]
          %v3106 = vld [vmem:[%s3 + $0x810] sm:$0xf]
          %v3107 = vld [vmem:[%s3 + $0x820] sm:$0xf]
          %v3108 = vld [vmem:[%s3 + $0x830] sm:$0xf]
          %v3109 = vld [vmem:[%s4 + $0x50] sm:$0xff]
          %v3110 = vld [vmem:[%s4 + $0xa8] sm:$0xff]
          %v3111 = vld [vmem:[%s4 + $0x100] sm:$0xff]
          %v3112 = vld [vmem:[%s4 + $0x158] sm:$0xff]
          %v3113 = vld [vmem:[%s4 + $0x1b0] sm:$0xff]
          %v3114 = vld [vmem:[%s4 + $0x208] sm:$0xff]
          %v3115 = vld [vmem:[%s4 + $0x260] sm:$0xff]
          %v3116 = vld [vmem:[%s4 + $0x2b8] sm:$0xff]
          %v3133 = vunpack.c.l.b16 %v3093
          %v3134 = vunpack.c.l.b16 %v3094
          %v3135 = vunpack.c.l.b16 %v3095
          %v3136 = vunpack.c.l.b16 %v3096
          %v3137 = vunpack.c.l.b16 %v3097
          %v3138 = vunpack.c.l.b16 %v3098
          %v3139 = vunpack.c.l.b16 %v3099
          %v3140 = vunpack.c.l.b16 %v3100
          %v3141 = vunpack.c.l.b16 %v3101
          %v3142 = vunpack.c.l.b16 %v3102
          %v3143 = vunpack.c.l.b16 %v3103
          %v3144 = vunpack.c.l.b16 %v3104
          %v3145 = vunpack.c.l.b16 %v3105
          %v3146 = vunpack.c.l.b16 %v3106
          %v3147 = vunpack.c.l.b16 %v3107
          %v3148 = vunpack.c.l.b16 %v3108
          %v3149 = vpack.c.b16 %v3134, %v3133
          %v3150 = vpack.c.b16 %v3136, %v3135
          %v3151 = vpack.c.b16 %v3138, %v3137
          %v3152 = vpack.c.b16 %v3140, %v3139
          %v3153 = vpack.c.b16 %v3142, %v3141
          %v3154 = vpack.c.b16 %v3144, %v3143
          %v3155 = vpack.c.b16 %v3146, %v3145
          %v3156 = vpack.c.b16 %v3148, %v3147
          %3165 = vmatprep.subr.bf16.mxu0 0
          %3166 = vmatpush1.bf16.msra.mxu0 %v3149
          %3167 = vmatprep.subr.bf16.mxu0 0
          %3168 = vmatpush1.bf16.msra.mxu0 %v3150
          %3169 = vmatprep.subr.bf16.mxu0 0
          %3170 = vmatpush1.bf16.msra.mxu0 %v3151
          %3171 = vmatprep.subr.bf16.mxu0 0
          %3172 = vmatpush1.bf16.msra.mxu0 %v3152
          %3173 = vmatprep.subr.bf16.mxu0 0
          %3174 = vmatpush1.bf16.msra.mxu0 %v3153
          %3175 = vmatprep.subr.bf16.mxu0 0
          %3176 = vmatpush1.bf16.msra.mxu0 %v3154
          %3177 = vmatprep.subr.bf16.mxu0 0
          %3178 = vmatpush1.bf16.msra.mxu0 %v3155
          %3179 = vmatprep.subr.bf16.mxu0 0
          %3180 = vmatpush1.bf16.msra.mxu0 %v3156
          %3181 = vmatprep.subr.bf16.mxu0 0
          %3182 = vmatpush1.bf16.msra.mxu0 0
          %3183 = vmatprep.subr.bf16.mxu0 0
          %3184 = vmatpush1.bf16.msra.mxu0 0
          %3185 = vmatprep.subr.bf16.mxu0 0
          %3186 = vmatpush1.bf16.msra.mxu0 0
          %3187 = vmatprep.subr.bf16.mxu0 0
          %3188 = vmatpush1.bf16.msra.mxu0 0
          %3189 = vmatprep.subr.bf16.mxu0 0
          %3190 = vmatpush1.bf16.msra.mxu0 0
          %3191 = vmatprep.subr.bf16.mxu0 0
          %3192 = vmatpush1.bf16.msra.mxu0 0
          %3193 = vmatprep.subr.bf16.mxu0 0
          %3194 = vmatpush1.bf16.msra.mxu0 0
          %3195 = vmatprep.subr.bf16.mxu0 0
          %3196 = vmatpush1.bf16.msra.mxu0 0
          %3197 = vmatprep.mubr.bf16.mxu0 0
          %3198 = vmatmul.mubr.bf16.gmra.mrb[0].mxu0 %v3089
          %v3199 = vpop.f32.mrb[0].mxu0
          %v3200 = vadd.f32 %v3109, %v3199
          %v3201 = vpop.f32.mrb[0].mxu0
          %v3202 = vpop.f32.mrb[0].mxu0
          %v3203 = vadd.f32 %v3110, %v3202
          %v3204 = vpop.f32.mrb[0].mxu0
          %3205 = vmatprep.mubr.bf16.mxu0 0
          %3206 = vmatmul.mubr.bf16.gmra.mrb[0].mxu0 %v3090
          %v3207 = vpop.f32.mrb[0].mxu0
          %v3208 = vadd.f32 %v3111, %v3207
          %v3209 = vpop.f32.mrb[0].mxu0
          %v3210 = vpop.f32.mrb[0].mxu0
          %v3211 = vadd.f32 %v3112, %v3210
          %v3212 = vpop.f32.mrb[0].mxu0
          %3213 = vmatprep.mubr.bf16.mxu0 0
          %3214 = vmatmul.mubr.bf16.gmra.mrb[0].mxu0 %v3091
          %v3215 = vpop.f32.mrb[0].mxu0
          %v3216 = vadd.f32 %v3113, %v3215
          %v3217 = vpop.f32.mrb[0].mxu0
          %v3218 = vpop.f32.mrb[0].mxu0
          %v3219 = vadd.f32 %v3114, %v3218
          %v3220 = vpop.f32.mrb[0].mxu0
          %3221 = vmatprep.mubr.bf16.mxu0 0
          %3222 = vmatmul.mubr.bf16.gmra.mrb[0].mxu0 %v3092
          %v3223 = vpop.f32.mrb[0].mxu0
          %v3224 = vadd.f32 %v3115, %v3223
          %v3225 = vpop.f32.mrb[0].mxu0
          %v3226 = vpop.f32.mrb[0].mxu0
          %v3227 = vadd.f32 %v3116, %v3226
          %v3228 = vpop.f32.mrb[0].mxu0
          %3229 = vdwg.mxu0
          %s3230 = scalar_lea.vmem %s1366, %s1436 [#allocation5]
          %3231 = vst [vmem:[%s3230] sm:$0xff] %v3200
          %3232 = vst [vmem:[%s3230 + $0x8] sm:$0xff] %v3203
          %3233 = vst [vmem:[%s3230 + $0x10] sm:$0xff] %v3208
          %3234 = vst [vmem:[%s3230 + $0x18] sm:$0xff] %v3211
          %3235 = vst [vmem:[%s3230 + $0x20] sm:$0xff] %v3216
          %3236 = vst [vmem:[%s3230 + $0x28] sm:$0xff] %v3219
          %3237 = vst [vmem:[%s3230 + $0x30] sm:$0xff] %v3224
          %3238 = vst [vmem:[%s3230 + $0x38] sm:$0xff] %v3227
          %3239 = vst [vmem:[#allocation2] sm:$0xff] %v3081
          %3240 = vst [vmem:[#allocation2 + $0x8] sm:$0xff] %v3082
          %3241 = vst [vmem:[#allocation2 + $0x10] sm:$0xff] %v3083
          %3242 = vst [vmem:[#allocation2 + $0x18] sm:$0xff] %v3084
          %3243 = vst [vmem:[#allocation2 + $0x20] sm:$0xff] %v3085
          %3244 = vst [vmem:[#allocation2 + $0x28] sm:$0xff] %v3086
          %3245 = vst [vmem:[#allocation2 + $0x30] sm:$0xff] %v3087
          %3246 = vst [vmem:[#allocation2 + $0x38] sm:$0xff] %v3088
          %3247 = vst [vmem:[#allocation3] sm:$0xff] %v3065
          %3248 = vst [vmem:[#allocation3 + $0x8] sm:$0xff] %v3066
          %3249 = vst [vmem:[#allocation3 + $0x10] sm:$0xff] %v3067
          %3250 = vst [vmem:[#allocation3 + $0x18] sm:$0xff] %v3068
          %3251 = vst [vmem:[#allocation3 + $0x20] sm:$0xff] %v3069
          %3252 = vst [vmem:[#allocation3 + $0x28] sm:$0xff] %v3070
          %3253 = vst [vmem:[#allocation3 + $0x30] sm:$0xff] %v3071
          %3254 = vst [vmem:[#allocation3 + $0x38] sm:$0xff] %v3072
        $region83: #{network_forward.1} parent=73 // loop_footer
          %s1435 = sadd.s32 1, %s1431
        $region84: #{network_forward.1} parent=73 // loop_footer_branch
          %1430 = sbr.rel target = $region80
        $region85: #{network_forward.1} parent=73 // loop_exit
          _
        %v3255 = vld [vmem:[#allocation2] sm:$0xff]
        %v3256 = vld [vmem:[#allocation2 + $0x8] sm:$0xff]
        %v3257 = vld [vmem:[#allocation2 + $0x10] sm:$0xff]
        %v3258 = vld [vmem:[#allocation2 + $0x18] sm:$0xff]
        %v3259 = vld [vmem:[#allocation2 + $0x20] sm:$0xff]
        %v3260 = vld [vmem:[#allocation2 + $0x28] sm:$0xff]
        %v3261 = vld [vmem:[#allocation2 + $0x30] sm:$0xff]
        %v3262 = vld [vmem:[#allocation2 + $0x38] sm:$0xff]
        %3263 = vst [vmem:[%s1373] sm:$0xff] %v3255
        %3264 = vst [vmem:[%s1373 + $0x8] sm:$0xff] %v3256
        %3265 = vst [vmem:[%s1373 + $0x10] sm:$0xff] %v3257
        %3266 = vst [vmem:[%s1373 + $0x18] sm:$0xff] %v3258
        %3267 = vst [vmem:[%s1373 + $0x20] sm:$0xff] %v3259
        %3268 = vst [vmem:[%s1373 + $0x28] sm:$0xff] %v3260
        %3269 = vst [vmem:[%s1373 + $0x30] sm:$0xff] %v3261
        %3270 = vst [vmem:[%s1373 + $0x38] sm:$0xff] %v3262
        %v3271 = vld [vmem:[#allocation3] sm:$0xff]
        %v3272 = vld [vmem:[#allocation3 + $0x8] sm:$0xff]
        %v3273 = vld [vmem:[#allocation3 + $0x10] sm:$0xff]
        %v3274 = vld [vmem:[#allocation3 + $0x18] sm:$0xff]
        %v3275 = vld [vmem:[#allocation3 + $0x20] sm:$0xff]
        %v3276 = vld [vmem:[#allocation3 + $0x28] sm:$0xff]
        %v3277 = vld [vmem:[#allocation3 + $0x30] sm:$0xff]
        %v3278 = vld [vmem:[#allocation3 + $0x38] sm:$0xff]
        %3279 = vst [vmem:[%s1380] sm:$0xff] %v3271
        %3280 = vst [vmem:[%s1380 + $0x8] sm:$0xff] %v3272
        %3281 = vst [vmem:[%s1380 + $0x10] sm:$0xff] %v3273
        %3282 = vst [vmem:[%s1380 + $0x18] sm:$0xff] %v3274
        %3283 = vst [vmem:[%s1380 + $0x20] sm:$0xff] %v3275
        %3284 = vst [vmem:[%s1380 + $0x28] sm:$0xff] %v3276
        %3285 = vst [vmem:[%s1380 + $0x30] sm:$0xff] %v3277
        %3286 = vst [vmem:[%s1380 + $0x38] sm:$0xff] %v3278
        %s3287 = sand.u32 %s153, 1
        %s3288 = sand.u32 %s153, 1
        %s3289 = smul.addr %s3288, 2048
        %s3290 = scalar_lea.vmem [#allocation5], %s3289
        %s3291 = sand.u32 %s179, 1
        %s3292 = scalar_lea.sflag [#allocation7], %s3291
        %s3293 = sand.u32 %s179, 1
        %s3294 = smul.addr %s3293, 64
        %s3295 = scalar_lea.vmem [#allocation6], %s3294
        %s3296 = sand.u32 %s205, 1
        %s3297 = scalar_lea.sflag [#allocation9], %s3296
        %s3298 = sand.u32 %s205, 1
        %s3299 = smul.addr %s3298, 64
        %s3300 = scalar_lea.vmem [#allocation8], %s3299
        // Predicated region
        $region86: #{network_forward.1} parent=73 // pred_check
          %p3301 = pneg %p163
        $region87: #{network_forward.1} parent=73 // pred_check_branch
          %3303 = sbr.rel (%p3301) target = $region89
        $region88: #{network_forward.1} parent=73 // pred_region
          %s3304 = smul.u32 8, %s25
          %s3305 = smul.addr %s3304, 8
          %s3306 = scalar_lea.vmem %s5, %s3305
          // Predicated region
          $region90: #{network_forward.1} parent=88 // pred_check
            _
          $region91: #{network_forward.1} parent=88 // pred_check_branch
            %3308 = sbr.rel (0) target = $region93
          $region92: #{network_forward.1} parent=88 // pred_region
            // Predicated region
            $region94: #{network_forward.1} parent=92 // pred_check
              _
            $region95: #{network_forward.1} parent=92 // pred_check_branch
              %3310 = sbr.rel (0) target = $region97
            $region96: #{network_forward.1} parent=92 // pred_region
              // Predicated region
              $region109: #{network_forward.1} parent=96 // pred_check
                _
              $region110: #{network_forward.1} parent=96 // pred_check_branch
                %3835 = sbr.rel (0) target = $region112
              $region111: #{network_forward.1} parent=96 // pred_region
                loop: start=0, step=1, limit=1
                $region113: #{network_forward.1} parent=111 // loop_pre_header
                  _
                $region114: #{network_forward.1} parent=111 // loop_header
                  %s3837 = sphi 0, %s3841
                  %p3838 = scmp.ge.s32.totalorder %s3837, 1
                  %s3842 = sphi %s3290, %s3290
                  %s3843 = sphi %s3306, %s3306
                $region115: #{network_forward.1} parent=111 // loop_header_branch
                  %3840 = sbr.rel (%p3838) target = $region119
                $region116: #{network_forward.1} parent=111 // loop_body
                  %v3844 = vld [vmem:[%s3842] sm:$0xff]
                  %3845 = vst [vmem:[%s3843] sm:$0xff] %v3844
                  %v3846 = vld [vmem:[%s3842 + $0x8] sm:$0xff]
                  %3847 = vst [vmem:[%s3843 + $0x8] sm:$0xff] %v3846
                  %v3848 = vld [vmem:[%s3842 + $0x10] sm:$0xff]
                  %3849 = vst [vmem:[%s3843 + $0x10] sm:$0xff] %v3848
                  %v3850 = vld [vmem:[%s3842 + $0x18] sm:$0xff]
                  %3851 = vst [vmem:[%s3843 + $0x18] sm:$0xff] %v3850
                  %v3852 = vld [vmem:[%s3842 + $0x20] sm:$0xff]
                  %3853 = vst [vmem:[%s3843 + $0x20] sm:$0xff] %v3852
                  %v3854 = vld [vmem:[%s3842 + $0x28] sm:$0xff]
                  %3855 = vst [vmem:[%s3843 + $0x28] sm:$0xff] %v3854
                  %v3856 = vld [vmem:[%s3842 + $0x30] sm:$0xff]
                  %3857 = vst [vmem:[%s3843 + $0x30] sm:$0xff] %v3856
                  %v3858 = vld [vmem:[%s3842 + $0x38] sm:$0xff]
                  %3859 = vst [vmem:[%s3843 + $0x38] sm:$0xff] %v3858
                  %v3860 = vld [vmem:[%s3842 + $0x40] sm:$0xff]
                  %3861 = vst [vmem:[%s3843 + $0x80] sm:$0xff] %v3860
                  %v3862 = vld [vmem:[%s3842 + $0x48] sm:$0xff]
                  %3863 = vst [vmem:[%s3843 + $0x88] sm:$0xff] %v3862
                  %v3864 = vld [vmem:[%s3842 + $0x50] sm:$0xff]
                  %3865 = vst [vmem:[%s3843 + $0x90] sm:$0xff] %v3864
                  %v3866 = vld [vmem:[%s3842 + $0x58] sm:$0xff]
                  %3867 = vst [vmem:[%s3843 + $0x98] sm:$0xff] %v3866
                  %v3868 = vld [vmem:[%s3842 + $0x60] sm:$0xff]
                  %3869 = vst [vmem:[%s3843 + $0xa0] sm:$0xff] %v3868
                  %v3870 = vld [vmem:[%s3842 + $0x68] sm:$0xff]
                  %3871 = vst [vmem:[%s3843 + $0xa8] sm:$0xff] %v3870
                  %v3872 = vld [vmem:[%s3842 + $0x70] sm:$0xff]
                  %3873 = vst [vmem:[%s3843 + $0xb0] sm:$0xff] %v3872
                  %v3874 = vld [vmem:[%s3842 + $0x78] sm:$0xff]
                  %3875 = vst [vmem:[%s3843 + $0xb8] sm:$0xff] %v3874
                  %v3876 = vld [vmem:[%s3842 + $0x80] sm:$0xff]
                  %3877 = vst [vmem:[%s3843 + $0x100] sm:$0xff] %v3876
                  %v3878 = vld [vmem:[%s3842 + $0x88] sm:$0xff]
                  %3879 = vst [vmem:[%s3843 + $0x108] sm:$0xff] %v3878
                  %v3880 = vld [vmem:[%s3842 + $0x90] sm:$0xff]
                  %3881 = vst [vmem:[%s3843 + $0x110] sm:$0xff] %v3880
                  %v3882 = vld [vmem:[%s3842 + $0x98] sm:$0xff]
                  %3883 = vst [vmem:[%s3843 + $0x118] sm:$0xff] %v3882
                  %v3884 = vld [vmem:[%s3842 + $0xa0] sm:$0xff]
                  %3885 = vst [vmem:[%s3843 + $0x120] sm:$0xff] %v3884
                  %v3886 = vld [vmem:[%s3842 + $0xa8] sm:$0xff]
                  %3887 = vst [vmem:[%s3843 + $0x128] sm:$0xff] %v3886
                  %v3888 = vld [vmem:[%s3842 + $0xb0] sm:$0xff]
                  %3889 = vst [vmem:[%s3843 + $0x130] sm:$0xff] %v3888
                  %v3890 = vld [vmem:[%s3842 + $0xb8] sm:$0xff]
                  %3891 = vst [vmem:[%s3843 + $0x138] sm:$0xff] %v3890
                  %v3892 = vld [vmem:[%s3842 + $0xc0] sm:$0xff]
                  %3893 = vst [vmem:[%s3843 + $0x180] sm:$0xff] %v3892
                  %v3894 = vld [vmem:[%s3842 + $0xc8] sm:$0xff]
                  %3895 = vst [vmem:[%s3843 + $0x188] sm:$0xff] %v3894
                  %v3896 = vld [vmem:[%s3842 + $0xd0] sm:$0xff]
                  %3897 = vst [vmem:[%s3843 + $0x190] sm:$0xff] %v3896
                  %v3898 = vld [vmem:[%s3842 + $0xd8] sm:$0xff]
                  %3899 = vst [vmem:[%s3843 + $0x198] sm:$0xff] %v3898
                  %v3900 = vld [vmem:[%s3842 + $0xe0] sm:$0xff]
                  %3901 = vst [vmem:[%s3843 + $0x1a0] sm:$0xff] %v3900
                  %v3902 = vld [vmem:[%s3842 + $0xe8] sm:$0xff]
                  %3903 = vst [vmem:[%s3843 + $0x1a8] sm:$0xff] %v3902
                  %v3904 = vld [vmem:[%s3842 + $0xf0] sm:$0xff]
                  %3905 = vst [vmem:[%s3843 + $0x1b0] sm:$0xff] %v3904
                  %v3906 = vld [vmem:[%s3842 + $0xf8] sm:$0xff]
                  %3907 = vst [vmem:[%s3843 + $0x1b8] sm:$0xff] %v3906
                  %v3908 = vld [vmem:[%s3842 + $0x100] sm:$0xff]
                  %3909 = vst [vmem:[%s3843 + $0x200] sm:$0xff] %v3908
                  %v3910 = vld [vmem:[%s3842 + $0x108] sm:$0xff]
                  %3911 = vst [vmem:[%s3843 + $0x208] sm:$0xff] %v3910
                  %v3912 = vld [vmem:[%s3842 + $0x110] sm:$0xff]
                  %3913 = vst [vmem:[%s3843 + $0x210] sm:$0xff] %v3912
                  %v3914 = vld [vmem:[%s3842 + $0x118] sm:$0xff]
                  %3915 = vst [vmem:[%s3843 + $0x218] sm:$0xff] %v3914
                  %v3916 = vld [vmem:[%s3842 + $0x120] sm:$0xff]
                  %3917 = vst [vmem:[%s3843 + $0x220] sm:$0xff] %v3916
                  %v3918 = vld [vmem:[%s3842 + $0x128] sm:$0xff]
                  %3919 = vst [vmem:[%s3843 + $0x228] sm:$0xff] %v3918
                  %v3920 = vld [vmem:[%s3842 + $0x130] sm:$0xff]
                  %3921 = vst [vmem:[%s3843 + $0x230] sm:$0xff] %v3920
                  %v3922 = vld [vmem:[%s3842 + $0x138] sm:$0xff]
                  %3923 = vst [vmem:[%s3843 + $0x238] sm:$0xff] %v3922
                  %v3924 = vld [vmem:[%s3842 + $0x140] sm:$0xff]
                  %3925 = vst [vmem:[%s3843 + $0x280] sm:$0xff] %v3924
                  %v3926 = vld [vmem:[%s3842 + $0x148] sm:$0xff]
                  %3927 = vst [vmem:[%s3843 + $0x288] sm:$0xff] %v3926
                  %v3928 = vld [vmem:[%s3842 + $0x150] sm:$0xff]
                  %3929 = vst [vmem:[%s3843 + $0x290] sm:$0xff] %v3928
                  %v3930 = vld [vmem:[%s3842 + $0x158] sm:$0xff]
                  %3931 = vst [vmem:[%s3843 + $0x298] sm:$0xff] %v3930
                  %v3932 = vld [vmem:[%s3842 + $0x160] sm:$0xff]
                  %3933 = vst [vmem:[%s3843 + $0x2a0] sm:$0xff] %v3932
                  %v3934 = vld [vmem:[%s3842 + $0x168] sm:$0xff]
                  %3935 = vst [vmem:[%s3843 + $0x2a8] sm:$0xff] %v3934
                  %v3936 = vld [vmem:[%s3842 + $0x170] sm:$0xff]
                  %3937 = vst [vmem:[%s3843 + $0x2b0] sm:$0xff] %v3936
                  %v3938 = vld [vmem:[%s3842 + $0x178] sm:$0xff]
                  %3939 = vst [vmem:[%s3843 + $0x2b8] sm:$0xff] %v3938
                  %v3940 = vld [vmem:[%s3842 + $0x180] sm:$0xff]
                  %3941 = vst [vmem:[%s3843 + $0x300] sm:$0xff] %v3940
                  %v3942 = vld [vmem:[%s3842 + $0x188] sm:$0xff]
                  %3943 = vst [vmem:[%s3843 + $0x308] sm:$0xff] %v3942
                  %v3944 = vld [vmem:[%s3842 + $0x190] sm:$0xff]
                  %3945 = vst [vmem:[%s3843 + $0x310] sm:$0xff] %v3944
                  %v3946 = vld [vmem:[%s3842 + $0x198] sm:$0xff]
                  %3947 = vst [vmem:[%s3843 + $0x318] sm:$0xff] %v3946
                  %v3948 = vld [vmem:[%s3842 + $0x1a0] sm:$0xff]
                  %3949 = vst [vmem:[%s3843 + $0x320] sm:$0xff] %v3948
                  %v3950 = vld [vmem:[%s3842 + $0x1a8] sm:$0xff]
                  %3951 = vst [vmem:[%s3843 + $0x328] sm:$0xff] %v3950
                  %v3952 = vld [vmem:[%s3842 + $0x1b0] sm:$0xff]
                  %3953 = vst [vmem:[%s3843 + $0x330] sm:$0xff] %v3952
                  %v3954 = vld [vmem:[%s3842 + $0x1b8] sm:$0xff]
                  %3955 = vst [vmem:[%s3843 + $0x338] sm:$0xff] %v3954
                  %v3956 = vld [vmem:[%s3842 + $0x1c0] sm:$0xff]
                  %3957 = vst [vmem:[%s3843 + $0x380] sm:$0xff] %v3956
                  %v3958 = vld [vmem:[%s3842 + $0x1c8] sm:$0xff]
                  %3959 = vst [vmem:[%s3843 + $0x388] sm:$0xff] %v3958
                  %v3960 = vld [vmem:[%s3842 + $0x1d0] sm:$0xff]
                  %3961 = vst [vmem:[%s3843 + $0x390] sm:$0xff] %v3960
                  %v3962 = vld [vmem:[%s3842 + $0x1d8] sm:$0xff]
                  %3963 = vst [vmem:[%s3843 + $0x398] sm:$0xff] %v3962
                  %v3964 = vld [vmem:[%s3842 + $0x1e0] sm:$0xff]
                  %3965 = vst [vmem:[%s3843 + $0x3a0] sm:$0xff] %v3964
                  %v3966 = vld [vmem:[%s3842 + $0x1e8] sm:$0xff]
                  %3967 = vst [vmem:[%s3843 + $0x3a8] sm:$0xff] %v3966
                  %v3968 = vld [vmem:[%s3842 + $0x1f0] sm:$0xff]
                  %3969 = vst [vmem:[%s3843 + $0x3b0] sm:$0xff] %v3968
                  %v3970 = vld [vmem:[%s3842 + $0x1f8] sm:$0xff]
                  %3971 = vst [vmem:[%s3843 + $0x3b8] sm:$0xff] %v3970
                  %v3972 = vld [vmem:[%s3842 + $0x200] sm:$0xff]
                  %3973 = vst [vmem:[%s3843 + $0x400] sm:$0xff] %v3972
                  %v3974 = vld [vmem:[%s3842 + $0x208] sm:$0xff]
                  %3975 = vst [vmem:[%s3843 + $0x408] sm:$0xff] %v3974
                  %v3976 = vld [vmem:[%s3842 + $0x210] sm:$0xff]
                  %3977 = vst [vmem:[%s3843 + $0x410] sm:$0xff] %v3976
                  %v3978 = vld [vmem:[%s3842 + $0x218] sm:$0xff]
                  %3979 = vst [vmem:[%s3843 + $0x418] sm:$0xff] %v3978
                  %v3980 = vld [vmem:[%s3842 + $0x220] sm:$0xff]
                  %3981 = vst [vmem:[%s3843 + $0x420] sm:$0xff] %v3980
                  %v3982 = vld [vmem:[%s3842 + $0x228] sm:$0xff]
                  %3983 = vst [vmem:[%s3843 + $0x428] sm:$0xff] %v3982
                  %v3984 = vld [vmem:[%s3842 + $0x230] sm:$0xff]
                  %3985 = vst [vmem:[%s3843 + $0x430] sm:$0xff] %v3984
                  %v3986 = vld [vmem:[%s3842 + $0x238] sm:$0xff]
                  %3987 = vst [vmem:[%s3843 + $0x438] sm:$0xff] %v3986
                  %v3988 = vld [vmem:[%s3842 + $0x240] sm:$0xff]
                  %3989 = vst [vmem:[%s3843 + $0x480] sm:$0xff] %v3988
                  %v3990 = vld [vmem:[%s3842 + $0x248] sm:$0xff]
                  %3991 = vst [vmem:[%s3843 + $0x488] sm:$0xff] %v3990
                  %v3992 = vld [vmem:[%s3842 + $0x250] sm:$0xff]
                  %3993 = vst [vmem:[%s3843 + $0x490] sm:$0xff] %v3992
                  %v3994 = vld [vmem:[%s3842 + $0x258] sm:$0xff]
                  %3995 = vst [vmem:[%s3843 + $0x498] sm:$0xff] %v3994
                  %v3996 = vld [vmem:[%s3842 + $0x260] sm:$0xff]
                  %3997 = vst [vmem:[%s3843 + $0x4a0] sm:$0xff] %v3996
                  %v3998 = vld [vmem:[%s3842 + $0x268] sm:$0xff]
                  %3999 = vst [vmem:[%s3843 + $0x4a8] sm:$0xff] %v3998
                  %v4000 = vld [vmem:[%s3842 + $0x270] sm:$0xff]
                  %4001 = vst [vmem:[%s3843 + $0x4b0] sm:$0xff] %v4000
                  %v4002 = vld [vmem:[%s3842 + $0x278] sm:$0xff]
                  %4003 = vst [vmem:[%s3843 + $0x4b8] sm:$0xff] %v4002
                  %v4004 = vld [vmem:[%s3842 + $0x280] sm:$0xff]
                  %4005 = vst [vmem:[%s3843 + $0x500] sm:$0xff] %v4004
                  %v4006 = vld [vmem:[%s3842 + $0x288] sm:$0xff]
                  %4007 = vst [vmem:[%s3843 + $0x508] sm:$0xff] %v4006
                  %v4008 = vld [vmem:[%s3842 + $0x290] sm:$0xff]
                  %4009 = vst [vmem:[%s3843 + $0x510] sm:$0xff] %v4008
                  %v4010 = vld [vmem:[%s3842 + $0x298] sm:$0xff]
                  %4011 = vst [vmem:[%s3843 + $0x518] sm:$0xff] %v4010
                  %v4012 = vld [vmem:[%s3842 + $0x2a0] sm:$0xff]
                  %4013 = vst [vmem:[%s3843 + $0x520] sm:$0xff] %v4012
                  %v4014 = vld [vmem:[%s3842 + $0x2a8] sm:$0xff]
                  %4015 = vst [vmem:[%s3843 + $0x528] sm:$0xff] %v4014
                  %v4016 = vld [vmem:[%s3842 + $0x2b0] sm:$0xff]
                  %4017 = vst [vmem:[%s3843 + $0x530] sm:$0xff] %v4016
                  %v4018 = vld [vmem:[%s3842 + $0x2b8] sm:$0xff]
                  %4019 = vst [vmem:[%s3843 + $0x538] sm:$0xff] %v4018
                  %v4020 = vld [vmem:[%s3842 + $0x2c0] sm:$0xff]
                  %4021 = vst [vmem:[%s3843 + $0x580] sm:$0xff] %v4020
                  %v4022 = vld [vmem:[%s3842 + $0x2c8] sm:$0xff]
                  %4023 = vst [vmem:[%s3843 + $0x588] sm:$0xff] %v4022
                  %v4024 = vld [vmem:[%s3842 + $0x2d0] sm:$0xff]
                  %4025 = vst [vmem:[%s3843 + $0x590] sm:$0xff] %v4024
                  %v4026 = vld [vmem:[%s3842 + $0x2d8] sm:$0xff]
                  %4027 = vst [vmem:[%s3843 + $0x598] sm:$0xff] %v4026
                  %v4028 = vld [vmem:[%s3842 + $0x2e0] sm:$0xff]
                  %4029 = vst [vmem:[%s3843 + $0x5a0] sm:$0xff] %v4028
                  %v4030 = vld [vmem:[%s3842 + $0x2e8] sm:$0xff]
                  %4031 = vst [vmem:[%s3843 + $0x5a8] sm:$0xff] %v4030
                  %v4032 = vld [vmem:[%s3842 + $0x2f0] sm:$0xff]
                  %4033 = vst [vmem:[%s3843 + $0x5b0] sm:$0xff] %v4032
                  %v4034 = vld [vmem:[%s3842 + $0x2f8] sm:$0xff]
                  %4035 = vst [vmem:[%s3843 + $0x5b8] sm:$0xff] %v4034
                  %v4036 = vld [vmem:[%s3842 + $0x300] sm:$0xff]
                  %4037 = vst [vmem:[%s3843 + $0x600] sm:$0xff] %v4036
                  %v4038 = vld [vmem:[%s3842 + $0x308] sm:$0xff]
                  %4039 = vst [vmem:[%s3843 + $0x608] sm:$0xff] %v4038
                  %v4040 = vld [vmem:[%s3842 + $0x310] sm:$0xff]
                  %4041 = vst [vmem:[%s3843 + $0x610] sm:$0xff] %v4040
                  %v4042 = vld [vmem:[%s3842 + $0x318] sm:$0xff]
                  %4043 = vst [vmem:[%s3843 + $0x618] sm:$0xff] %v4042
                  %v4044 = vld [vmem:[%s3842 + $0x320] sm:$0xff]
                  %4045 = vst [vmem:[%s3843 + $0x620] sm:$0xff] %v4044
                  %v4046 = vld [vmem:[%s3842 + $0x328] sm:$0xff]
                  %4047 = vst [vmem:[%s3843 + $0x628] sm:$0xff] %v4046
                  %v4048 = vld [vmem:[%s3842 + $0x330] sm:$0xff]
                  %4049 = vst [vmem:[%s3843 + $0x630] sm:$0xff] %v4048
                  %v4050 = vld [vmem:[%s3842 + $0x338] sm:$0xff]
                  %4051 = vst [vmem:[%s3843 + $0x638] sm:$0xff] %v4050
                  %v4052 = vld [vmem:[%s3842 + $0x340] sm:$0xff]
                  %4053 = vst [vmem:[%s3843 + $0x680] sm:$0xff] %v4052
                  %v4054 = vld [vmem:[%s3842 + $0x348] sm:$0xff]
                  %4055 = vst [vmem:[%s3843 + $0x688] sm:$0xff] %v4054
                  %v4056 = vld [vmem:[%s3842 + $0x350] sm:$0xff]
                  %4057 = vst [vmem:[%s3843 + $0x690] sm:$0xff] %v4056
                  %v4058 = vld [vmem:[%s3842 + $0x358] sm:$0xff]
                  %4059 = vst [vmem:[%s3843 + $0x698] sm:$0xff] %v4058
                  %v4060 = vld [vmem:[%s3842 + $0x360] sm:$0xff]
                  %4061 = vst [vmem:[%s3843 + $0x6a0] sm:$0xff] %v4060
                  %v4062 = vld [vmem:[%s3842 + $0x368] sm:$0xff]
                  %4063 = vst [vmem:[%s3843 + $0x6a8] sm:$0xff] %v4062
                  %v4064 = vld [vmem:[%s3842 + $0x370] sm:$0xff]
                  %4065 = vst [vmem:[%s3843 + $0x6b0] sm:$0xff] %v4064
                  %v4066 = vld [vmem:[%s3842 + $0x378] sm:$0xff]
                  %4067 = vst [vmem:[%s3843 + $0x6b8] sm:$0xff] %v4066
                  %v4068 = vld [vmem:[%s3842 + $0x380] sm:$0xff]
                  %4069 = vst [vmem:[%s3843 + $0x700] sm:$0xff] %v4068
                  %v4070 = vld [vmem:[%s3842 + $0x388] sm:$0xff]
                  %4071 = vst [vmem:[%s3843 + $0x708] sm:$0xff] %v4070
                  %v4072 = vld [vmem:[%s3842 + $0x390] sm:$0xff]
                  %4073 = vst [vmem:[%s3843 + $0x710] sm:$0xff] %v4072
                  %v4074 = vld [vmem:[%s3842 + $0x398] sm:$0xff]
                  %4075 = vst [vmem:[%s3843 + $0x718] sm:$0xff] %v4074
                  %v4076 = vld [vmem:[%s3842 + $0x3a0] sm:$0xff]
                  %4077 = vst [vmem:[%s3843 + $0x720] sm:$0xff] %v4076
                  %v4078 = vld [vmem:[%s3842 + $0x3a8] sm:$0xff]
                  %4079 = vst [vmem:[%s3843 + $0x728] sm:$0xff] %v4078
                  %v4080 = vld [vmem:[%s3842 + $0x3b0] sm:$0xff]
                  %4081 = vst [vmem:[%s3843 + $0x730] sm:$0xff] %v4080
                  %v4082 = vld [vmem:[%s3842 + $0x3b8] sm:$0xff]
                  %4083 = vst [vmem:[%s3843 + $0x738] sm:$0xff] %v4082
                  %v4084 = vld [vmem:[%s3842 + $0x3c0] sm:$0xff]
                  %4085 = vst [vmem:[%s3843 + $0x780] sm:$0xff] %v4084
                  %v4086 = vld [vmem:[%s3842 + $0x3c8] sm:$0xff]
                  %4087 = vst [vmem:[%s3843 + $0x788] sm:$0xff] %v4086
                  %v4088 = vld [vmem:[%s3842 + $0x3d0] sm:$0xff]
                  %4089 = vst [vmem:[%s3843 + $0x790] sm:$0xff] %v4088
                  %v4090 = vld [vmem:[%s3842 + $0x3d8] sm:$0xff]
                  %4091 = vst [vmem:[%s3843 + $0x798] sm:$0xff] %v4090
                  %v4092 = vld [vmem:[%s3842 + $0x3e0] sm:$0xff]
                  %4093 = vst [vmem:[%s3843 + $0x7a0] sm:$0xff] %v4092
                  %v4094 = vld [vmem:[%s3842 + $0x3e8] sm:$0xff]
                  %4095 = vst [vmem:[%s3843 + $0x7a8] sm:$0xff] %v4094
                  %v4096 = vld [vmem:[%s3842 + $0x3f0] sm:$0xff]
                  %4097 = vst [vmem:[%s3843 + $0x7b0] sm:$0xff] %v4096
                  %v4098 = vld [vmem:[%s3842 + $0x3f8] sm:$0xff]
                  %4099 = vst [vmem:[%s3843 + $0x7b8] sm:$0xff] %v4098
                  %v4100 = vld [vmem:[%s3842 + $0x400] sm:$0xff]
                  %4101 = vst [vmem:[%s3843 + $0x800] sm:$0xff] %v4100
                  %v4102 = vld [vmem:[%s3842 + $0x408] sm:$0xff]
                  %4103 = vst [vmem:[%s3843 + $0x808] sm:$0xff] %v4102
                  %v4104 = vld [vmem:[%s3842 + $0x410] sm:$0xff]
                  %4105 = vst [vmem:[%s3843 + $0x810] sm:$0xff] %v4104
                  %v4106 = vld [vmem:[%s3842 + $0x418] sm:$0xff]
                  %4107 = vst [vmem:[%s3843 + $0x818] sm:$0xff] %v4106
                  %v4108 = vld [vmem:[%s3842 + $0x420] sm:$0xff]
                  %4109 = vst [vmem:[%s3843 + $0x820] sm:$0xff] %v4108
                  %v4110 = vld [vmem:[%s3842 + $0x428] sm:$0xff]
                  %4111 = vst [vmem:[%s3843 + $0x828] sm:$0xff] %v4110
                  %v4112 = vld [vmem:[%s3842 + $0x430] sm:$0xff]
                  %4113 = vst [vmem:[%s3843 + $0x830] sm:$0xff] %v4112
                  %v4114 = vld [vmem:[%s3842 + $0x438] sm:$0xff]
                  %4115 = vst [vmem:[%s3843 + $0x838] sm:$0xff] %v4114
                  %v4116 = vld [vmem:[%s3842 + $0x440] sm:$0xff]
                  %4117 = vst [vmem:[%s3843 + $0x880] sm:$0xff] %v4116
                  %v4118 = vld [vmem:[%s3842 + $0x448] sm:$0xff]
                  %4119 = vst [vmem:[%s3843 + $0x888] sm:$0xff] %v4118
                  %v4120 = vld [vmem:[%s3842 + $0x450] sm:$0xff]
                  %4121 = vst [vmem:[%s3843 + $0x890] sm:$0xff] %v4120
                  %v4122 = vld [vmem:[%s3842 + $0x458] sm:$0xff]
                  %4123 = vst [vmem:[%s3843 + $0x898] sm:$0xff] %v4122
                  %v4124 = vld [vmem:[%s3842 + $0x460] sm:$0xff]
                  %4125 = vst [vmem:[%s3843 + $0x8a0] sm:$0xff] %v4124
                  %v4126 = vld [vmem:[%s3842 + $0x468] sm:$0xff]
                  %4127 = vst [vmem:[%s3843 + $0x8a8] sm:$0xff] %v4126
                  %v4128 = vld [vmem:[%s3842 + $0x470] sm:$0xff]
                  %4129 = vst [vmem:[%s3843 + $0x8b0] sm:$0xff] %v4128
                  %v4130 = vld [vmem:[%s3842 + $0x478] sm:$0xff]
                  %4131 = vst [vmem:[%s3843 + $0x8b8] sm:$0xff] %v4130
                  %v4132 = vld [vmem:[%s3842 + $0x480] sm:$0xff]
                  %4133 = vst [vmem:[%s3843 + $0x900] sm:$0xff] %v4132
                  %v4134 = vld [vmem:[%s3842 + $0x488] sm:$0xff]
                  %4135 = vst [vmem:[%s3843 + $0x908] sm:$0xff] %v4134
                  %v4136 = vld [vmem:[%s3842 + $0x490] sm:$0xff]
                  %4137 = vst [vmem:[%s3843 + $0x910] sm:$0xff] %v4136
                  %v4138 = vld [vmem:[%s3842 + $0x498] sm:$0xff]
                  %4139 = vst [vmem:[%s3843 + $0x918] sm:$0xff] %v4138
                  %v4140 = vld [vmem:[%s3842 + $0x4a0] sm:$0xff]
                  %4141 = vst [vmem:[%s3843 + $0x920] sm:$0xff] %v4140
                  %v4142 = vld [vmem:[%s3842 + $0x4a8] sm:$0xff]
                  %4143 = vst [vmem:[%s3843 + $0x928] sm:$0xff] %v4142
                  %v4144 = vld [vmem:[%s3842 + $0x4b0] sm:$0xff]
                  %4145 = vst [vmem:[%s3843 + $0x930] sm:$0xff] %v4144
                  %v4146 = vld [vmem:[%s3842 + $0x4b8] sm:$0xff]
                  %4147 = vst [vmem:[%s3843 + $0x938] sm:$0xff] %v4146
                  %v4148 = vld [vmem:[%s3842 + $0x4c0] sm:$0xff]
                  %4149 = vst [vmem:[%s3843 + $0x980] sm:$0xff] %v4148
                  %v4150 = vld [vmem:[%s3842 + $0x4c8] sm:$0xff]
                  %4151 = vst [vmem:[%s3843 + $0x988] sm:$0xff] %v4150
                  %v4152 = vld [vmem:[%s3842 + $0x4d0] sm:$0xff]
                  %4153 = vst [vmem:[%s3843 + $0x990] sm:$0xff] %v4152
                  %v4154 = vld [vmem:[%s3842 + $0x4d8] sm:$0xff]
                  %4155 = vst [vmem:[%s3843 + $0x998] sm:$0xff] %v4154
                  %v4156 = vld [vmem:[%s3842 + $0x4e0] sm:$0xff]
                  %4157 = vst [vmem:[%s3843 + $0x9a0] sm:$0xff] %v4156
                  %v4158 = vld [vmem:[%s3842 + $0x4e8] sm:$0xff]
                  %4159 = vst [vmem:[%s3843 + $0x9a8] sm:$0xff] %v4158
                  %v4160 = vld [vmem:[%s3842 + $0x4f0] sm:$0xff]
                  %4161 = vst [vmem:[%s3843 + $0x9b0] sm:$0xff] %v4160
                  %v4162 = vld [vmem:[%s3842 + $0x4f8] sm:$0xff]
                  %4163 = vst [vmem:[%s3843 + $0x9b8] sm:$0xff] %v4162
                  %v4164 = vld [vmem:[%s3842 + $0x500] sm:$0xff]
                  %4165 = vst [vmem:[%s3843 + $0xa00] sm:$0xff] %v4164
                  %v4166 = vld [vmem:[%s3842 + $0x508] sm:$0xff]
                  %4167 = vst [vmem:[%s3843 + $0xa08] sm:$0xff] %v4166
                  %v4168 = vld [vmem:[%s3842 + $0x510] sm:$0xff]
                  %4169 = vst [vmem:[%s3843 + $0xa10] sm:$0xff] %v4168
                  %v4170 = vld [vmem:[%s3842 + $0x518] sm:$0xff]
                  %4171 = vst [vmem:[%s3843 + $0xa18] sm:$0xff] %v4170
                  %v4172 = vld [vmem:[%s3842 + $0x520] sm:$0xff]
                  %4173 = vst [vmem:[%s3843 + $0xa20] sm:$0xff] %v4172
                  %v4174 = vld [vmem:[%s3842 + $0x528] sm:$0xff]
                  %4175 = vst [vmem:[%s3843 + $0xa28] sm:$0xff] %v4174
                  %v4176 = vld [vmem:[%s3842 + $0x530] sm:$0xff]
                  %4177 = vst [vmem:[%s3843 + $0xa30] sm:$0xff] %v4176
                  %v4178 = vld [vmem:[%s3842 + $0x538] sm:$0xff]
                  %4179 = vst [vmem:[%s3843 + $0xa38] sm:$0xff] %v4178
                  %v4180 = vld [vmem:[%s3842 + $0x540] sm:$0xff]
                  %4181 = vst [vmem:[%s3843 + $0xa80] sm:$0xff] %v4180
                  %v4182 = vld [vmem:[%s3842 + $0x548] sm:$0xff]
                  %4183 = vst [vmem:[%s3843 + $0xa88] sm:$0xff] %v4182
                  %v4184 = vld [vmem:[%s3842 + $0x550] sm:$0xff]
                  %4185 = vst [vmem:[%s3843 + $0xa90] sm:$0xff] %v4184
                  %v4186 = vld [vmem:[%s3842 + $0x558] sm:$0xff]
                  %4187 = vst [vmem:[%s3843 + $0xa98] sm:$0xff] %v4186
                  %v4188 = vld [vmem:[%s3842 + $0x560] sm:$0xff]
                  %4189 = vst [vmem:[%s3843 + $0xaa0] sm:$0xff] %v4188
                  %v4190 = vld [vmem:[%s3842 + $0x568] sm:$0xff]
                  %4191 = vst [vmem:[%s3843 + $0xaa8] sm:$0xff] %v4190
                  %v4192 = vld [vmem:[%s3842 + $0x570] sm:$0xff]
                  %4193 = vst [vmem:[%s3843 + $0xab0] sm:$0xff] %v4192
                  %v4194 = vld [vmem:[%s3842 + $0x578] sm:$0xff]
                  %4195 = vst [vmem:[%s3843 + $0xab8] sm:$0xff] %v4194
                  %v4196 = vld [vmem:[%s3842 + $0x580] sm:$0xff]
                  %4197 = vst [vmem:[%s3843 + $0xb00] sm:$0xff] %v4196
                  %v4198 = vld [vmem:[%s3842 + $0x588] sm:$0xff]
                  %4199 = vst [vmem:[%s3843 + $0xb08] sm:$0xff] %v4198
                  %v4200 = vld [vmem:[%s3842 + $0x590] sm:$0xff]
                  %4201 = vst [vmem:[%s3843 + $0xb10] sm:$0xff] %v4200
                  %v4202 = vld [vmem:[%s3842 + $0x598] sm:$0xff]
                  %4203 = vst [vmem:[%s3843 + $0xb18] sm:$0xff] %v4202
                  %v4204 = vld [vmem:[%s3842 + $0x5a0] sm:$0xff]
                  %4205 = vst [vmem:[%s3843 + $0xb20] sm:$0xff] %v4204
                  %v4206 = vld [vmem:[%s3842 + $0x5a8] sm:$0xff]
                  %4207 = vst [vmem:[%s3843 + $0xb28] sm:$0xff] %v4206
                  %v4208 = vld [vmem:[%s3842 + $0x5b0] sm:$0xff]
                  %4209 = vst [vmem:[%s3843 + $0xb30] sm:$0xff] %v4208
                  %v4210 = vld [vmem:[%s3842 + $0x5b8] sm:$0xff]
                  %4211 = vst [vmem:[%s3843 + $0xb38] sm:$0xff] %v4210
                  %v4212 = vld [vmem:[%s3842 + $0x5c0] sm:$0xff]
                  %4213 = vst [vmem:[%s3843 + $0xb80] sm:$0xff] %v4212
                  %v4214 = vld [vmem:[%s3842 + $0x5c8] sm:$0xff]
                  %4215 = vst [vmem:[%s3843 + $0xb88] sm:$0xff] %v4214
                  %v4216 = vld [vmem:[%s3842 + $0x5d0] sm:$0xff]
                  %4217 = vst [vmem:[%s3843 + $0xb90] sm:$0xff] %v4216
                  %v4218 = vld [vmem:[%s3842 + $0x5d8] sm:$0xff]
                  %4219 = vst [vmem:[%s3843 + $0xb98] sm:$0xff] %v4218
                  %v4220 = vld [vmem:[%s3842 + $0x5e0] sm:$0xff]
                  %4221 = vst [vmem:[%s3843 + $0xba0] sm:$0xff] %v4220
                  %v4222 = vld [vmem:[%s3842 + $0x5e8] sm:$0xff]
                  %4223 = vst [vmem:[%s3843 + $0xba8] sm:$0xff] %v4222
                  %v4224 = vld [vmem:[%s3842 + $0x5f0] sm:$0xff]
                  %4225 = vst [vmem:[%s3843 + $0xbb0] sm:$0xff] %v4224
                  %v4226 = vld [vmem:[%s3842 + $0x5f8] sm:$0xff]
                  %4227 = vst [vmem:[%s3843 + $0xbb8] sm:$0xff] %v4226
                  %v4228 = vld [vmem:[%s3842 + $0x600] sm:$0xff]
                  %4229 = vst [vmem:[%s3843 + $0xc00] sm:$0xff] %v4228
                  %v4230 = vld [vmem:[%s3842 + $0x608] sm:$0xff]
                  %4231 = vst [vmem:[%s3843 + $0xc08] sm:$0xff] %v4230
                  %v4232 = vld [vmem:[%s3842 + $0x610] sm:$0xff]
                  %4233 = vst [vmem:[%s3843 + $0xc10] sm:$0xff] %v4232
                  %v4234 = vld [vmem:[%s3842 + $0x618] sm:$0xff]
                  %4235 = vst [vmem:[%s3843 + $0xc18] sm:$0xff] %v4234
                  %v4236 = vld [vmem:[%s3842 + $0x620] sm:$0xff]
                  %4237 = vst [vmem:[%s3843 + $0xc20] sm:$0xff] %v4236
                  %v4238 = vld [vmem:[%s3842 + $0x628] sm:$0xff]
                  %4239 = vst [vmem:[%s3843 + $0xc28] sm:$0xff] %v4238
                  %v4240 = vld [vmem:[%s3842 + $0x630] sm:$0xff]
                  %4241 = vst [vmem:[%s3843 + $0xc30] sm:$0xff] %v4240
                  %v4242 = vld [vmem:[%s3842 + $0x638] sm:$0xff]
                  %4243 = vst [vmem:[%s3843 + $0xc38] sm:$0xff] %v4242
                  %v4244 = vld [vmem:[%s3842 + $0x640] sm:$0xff]
                  %4245 = vst [vmem:[%s3843 + $0xc80] sm:$0xff] %v4244
                  %v4246 = vld [vmem:[%s3842 + $0x648] sm:$0xff]
                  %4247 = vst [vmem:[%s3843 + $0xc88] sm:$0xff] %v4246
                  %v4248 = vld [vmem:[%s3842 + $0x650] sm:$0xff]
                  %4249 = vst [vmem:[%s3843 + $0xc90] sm:$0xff] %v4248
                  %v4250 = vld [vmem:[%s3842 + $0x658] sm:$0xff]
                  %4251 = vst [vmem:[%s3843 + $0xc98] sm:$0xff] %v4250
                  %v4252 = vld [vmem:[%s3842 + $0x660] sm:$0xff]
                  %4253 = vst [vmem:[%s3843 + $0xca0] sm:$0xff] %v4252
                  %v4254 = vld [vmem:[%s3842 + $0x668] sm:$0xff]
                  %4255 = vst [vmem:[%s3843 + $0xca8] sm:$0xff] %v4254
                  %v4256 = vld [vmem:[%s3842 + $0x670] sm:$0xff]
                  %4257 = vst [vmem:[%s3843 + $0xcb0] sm:$0xff] %v4256
                  %v4258 = vld [vmem:[%s3842 + $0x678] sm:$0xff]
                  %4259 = vst [vmem:[%s3843 + $0xcb8] sm:$0xff] %v4258
                  %v4260 = vld [vmem:[%s3842 + $0x680] sm:$0xff]
                  %4261 = vst [vmem:[%s3843 + $0xd00] sm:$0xff] %v4260
                  %v4262 = vld [vmem:[%s3842 + $0x688] sm:$0xff]
                  %4263 = vst [vmem:[%s3843 + $0xd08] sm:$0xff] %v4262
                  %v4264 = vld [vmem:[%s3842 + $0x690] sm:$0xff]
                  %4265 = vst [vmem:[%s3843 + $0xd10] sm:$0xff] %v4264
                  %v4266 = vld [vmem:[%s3842 + $0x698] sm:$0xff]
                  %4267 = vst [vmem:[%s3843 + $0xd18] sm:$0xff] %v4266
                  %v4268 = vld [vmem:[%s3842 + $0x6a0] sm:$0xff]
                  %4269 = vst [vmem:[%s3843 + $0xd20] sm:$0xff] %v4268
                  %v4270 = vld [vmem:[%s3842 + $0x6a8] sm:$0xff]
                  %4271 = vst [vmem:[%s3843 + $0xd28] sm:$0xff] %v4270
                  %v4272 = vld [vmem:[%s3842 + $0x6b0] sm:$0xff]
                  %4273 = vst [vmem:[%s3843 + $0xd30] sm:$0xff] %v4272
                  %v4274 = vld [vmem:[%s3842 + $0x6b8] sm:$0xff]
                  %4275 = vst [vmem:[%s3843 + $0xd38] sm:$0xff] %v4274
                  %v4276 = vld [vmem:[%s3842 + $0x6c0] sm:$0xff]
                  %4277 = vst [vmem:[%s3843 + $0xd80] sm:$0xff] %v4276
                  %v4278 = vld [vmem:[%s3842 + $0x6c8] sm:$0xff]
                  %4279 = vst [vmem:[%s3843 + $0xd88] sm:$0xff] %v4278
                  %v4280 = vld [vmem:[%s3842 + $0x6d0] sm:$0xff]
                  %4281 = vst [vmem:[%s3843 + $0xd90] sm:$0xff] %v4280
                  %v4282 = vld [vmem:[%s3842 + $0x6d8] sm:$0xff]
                  %4283 = vst [vmem:[%s3843 + $0xd98] sm:$0xff] %v4282
                  %v4284 = vld [vmem:[%s3842 + $0x6e0] sm:$0xff]
                  %4285 = vst [vmem:[%s3843 + $0xda0] sm:$0xff] %v4284
                  %v4286 = vld [vmem:[%s3842 + $0x6e8] sm:$0xff]
                  %4287 = vst [vmem:[%s3843 + $0xda8] sm:$0xff] %v4286
                  %v4288 = vld [vmem:[%s3842 + $0x6f0] sm:$0xff]
                  %4289 = vst [vmem:[%s3843 + $0xdb0] sm:$0xff] %v4288
                  %v4290 = vld [vmem:[%s3842 + $0x6f8] sm:$0xff]
                  %4291 = vst [vmem:[%s3843 + $0xdb8] sm:$0xff] %v4290
                  %v4292 = vld [vmem:[%s3842 + $0x700] sm:$0xff]
                  %4293 = vst [vmem:[%s3843 + $0xe00] sm:$0xff] %v4292
                  %v4294 = vld [vmem:[%s3842 + $0x708] sm:$0xff]
                  %4295 = vst [vmem:[%s3843 + $0xe08] sm:$0xff] %v4294
                  %v4296 = vld [vmem:[%s3842 + $0x710] sm:$0xff]
                  %4297 = vst [vmem:[%s3843 + $0xe10] sm:$0xff] %v4296
                  %v4298 = vld [vmem:[%s3842 + $0x718] sm:$0xff]
                  %4299 = vst [vmem:[%s3843 + $0xe18] sm:$0xff] %v4298
                  %v4300 = vld [vmem:[%s3842 + $0x720] sm:$0xff]
                  %4301 = vst [vmem:[%s3843 + $0xe20] sm:$0xff] %v4300
                  %v4302 = vld [vmem:[%s3842 + $0x728] sm:$0xff]
                  %4303 = vst [vmem:[%s3843 + $0xe28] sm:$0xff] %v4302
                  %v4304 = vld [vmem:[%s3842 + $0x730] sm:$0xff]
                  %4305 = vst [vmem:[%s3843 + $0xe30] sm:$0xff] %v4304
                  %v4306 = vld [vmem:[%s3842 + $0x738] sm:$0xff]
                  %4307 = vst [vmem:[%s3843 + $0xe38] sm:$0xff] %v4306
                  %v4308 = vld [vmem:[%s3842 + $0x740] sm:$0xff]
                  %4309 = vst [vmem:[%s3843 + $0xe80] sm:$0xff] %v4308
                  %v4310 = vld [vmem:[%s3842 + $0x748] sm:$0xff]
                  %4311 = vst [vmem:[%s3843 + $0xe88] sm:$0xff] %v4310
                  %v4312 = vld [vmem:[%s3842 + $0x750] sm:$0xff]
                  %4313 = vst [vmem:[%s3843 + $0xe90] sm:$0xff] %v4312
                  %v4314 = vld [vmem:[%s3842 + $0x758] sm:$0xff]
                  %4315 = vst [vmem:[%s3843 + $0xe98] sm:$0xff] %v4314
                  %v4316 = vld [vmem:[%s3842 + $0x760] sm:$0xff]
                  %4317 = vst [vmem:[%s3843 + $0xea0] sm:$0xff] %v4316
                  %v4318 = vld [vmem:[%s3842 + $0x768] sm:$0xff]
                  %4319 = vst [vmem:[%s3843 + $0xea8] sm:$0xff] %v4318
                  %v4320 = vld [vmem:[%s3842 + $0x770] sm:$0xff]
                  %4321 = vst [vmem:[%s3843 + $0xeb0] sm:$0xff] %v4320
                  %v4322 = vld [vmem:[%s3842 + $0x778] sm:$0xff]
                  %4323 = vst [vmem:[%s3843 + $0xeb8] sm:$0xff] %v4322
                  %v4324 = vld [vmem:[%s3842 + $0x780] sm:$0xff]
                  %4325 = vst [vmem:[%s3843 + $0xf00] sm:$0xff] %v4324
                  %v4326 = vld [vmem:[%s3842 + $0x788] sm:$0xff]
                  %4327 = vst [vmem:[%s3843 + $0xf08] sm:$0xff] %v4326
                  %v4328 = vld [vmem:[%s3842 + $0x790] sm:$0xff]
                  %4329 = vst [vmem:[%s3843 + $0xf10] sm:$0xff] %v4328
                  %v4330 = vld [vmem:[%s3842 + $0x798] sm:$0xff]
                  %4331 = vst [vmem:[%s3843 + $0xf18] sm:$0xff] %v4330
                  %v4332 = vld [vmem:[%s3842 + $0x7a0] sm:$0xff]
                  %4333 = vst [vmem:[%s3843 + $0xf20] sm:$0xff] %v4332
                  %v4334 = vld [vmem:[%s3842 + $0x7a8] sm:$0xff]
                  %4335 = vst [vmem:[%s3843 + $0xf28] sm:$0xff] %v4334
                  %v4336 = vld [vmem:[%s3842 + $0x7b0] sm:$0xff]
                  %4337 = vst [vmem:[%s3843 + $0xf30] sm:$0xff] %v4336
                  %v4338 = vld [vmem:[%s3842 + $0x7b8] sm:$0xff]
                  %4339 = vst [vmem:[%s3843 + $0xf38] sm:$0xff] %v4338
                  %v4340 = vld [vmem:[%s3842 + $0x7c0] sm:$0xff]
                  %4341 = vst [vmem:[%s3843 + $0xf80] sm:$0xff] %v4340
                  %v4342 = vld [vmem:[%s3842 + $0x7c8] sm:$0xff]
                  %4343 = vst [vmem:[%s3843 + $0xf88] sm:$0xff] %v4342
                  %v4344 = vld [vmem:[%s3842 + $0x7d0] sm:$0xff]
                  %4345 = vst [vmem:[%s3843 + $0xf90] sm:$0xff] %v4344
                  %v4346 = vld [vmem:[%s3842 + $0x7d8] sm:$0xff]
                  %4347 = vst [vmem:[%s3843 + $0xf98] sm:$0xff] %v4346
                  %v4348 = vld [vmem:[%s3842 + $0x7e0] sm:$0xff]
                  %4349 = vst [vmem:[%s3843 + $0xfa0] sm:$0xff] %v4348
                  %v4350 = vld [vmem:[%s3842 + $0x7e8] sm:$0xff]
                  %4351 = vst [vmem:[%s3843 + $0xfa8] sm:$0xff] %v4350
                  %v4352 = vld [vmem:[%s3842 + $0x7f0] sm:$0xff]
                  %4353 = vst [vmem:[%s3843 + $0xfb0] sm:$0xff] %v4352
                  %v4354 = vld [vmem:[%s3842 + $0x7f8] sm:$0xff]
                  %4355 = vst [vmem:[%s3843 + $0xfb8] sm:$0xff] %v4354
                $region117: #{network_forward.1} parent=111 // loop_footer
                  %s3841 = sadd.s32 1, %s3837
                $region118: #{network_forward.1} parent=111 // loop_footer_branch
                  %3836 = sbr.rel target = $region114
                $region119: #{network_forward.1} parent=111 // loop_exit
                  _
              $region112: #{network_forward.1} parent=96 // pred_fallthru
                _
              // Predicated region
              $region120: #{network_forward.1} parent=96 // pred_check
                _
              $region121: #{network_forward.1} parent=96 // pred_check_branch
                %4357 = sbr.rel target = $region123
              $region122: #{network_forward.1} parent=96 // pred_region
                _
              $region123: #{network_forward.1} parent=96 // pred_fallthru
                _
            $region97: #{network_forward.1} parent=92 // pred_fallthru
              _
            // Predicated region
            $region98: #{network_forward.1} parent=92 // pred_check
              _
            $region99: #{network_forward.1} parent=92 // pred_check_branch
              %3312 = sbr.rel target = $region101
            $region100: #{network_forward.1} parent=92 // pred_region
              loop: start=0, step=1, limit=1
              $region102: #{network_forward.1} parent=100 // loop_pre_header
                _
              $region103: #{network_forward.1} parent=100 // loop_header
                %s3315 = sphi 0, %s3319
                %p3316 = scmp.ge.s32.totalorder %s3315, 1
                %s3320 = sphi %s3290, %s3290
                %s3321 = sphi %s3306, %s3306
              $region104: #{network_forward.1} parent=100 // loop_header_branch
                %3318 = sbr.rel (%p3316) target = $region108
              $region105: #{network_forward.1} parent=100 // loop_body
                %v3322 = vld [vmem:[%s3320] sm:$0xff]
                %3323 = vst [vmem:[%s3321] sm:$0xff] %v3322
                %v3324 = vld [vmem:[%s3320 + $0x8] sm:$0xff]
                %3325 = vst [vmem:[%s3321 + $0x8] sm:$0xff] %v3324
                %v3326 = vld [vmem:[%s3320 + $0x10] sm:$0xff]
                %3327 = vst [vmem:[%s3321 + $0x10] sm:$0xff] %v3326
                %v3328 = vld [vmem:[%s3320 + $0x18] sm:$0xff]
                %3329 = vst [vmem:[%s3321 + $0x18] sm:$0xff] %v3328
                %v3330 = vld [vmem:[%s3320 + $0x20] sm:$0xff]
                %3331 = vst [vmem:[%s3321 + $0x20] sm:$0xff] %v3330
                %v3332 = vld [vmem:[%s3320 + $0x28] sm:$0xff]
                %3333 = vst [vmem:[%s3321 + $0x28] sm:$0xff] %v3332
                %v3334 = vld [vmem:[%s3320 + $0x30] sm:$0xff]
                %3335 = vst [vmem:[%s3321 + $0x30] sm:$0xff] %v3334
                %v3336 = vld [vmem:[%s3320 + $0x38] sm:$0xff]
                %3337 = vst [vmem:[%s3321 + $0x38] sm:$0xff] %v3336
                %v3338 = vld [vmem:[%s3320 + $0x40] sm:$0xff]
                %3339 = vst [vmem:[%s3321 + $0x80] sm:$0xff] %v3338
                %v3340 = vld [vmem:[%s3320 + $0x48] sm:$0xff]
                %3341 = vst [vmem:[%s3321 + $0x88] sm:$0xff] %v3340
                %v3342 = vld [vmem:[%s3320 + $0x50] sm:$0xff]
                %3343 = vst [vmem:[%s3321 + $0x90] sm:$0xff] %v3342
                %v3344 = vld [vmem:[%s3320 + $0x58] sm:$0xff]
                %3345 = vst [vmem:[%s3321 + $0x98] sm:$0xff] %v3344
                %v3346 = vld [vmem:[%s3320 + $0x60] sm:$0xff]
                %3347 = vst [vmem:[%s3321 + $0xa0] sm:$0xff] %v3346
                %v3348 = vld [vmem:[%s3320 + $0x68] sm:$0xff]
                %3349 = vst [vmem:[%s3321 + $0xa8] sm:$0xff] %v3348
                %v3350 = vld [vmem:[%s3320 + $0x70] sm:$0xff]
                %3351 = vst [vmem:[%s3321 + $0xb0] sm:$0xff] %v3350
                %v3352 = vld [vmem:[%s3320 + $0x78] sm:$0xff]
                %3353 = vst [vmem:[%s3321 + $0xb8] sm:$0xff] %v3352
                %v3354 = vld [vmem:[%s3320 + $0x80] sm:$0xff]
                %3355 = vst [vmem:[%s3321 + $0x100] sm:$0xff] %v3354
                %v3356 = vld [vmem:[%s3320 + $0x88] sm:$0xff]
                %3357 = vst [vmem:[%s3321 + $0x108] sm:$0xff] %v3356
                %v3358 = vld [vmem:[%s3320 + $0x90] sm:$0xff]
                %3359 = vst [vmem:[%s3321 + $0x110] sm:$0xff] %v3358
                %v3360 = vld [vmem:[%s3320 + $0x98] sm:$0xff]
                %3361 = vst [vmem:[%s3321 + $0x118] sm:$0xff] %v3360
                %v3362 = vld [vmem:[%s3320 + $0xa0] sm:$0xff]
                %3363 = vst [vmem:[%s3321 + $0x120] sm:$0xff] %v3362
                %v3364 = vld [vmem:[%s3320 + $0xa8] sm:$0xff]
                %3365 = vst [vmem:[%s3321 + $0x128] sm:$0xff] %v3364
                %v3366 = vld [vmem:[%s3320 + $0xb0] sm:$0xff]
                %3367 = vst [vmem:[%s3321 + $0x130] sm:$0xff] %v3366
                %v3368 = vld [vmem:[%s3320 + $0xb8] sm:$0xff]
                %3369 = vst [vmem:[%s3321 + $0x138] sm:$0xff] %v3368
                %v3370 = vld [vmem:[%s3320 + $0xc0] sm:$0xff]
                %3371 = vst [vmem:[%s3321 + $0x180] sm:$0xff] %v3370
                %v3372 = vld [vmem:[%s3320 + $0xc8] sm:$0xff]
                %3373 = vst [vmem:[%s3321 + $0x188] sm:$0xff] %v3372
                %v3374 = vld [vmem:[%s3320 + $0xd0] sm:$0xff]
                %3375 = vst [vmem:[%s3321 + $0x190] sm:$0xff] %v3374
                %v3376 = vld [vmem:[%s3320 + $0xd8] sm:$0xff]
                %3377 = vst [vmem:[%s3321 + $0x198] sm:$0xff] %v3376
                %v3378 = vld [vmem:[%s3320 + $0xe0] sm:$0xff]
                %3379 = vst [vmem:[%s3321 + $0x1a0] sm:$0xff] %v3378
                %v3380 = vld [vmem:[%s3320 + $0xe8] sm:$0xff]
                %3381 = vst [vmem:[%s3321 + $0x1a8] sm:$0xff] %v3380
                %v3382 = vld [vmem:[%s3320 + $0xf0] sm:$0xff]
                %3383 = vst [vmem:[%s3321 + $0x1b0] sm:$0xff] %v3382
                %v3384 = vld [vmem:[%s3320 + $0xf8] sm:$0xff]
                %3385 = vst [vmem:[%s3321 + $0x1b8] sm:$0xff] %v3384
                %v3386 = vld [vmem:[%s3320 + $0x100] sm:$0xff]
                %3387 = vst [vmem:[%s3321 + $0x200] sm:$0xff] %v3386
                %v3388 = vld [vmem:[%s3320 + $0x108] sm:$0xff]
                %3389 = vst [vmem:[%s3321 + $0x208] sm:$0xff] %v3388
                %v3390 = vld [vmem:[%s3320 + $0x110] sm:$0xff]
                %3391 = vst [vmem:[%s3321 + $0x210] sm:$0xff] %v3390
                %v3392 = vld [vmem:[%s3320 + $0x118] sm:$0xff]
                %3393 = vst [vmem:[%s3321 + $0x218] sm:$0xff] %v3392
                %v3394 = vld [vmem:[%s3320 + $0x120] sm:$0xff]
                %3395 = vst [vmem:[%s3321 + $0x220] sm:$0xff] %v3394
                %v3396 = vld [vmem:[%s3320 + $0x128] sm:$0xff]
                %3397 = vst [vmem:[%s3321 + $0x228] sm:$0xff] %v3396
                %v3398 = vld [vmem:[%s3320 + $0x130] sm:$0xff]
                %3399 = vst [vmem:[%s3321 + $0x230] sm:$0xff] %v3398
                %v3400 = vld [vmem:[%s3320 + $0x138] sm:$0xff]
                %3401 = vst [vmem:[%s3321 + $0x238] sm:$0xff] %v3400
                %v3402 = vld [vmem:[%s3320 + $0x140] sm:$0xff]
                %3403 = vst [vmem:[%s3321 + $0x280] sm:$0xff] %v3402
                %v3404 = vld [vmem:[%s3320 + $0x148] sm:$0xff]
                %3405 = vst [vmem:[%s3321 + $0x288] sm:$0xff] %v3404
                %v3406 = vld [vmem:[%s3320 + $0x150] sm:$0xff]
                %3407 = vst [vmem:[%s3321 + $0x290] sm:$0xff] %v3406
                %v3408 = vld [vmem:[%s3320 + $0x158] sm:$0xff]
                %3409 = vst [vmem:[%s3321 + $0x298] sm:$0xff] %v3408
                %v3410 = vld [vmem:[%s3320 + $0x160] sm:$0xff]
                %3411 = vst [vmem:[%s3321 + $0x2a0] sm:$0xff] %v3410
                %v3412 = vld [vmem:[%s3320 + $0x168] sm:$0xff]
                %3413 = vst [vmem:[%s3321 + $0x2a8] sm:$0xff] %v3412
                %v3414 = vld [vmem:[%s3320 + $0x170] sm:$0xff]
                %3415 = vst [vmem:[%s3321 + $0x2b0] sm:$0xff] %v3414
                %v3416 = vld [vmem:[%s3320 + $0x178] sm:$0xff]
                %3417 = vst [vmem:[%s3321 + $0x2b8] sm:$0xff] %v3416
                %v3418 = vld [vmem:[%s3320 + $0x180] sm:$0xff]
                %3419 = vst [vmem:[%s3321 + $0x300] sm:$0xff] %v3418
                %v3420 = vld [vmem:[%s3320 + $0x188] sm:$0xff]
                %3421 = vst [vmem:[%s3321 + $0x308] sm:$0xff] %v3420
                %v3422 = vld [vmem:[%s3320 + $0x190] sm:$0xff]
                %3423 = vst [vmem:[%s3321 + $0x310] sm:$0xff] %v3422
                %v3424 = vld [vmem:[%s3320 + $0x198] sm:$0xff]
                %3425 = vst [vmem:[%s3321 + $0x318] sm:$0xff] %v3424
                %v3426 = vld [vmem:[%s3320 + $0x1a0] sm:$0xff]
                %3427 = vst [vmem:[%s3321 + $0x320] sm:$0xff] %v3426
                %v3428 = vld [vmem:[%s3320 + $0x1a8] sm:$0xff]
                %3429 = vst [vmem:[%s3321 + $0x328] sm:$0xff] %v3428
                %v3430 = vld [vmem:[%s3320 + $0x1b0] sm:$0xff]
                %3431 = vst [vmem:[%s3321 + $0x330] sm:$0xff] %v3430
                %v3432 = vld [vmem:[%s3320 + $0x1b8] sm:$0xff]
                %3433 = vst [vmem:[%s3321 + $0x338] sm:$0xff] %v3432
                %v3434 = vld [vmem:[%s3320 + $0x1c0] sm:$0xff]
                %3435 = vst [vmem:[%s3321 + $0x380] sm:$0xff] %v3434
                %v3436 = vld [vmem:[%s3320 + $0x1c8] sm:$0xff]
                %3437 = vst [vmem:[%s3321 + $0x388] sm:$0xff] %v3436
                %v3438 = vld [vmem:[%s3320 + $0x1d0] sm:$0xff]
                %3439 = vst [vmem:[%s3321 + $0x390] sm:$0xff] %v3438
                %v3440 = vld [vmem:[%s3320 + $0x1d8] sm:$0xff]
                %3441 = vst [vmem:[%s3321 + $0x398] sm:$0xff] %v3440
                %v3442 = vld [vmem:[%s3320 + $0x1e0] sm:$0xff]
                %3443 = vst [vmem:[%s3321 + $0x3a0] sm:$0xff] %v3442
                %v3444 = vld [vmem:[%s3320 + $0x1e8] sm:$0xff]
                %3445 = vst [vmem:[%s3321 + $0x3a8] sm:$0xff] %v3444
                %v3446 = vld [vmem:[%s3320 + $0x1f0] sm:$0xff]
                %3447 = vst [vmem:[%s3321 + $0x3b0] sm:$0xff] %v3446
                %v3448 = vld [vmem:[%s3320 + $0x1f8] sm:$0xff]
                %3449 = vst [vmem:[%s3321 + $0x3b8] sm:$0xff] %v3448
                %v3450 = vld [vmem:[%s3320 + $0x200] sm:$0xff]
                %3451 = vst [vmem:[%s3321 + $0x400] sm:$0xff] %v3450
                %v3452 = vld [vmem:[%s3320 + $0x208] sm:$0xff]
                %3453 = vst [vmem:[%s3321 + $0x408] sm:$0xff] %v3452
                %v3454 = vld [vmem:[%s3320 + $0x210] sm:$0xff]
                %3455 = vst [vmem:[%s3321 + $0x410] sm:$0xff] %v3454
                %v3456 = vld [vmem:[%s3320 + $0x218] sm:$0xff]
                %3457 = vst [vmem:[%s3321 + $0x418] sm:$0xff] %v3456
                %v3458 = vld [vmem:[%s3320 + $0x220] sm:$0xff]
                %3459 = vst [vmem:[%s3321 + $0x420] sm:$0xff] %v3458
                %v3460 = vld [vmem:[%s3320 + $0x228] sm:$0xff]
                %3461 = vst [vmem:[%s3321 + $0x428] sm:$0xff] %v3460
                %v3462 = vld [vmem:[%s3320 + $0x230] sm:$0xff]
                %3463 = vst [vmem:[%s3321 + $0x430] sm:$0xff] %v3462
                %v3464 = vld [vmem:[%s3320 + $0x238] sm:$0xff]
                %3465 = vst [vmem:[%s3321 + $0x438] sm:$0xff] %v3464
                %v3466 = vld [vmem:[%s3320 + $0x240] sm:$0xff]
                %3467 = vst [vmem:[%s3321 + $0x480] sm:$0xff] %v3466
                %v3468 = vld [vmem:[%s3320 + $0x248] sm:$0xff]
                %3469 = vst [vmem:[%s3321 + $0x488] sm:$0xff] %v3468
                %v3470 = vld [vmem:[%s3320 + $0x250] sm:$0xff]
                %3471 = vst [vmem:[%s3321 + $0x490] sm:$0xff] %v3470
                %v3472 = vld [vmem:[%s3320 + $0x258] sm:$0xff]
                %3473 = vst [vmem:[%s3321 + $0x498] sm:$0xff] %v3472
                %v3474 = vld [vmem:[%s3320 + $0x260] sm:$0xff]
                %3475 = vst [vmem:[%s3321 + $0x4a0] sm:$0xff] %v3474
                %v3476 = vld [vmem:[%s3320 + $0x268] sm:$0xff]
                %3477 = vst [vmem:[%s3321 + $0x4a8] sm:$0xff] %v3476
                %v3478 = vld [vmem:[%s3320 + $0x270] sm:$0xff]
                %3479 = vst [vmem:[%s3321 + $0x4b0] sm:$0xff] %v3478
                %v3480 = vld [vmem:[%s3320 + $0x278] sm:$0xff]
                %3481 = vst [vmem:[%s3321 + $0x4b8] sm:$0xff] %v3480
                %v3482 = vld [vmem:[%s3320 + $0x280] sm:$0xff]
                %3483 = vst [vmem:[%s3321 + $0x500] sm:$0xff] %v3482
                %v3484 = vld [vmem:[%s3320 + $0x288] sm:$0xff]
                %3485 = vst [vmem:[%s3321 + $0x508] sm:$0xff] %v3484
                %v3486 = vld [vmem:[%s3320 + $0x290] sm:$0xff]
                %3487 = vst [vmem:[%s3321 + $0x510] sm:$0xff] %v3486
                %v3488 = vld [vmem:[%s3320 + $0x298] sm:$0xff]
                %3489 = vst [vmem:[%s3321 + $0x518] sm:$0xff] %v3488
                %v3490 = vld [vmem:[%s3320 + $0x2a0] sm:$0xff]
                %3491 = vst [vmem:[%s3321 + $0x520] sm:$0xff] %v3490
                %v3492 = vld [vmem:[%s3320 + $0x2a8] sm:$0xff]
                %3493 = vst [vmem:[%s3321 + $0x528] sm:$0xff] %v3492
                %v3494 = vld [vmem:[%s3320 + $0x2b0] sm:$0xff]
                %3495 = vst [vmem:[%s3321 + $0x530] sm:$0xff] %v3494
                %v3496 = vld [vmem:[%s3320 + $0x2b8] sm:$0xff]
                %3497 = vst [vmem:[%s3321 + $0x538] sm:$0xff] %v3496
                %v3498 = vld [vmem:[%s3320 + $0x2c0] sm:$0xff]
                %3499 = vst [vmem:[%s3321 + $0x580] sm:$0xff] %v3498
                %v3500 = vld [vmem:[%s3320 + $0x2c8] sm:$0xff]
                %3501 = vst [vmem:[%s3321 + $0x588] sm:$0xff] %v3500
                %v3502 = vld [vmem:[%s3320 + $0x2d0] sm:$0xff]
                %3503 = vst [vmem:[%s3321 + $0x590] sm:$0xff] %v3502
                %v3504 = vld [vmem:[%s3320 + $0x2d8] sm:$0xff]
                %3505 = vst [vmem:[%s3321 + $0x598] sm:$0xff] %v3504
                %v3506 = vld [vmem:[%s3320 + $0x2e0] sm:$0xff]
                %3507 = vst [vmem:[%s3321 + $0x5a0] sm:$0xff] %v3506
                %v3508 = vld [vmem:[%s3320 + $0x2e8] sm:$0xff]
                %3509 = vst [vmem:[%s3321 + $0x5a8] sm:$0xff] %v3508
                %v3510 = vld [vmem:[%s3320 + $0x2f0] sm:$0xff]
                %3511 = vst [vmem:[%s3321 + $0x5b0] sm:$0xff] %v3510
                %v3512 = vld [vmem:[%s3320 + $0x2f8] sm:$0xff]
                %3513 = vst [vmem:[%s3321 + $0x5b8] sm:$0xff] %v3512
                %v3514 = vld [vmem:[%s3320 + $0x300] sm:$0xff]
                %3515 = vst [vmem:[%s3321 + $0x600] sm:$0xff] %v3514
                %v3516 = vld [vmem:[%s3320 + $0x308] sm:$0xff]
                %3517 = vst [vmem:[%s3321 + $0x608] sm:$0xff] %v3516
                %v3518 = vld [vmem:[%s3320 + $0x310] sm:$0xff]
                %3519 = vst [vmem:[%s3321 + $0x610] sm:$0xff] %v3518
                %v3520 = vld [vmem:[%s3320 + $0x318] sm:$0xff]
                %3521 = vst [vmem:[%s3321 + $0x618] sm:$0xff] %v3520
                %v3522 = vld [vmem:[%s3320 + $0x320] sm:$0xff]
                %3523 = vst [vmem:[%s3321 + $0x620] sm:$0xff] %v3522
                %v3524 = vld [vmem:[%s3320 + $0x328] sm:$0xff]
                %3525 = vst [vmem:[%s3321 + $0x628] sm:$0xff] %v3524
                %v3526 = vld [vmem:[%s3320 + $0x330] sm:$0xff]
                %3527 = vst [vmem:[%s3321 + $0x630] sm:$0xff] %v3526
                %v3528 = vld [vmem:[%s3320 + $0x338] sm:$0xff]
                %3529 = vst [vmem:[%s3321 + $0x638] sm:$0xff] %v3528
                %v3530 = vld [vmem:[%s3320 + $0x340] sm:$0xff]
                %3531 = vst [vmem:[%s3321 + $0x680] sm:$0xff] %v3530
                %v3532 = vld [vmem:[%s3320 + $0x348] sm:$0xff]
                %3533 = vst [vmem:[%s3321 + $0x688] sm:$0xff] %v3532
                %v3534 = vld [vmem:[%s3320 + $0x350] sm:$0xff]
                %3535 = vst [vmem:[%s3321 + $0x690] sm:$0xff] %v3534
                %v3536 = vld [vmem:[%s3320 + $0x358] sm:$0xff]
                %3537 = vst [vmem:[%s3321 + $0x698] sm:$0xff] %v3536
                %v3538 = vld [vmem:[%s3320 + $0x360] sm:$0xff]
                %3539 = vst [vmem:[%s3321 + $0x6a0] sm:$0xff] %v3538
                %v3540 = vld [vmem:[%s3320 + $0x368] sm:$0xff]
                %3541 = vst [vmem:[%s3321 + $0x6a8] sm:$0xff] %v3540
                %v3542 = vld [vmem:[%s3320 + $0x370] sm:$0xff]
                %3543 = vst [vmem:[%s3321 + $0x6b0] sm:$0xff] %v3542
                %v3544 = vld [vmem:[%s3320 + $0x378] sm:$0xff]
                %3545 = vst [vmem:[%s3321 + $0x6b8] sm:$0xff] %v3544
                %v3546 = vld [vmem:[%s3320 + $0x380] sm:$0xff]
                %3547 = vst [vmem:[%s3321 + $0x700] sm:$0xff] %v3546
                %v3548 = vld [vmem:[%s3320 + $0x388] sm:$0xff]
                %3549 = vst [vmem:[%s3321 + $0x708] sm:$0xff] %v3548
                %v3550 = vld [vmem:[%s3320 + $0x390] sm:$0xff]
                %3551 = vst [vmem:[%s3321 + $0x710] sm:$0xff] %v3550
                %v3552 = vld [vmem:[%s3320 + $0x398] sm:$0xff]
                %3553 = vst [vmem:[%s3321 + $0x718] sm:$0xff] %v3552
                %v3554 = vld [vmem:[%s3320 + $0x3a0] sm:$0xff]
                %3555 = vst [vmem:[%s3321 + $0x720] sm:$0xff] %v3554
                %v3556 = vld [vmem:[%s3320 + $0x3a8] sm:$0xff]
                %3557 = vst [vmem:[%s3321 + $0x728] sm:$0xff] %v3556
                %v3558 = vld [vmem:[%s3320 + $0x3b0] sm:$0xff]
                %3559 = vst [vmem:[%s3321 + $0x730] sm:$0xff] %v3558
                %v3560 = vld [vmem:[%s3320 + $0x3b8] sm:$0xff]
                %3561 = vst [vmem:[%s3321 + $0x738] sm:$0xff] %v3560
                %v3562 = vld [vmem:[%s3320 + $0x3c0] sm:$0xff]
                %3563 = vst [vmem:[%s3321 + $0x780] sm:$0xff] %v3562
                %v3564 = vld [vmem:[%s3320 + $0x3c8] sm:$0xff]
                %3565 = vst [vmem:[%s3321 + $0x788] sm:$0xff] %v3564
                %v3566 = vld [vmem:[%s3320 + $0x3d0] sm:$0xff]
                %3567 = vst [vmem:[%s3321 + $0x790] sm:$0xff] %v3566
                %v3568 = vld [vmem:[%s3320 + $0x3d8] sm:$0xff]
                %3569 = vst [vmem:[%s3321 + $0x798] sm:$0xff] %v3568
                %v3570 = vld [vmem:[%s3320 + $0x3e0] sm:$0xff]
                %3571 = vst [vmem:[%s3321 + $0x7a0] sm:$0xff] %v3570
                %v3572 = vld [vmem:[%s3320 + $0x3e8] sm:$0xff]
                %3573 = vst [vmem:[%s3321 + $0x7a8] sm:$0xff] %v3572
                %v3574 = vld [vmem:[%s3320 + $0x3f0] sm:$0xff]
                %3575 = vst [vmem:[%s3321 + $0x7b0] sm:$0xff] %v3574
                %v3576 = vld [vmem:[%s3320 + $0x3f8] sm:$0xff]
                %3577 = vst [vmem:[%s3321 + $0x7b8] sm:$0xff] %v3576
                %v3578 = vld [vmem:[%s3320 + $0x400] sm:$0xff]
                %3579 = vst [vmem:[%s3321 + $0x800] sm:$0xff] %v3578
                %v3580 = vld [vmem:[%s3320 + $0x408] sm:$0xff]
                %3581 = vst [vmem:[%s3321 + $0x808] sm:$0xff] %v3580
                %v3582 = vld [vmem:[%s3320 + $0x410] sm:$0xff]
                %3583 = vst [vmem:[%s3321 + $0x810] sm:$0xff] %v3582
                %v3584 = vld [vmem:[%s3320 + $0x418] sm:$0xff]
                %3585 = vst [vmem:[%s3321 + $0x818] sm:$0xff] %v3584
                %v3586 = vld [vmem:[%s3320 + $0x420] sm:$0xff]
                %3587 = vst [vmem:[%s3321 + $0x820] sm:$0xff] %v3586
                %v3588 = vld [vmem:[%s3320 + $0x428] sm:$0xff]
                %3589 = vst [vmem:[%s3321 + $0x828] sm:$0xff] %v3588
                %v3590 = vld [vmem:[%s3320 + $0x430] sm:$0xff]
                %3591 = vst [vmem:[%s3321 + $0x830] sm:$0xff] %v3590
                %v3592 = vld [vmem:[%s3320 + $0x438] sm:$0xff]
                %3593 = vst [vmem:[%s3321 + $0x838] sm:$0xff] %v3592
                %v3594 = vld [vmem:[%s3320 + $0x440] sm:$0xff]
                %3595 = vst [vmem:[%s3321 + $0x880] sm:$0xff] %v3594
                %v3596 = vld [vmem:[%s3320 + $0x448] sm:$0xff]
                %3597 = vst [vmem:[%s3321 + $0x888] sm:$0xff] %v3596
                %v3598 = vld [vmem:[%s3320 + $0x450] sm:$0xff]
                %3599 = vst [vmem:[%s3321 + $0x890] sm:$0xff] %v3598
                %v3600 = vld [vmem:[%s3320 + $0x458] sm:$0xff]
                %3601 = vst [vmem:[%s3321 + $0x898] sm:$0xff] %v3600
                %v3602 = vld [vmem:[%s3320 + $0x460] sm:$0xff]
                %3603 = vst [vmem:[%s3321 + $0x8a0] sm:$0xff] %v3602
                %v3604 = vld [vmem:[%s3320 + $0x468] sm:$0xff]
                %3605 = vst [vmem:[%s3321 + $0x8a8] sm:$0xff] %v3604
                %v3606 = vld [vmem:[%s3320 + $0x470] sm:$0xff]
                %3607 = vst [vmem:[%s3321 + $0x8b0] sm:$0xff] %v3606
                %v3608 = vld [vmem:[%s3320 + $0x478] sm:$0xff]
                %3609 = vst [vmem:[%s3321 + $0x8b8] sm:$0xff] %v3608
                %v3610 = vld [vmem:[%s3320 + $0x480] sm:$0xff]
                %3611 = vst [vmem:[%s3321 + $0x900] sm:$0xff] %v3610
                %v3612 = vld [vmem:[%s3320 + $0x488] sm:$0xff]
                %3613 = vst [vmem:[%s3321 + $0x908] sm:$0xff] %v3612
                %v3614 = vld [vmem:[%s3320 + $0x490] sm:$0xff]
                %3615 = vst [vmem:[%s3321 + $0x910] sm:$0xff] %v3614
                %v3616 = vld [vmem:[%s3320 + $0x498] sm:$0xff]
                %3617 = vst [vmem:[%s3321 + $0x918] sm:$0xff] %v3616
                %v3618 = vld [vmem:[%s3320 + $0x4a0] sm:$0xff]
                %3619 = vst [vmem:[%s3321 + $0x920] sm:$0xff] %v3618
                %v3620 = vld [vmem:[%s3320 + $0x4a8] sm:$0xff]
                %3621 = vst [vmem:[%s3321 + $0x928] sm:$0xff] %v3620
                %v3622 = vld [vmem:[%s3320 + $0x4b0] sm:$0xff]
                %3623 = vst [vmem:[%s3321 + $0x930] sm:$0xff] %v3622
                %v3624 = vld [vmem:[%s3320 + $0x4b8] sm:$0xff]
                %3625 = vst [vmem:[%s3321 + $0x938] sm:$0xff] %v3624
                %v3626 = vld [vmem:[%s3320 + $0x4c0] sm:$0xff]
                %3627 = vst [vmem:[%s3321 + $0x980] sm:$0xff] %v3626
                %v3628 = vld [vmem:[%s3320 + $0x4c8] sm:$0xff]
                %3629 = vst [vmem:[%s3321 + $0x988] sm:$0xff] %v3628
                %v3630 = vld [vmem:[%s3320 + $0x4d0] sm:$0xff]
                %3631 = vst [vmem:[%s3321 + $0x990] sm:$0xff] %v3630
                %v3632 = vld [vmem:[%s3320 + $0x4d8] sm:$0xff]
                %3633 = vst [vmem:[%s3321 + $0x998] sm:$0xff] %v3632
                %v3634 = vld [vmem:[%s3320 + $0x4e0] sm:$0xff]
                %3635 = vst [vmem:[%s3321 + $0x9a0] sm:$0xff] %v3634
                %v3636 = vld [vmem:[%s3320 + $0x4e8] sm:$0xff]
                %3637 = vst [vmem:[%s3321 + $0x9a8] sm:$0xff] %v3636
                %v3638 = vld [vmem:[%s3320 + $0x4f0] sm:$0xff]
                %3639 = vst [vmem:[%s3321 + $0x9b0] sm:$0xff] %v3638
                %v3640 = vld [vmem:[%s3320 + $0x4f8] sm:$0xff]
                %3641 = vst [vmem:[%s3321 + $0x9b8] sm:$0xff] %v3640
                %v3642 = vld [vmem:[%s3320 + $0x500] sm:$0xff]
                %3643 = vst [vmem:[%s3321 + $0xa00] sm:$0xff] %v3642
                %v3644 = vld [vmem:[%s3320 + $0x508] sm:$0xff]
                %3645 = vst [vmem:[%s3321 + $0xa08] sm:$0xff] %v3644
                %v3646 = vld [vmem:[%s3320 + $0x510] sm:$0xff]
                %3647 = vst [vmem:[%s3321 + $0xa10] sm:$0xff] %v3646
                %v3648 = vld [vmem:[%s3320 + $0x518] sm:$0xff]
                %3649 = vst [vmem:[%s3321 + $0xa18] sm:$0xff] %v3648
                %v3650 = vld [vmem:[%s3320 + $0x520] sm:$0xff]
                %3651 = vst [vmem:[%s3321 + $0xa20] sm:$0xff] %v3650
                %v3652 = vld [vmem:[%s3320 + $0x528] sm:$0xff]
                %3653 = vst [vmem:[%s3321 + $0xa28] sm:$0xff] %v3652
                %v3654 = vld [vmem:[%s3320 + $0x530] sm:$0xff]
                %3655 = vst [vmem:[%s3321 + $0xa30] sm:$0xff] %v3654
                %v3656 = vld [vmem:[%s3320 + $0x538] sm:$0xff]
                %3657 = vst [vmem:[%s3321 + $0xa38] sm:$0xff] %v3656
                %v3658 = vld [vmem:[%s3320 + $0x540] sm:$0xff]
                %3659 = vst [vmem:[%s3321 + $0xa80] sm:$0xff] %v3658
                %v3660 = vld [vmem:[%s3320 + $0x548] sm:$0xff]
                %3661 = vst [vmem:[%s3321 + $0xa88] sm:$0xff] %v3660
                %v3662 = vld [vmem:[%s3320 + $0x550] sm:$0xff]
                %3663 = vst [vmem:[%s3321 + $0xa90] sm:$0xff] %v3662
                %v3664 = vld [vmem:[%s3320 + $0x558] sm:$0xff]
                %3665 = vst [vmem:[%s3321 + $0xa98] sm:$0xff] %v3664
                %v3666 = vld [vmem:[%s3320 + $0x560] sm:$0xff]
                %3667 = vst [vmem:[%s3321 + $0xaa0] sm:$0xff] %v3666
                %v3668 = vld [vmem:[%s3320 + $0x568] sm:$0xff]
                %3669 = vst [vmem:[%s3321 + $0xaa8] sm:$0xff] %v3668
                %v3670 = vld [vmem:[%s3320 + $0x570] sm:$0xff]
                %3671 = vst [vmem:[%s3321 + $0xab0] sm:$0xff] %v3670
                %v3672 = vld [vmem:[%s3320 + $0x578] sm:$0xff]
                %3673 = vst [vmem:[%s3321 + $0xab8] sm:$0xff] %v3672
                %v3674 = vld [vmem:[%s3320 + $0x580] sm:$0xff]
                %3675 = vst [vmem:[%s3321 + $0xb00] sm:$0xff] %v3674
                %v3676 = vld [vmem:[%s3320 + $0x588] sm:$0xff]
                %3677 = vst [vmem:[%s3321 + $0xb08] sm:$0xff] %v3676
                %v3678 = vld [vmem:[%s3320 + $0x590] sm:$0xff]
                %3679 = vst [vmem:[%s3321 + $0xb10] sm:$0xff] %v3678
                %v3680 = vld [vmem:[%s3320 + $0x598] sm:$0xff]
                %3681 = vst [vmem:[%s3321 + $0xb18] sm:$0xff] %v3680
                %v3682 = vld [vmem:[%s3320 + $0x5a0] sm:$0xff]
                %3683 = vst [vmem:[%s3321 + $0xb20] sm:$0xff] %v3682
                %v3684 = vld [vmem:[%s3320 + $0x5a8] sm:$0xff]
                %3685 = vst [vmem:[%s3321 + $0xb28] sm:$0xff] %v3684
                %v3686 = vld [vmem:[%s3320 + $0x5b0] sm:$0xff]
                %3687 = vst [vmem:[%s3321 + $0xb30] sm:$0xff] %v3686
                %v3688 = vld [vmem:[%s3320 + $0x5b8] sm:$0xff]
                %3689 = vst [vmem:[%s3321 + $0xb38] sm:$0xff] %v3688
                %v3690 = vld [vmem:[%s3320 + $0x5c0] sm:$0xff]
                %3691 = vst [vmem:[%s3321 + $0xb80] sm:$0xff] %v3690
                %v3692 = vld [vmem:[%s3320 + $0x5c8] sm:$0xff]
                %3693 = vst [vmem:[%s3321 + $0xb88] sm:$0xff] %v3692
                %v3694 = vld [vmem:[%s3320 + $0x5d0] sm:$0xff]
                %3695 = vst [vmem:[%s3321 + $0xb90] sm:$0xff] %v3694
                %v3696 = vld [vmem:[%s3320 + $0x5d8] sm:$0xff]
                %3697 = vst [vmem:[%s3321 + $0xb98] sm:$0xff] %v3696
                %v3698 = vld [vmem:[%s3320 + $0x5e0] sm:$0xff]
                %3699 = vst [vmem:[%s3321 + $0xba0] sm:$0xff] %v3698
                %v3700 = vld [vmem:[%s3320 + $0x5e8] sm:$0xff]
                %3701 = vst [vmem:[%s3321 + $0xba8] sm:$0xff] %v3700
                %v3702 = vld [vmem:[%s3320 + $0x5f0] sm:$0xff]
                %3703 = vst [vmem:[%s3321 + $0xbb0] sm:$0xff] %v3702
                %v3704 = vld [vmem:[%s3320 + $0x5f8] sm:$0xff]
                %3705 = vst [vmem:[%s3321 + $0xbb8] sm:$0xff] %v3704
                %v3706 = vld [vmem:[%s3320 + $0x600] sm:$0xff]
                %3707 = vst [vmem:[%s3321 + $0xc00] sm:$0xff] %v3706
                %v3708 = vld [vmem:[%s3320 + $0x608] sm:$0xff]
                %3709 = vst [vmem:[%s3321 + $0xc08] sm:$0xff] %v3708
                %v3710 = vld [vmem:[%s3320 + $0x610] sm:$0xff]
                %3711 = vst [vmem:[%s3321 + $0xc10] sm:$0xff] %v3710
                %v3712 = vld [vmem:[%s3320 + $0x618] sm:$0xff]
                %3713 = vst [vmem:[%s3321 + $0xc18] sm:$0xff] %v3712
                %v3714 = vld [vmem:[%s3320 + $0x620] sm:$0xff]
                %3715 = vst [vmem:[%s3321 + $0xc20] sm:$0xff] %v3714
                %v3716 = vld [vmem:[%s3320 + $0x628] sm:$0xff]
                %3717 = vst [vmem:[%s3321 + $0xc28] sm:$0xff] %v3716
                %v3718 = vld [vmem:[%s3320 + $0x630] sm:$0xff]
                %3719 = vst [vmem:[%s3321 + $0xc30] sm:$0xff] %v3718
                %v3720 = vld [vmem:[%s3320 + $0x638] sm:$0xff]
                %3721 = vst [vmem:[%s3321 + $0xc38] sm:$0xff] %v3720
                %v3722 = vld [vmem:[%s3320 + $0x640] sm:$0xff]
                %3723 = vst [vmem:[%s3321 + $0xc80] sm:$0xff] %v3722
                %v3724 = vld [vmem:[%s3320 + $0x648] sm:$0xff]
                %3725 = vst [vmem:[%s3321 + $0xc88] sm:$0xff] %v3724
                %v3726 = vld [vmem:[%s3320 + $0x650] sm:$0xff]
                %3727 = vst [vmem:[%s3321 + $0xc90] sm:$0xff] %v3726
                %v3728 = vld [vmem:[%s3320 + $0x658] sm:$0xff]
                %3729 = vst [vmem:[%s3321 + $0xc98] sm:$0xff] %v3728
                %v3730 = vld [vmem:[%s3320 + $0x660] sm:$0xff]
                %3731 = vst [vmem:[%s3321 + $0xca0] sm:$0xff] %v3730
                %v3732 = vld [vmem:[%s3320 + $0x668] sm:$0xff]
                %3733 = vst [vmem:[%s3321 + $0xca8] sm:$0xff] %v3732
                %v3734 = vld [vmem:[%s3320 + $0x670] sm:$0xff]
                %3735 = vst [vmem:[%s3321 + $0xcb0] sm:$0xff] %v3734
                %v3736 = vld [vmem:[%s3320 + $0x678] sm:$0xff]
                %3737 = vst [vmem:[%s3321 + $0xcb8] sm:$0xff] %v3736
                %v3738 = vld [vmem:[%s3320 + $0x680] sm:$0xff]
                %3739 = vst [vmem:[%s3321 + $0xd00] sm:$0xff] %v3738
                %v3740 = vld [vmem:[%s3320 + $0x688] sm:$0xff]
                %3741 = vst [vmem:[%s3321 + $0xd08] sm:$0xff] %v3740
                %v3742 = vld [vmem:[%s3320 + $0x690] sm:$0xff]
                %3743 = vst [vmem:[%s3321 + $0xd10] sm:$0xff] %v3742
                %v3744 = vld [vmem:[%s3320 + $0x698] sm:$0xff]
                %3745 = vst [vmem:[%s3321 + $0xd18] sm:$0xff] %v3744
                %v3746 = vld [vmem:[%s3320 + $0x6a0] sm:$0xff]
                %3747 = vst [vmem:[%s3321 + $0xd20] sm:$0xff] %v3746
                %v3748 = vld [vmem:[%s3320 + $0x6a8] sm:$0xff]
                %3749 = vst [vmem:[%s3321 + $0xd28] sm:$0xff] %v3748
                %v3750 = vld [vmem:[%s3320 + $0x6b0] sm:$0xff]
                %3751 = vst [vmem:[%s3321 + $0xd30] sm:$0xff] %v3750
                %v3752 = vld [vmem:[%s3320 + $0x6b8] sm:$0xff]
                %3753 = vst [vmem:[%s3321 + $0xd38] sm:$0xff] %v3752
                %v3754 = vld [vmem:[%s3320 + $0x6c0] sm:$0xff]
                %3755 = vst [vmem:[%s3321 + $0xd80] sm:$0xff] %v3754
                %v3756 = vld [vmem:[%s3320 + $0x6c8] sm:$0xff]
                %3757 = vst [vmem:[%s3321 + $0xd88] sm:$0xff] %v3756
                %v3758 = vld [vmem:[%s3320 + $0x6d0] sm:$0xff]
                %3759 = vst [vmem:[%s3321 + $0xd90] sm:$0xff] %v3758
                %v3760 = vld [vmem:[%s3320 + $0x6d8] sm:$0xff]
                %3761 = vst [vmem:[%s3321 + $0xd98] sm:$0xff] %v3760
                %v3762 = vld [vmem:[%s3320 + $0x6e0] sm:$0xff]
                %3763 = vst [vmem:[%s3321 + $0xda0] sm:$0xff] %v3762
                %v3764 = vld [vmem:[%s3320 + $0x6e8] sm:$0xff]
                %3765 = vst [vmem:[%s3321 + $0xda8] sm:$0xff] %v3764
                %v3766 = vld [vmem:[%s3320 + $0x6f0] sm:$0xff]
                %3767 = vst [vmem:[%s3321 + $0xdb0] sm:$0xff] %v3766
                %v3768 = vld [vmem:[%s3320 + $0x6f8] sm:$0xff]
                %3769 = vst [vmem:[%s3321 + $0xdb8] sm:$0xff] %v3768
                %v3770 = vld [vmem:[%s3320 + $0x700] sm:$0xff]
                %3771 = vst [vmem:[%s3321 + $0xe00] sm:$0xff] %v3770
                %v3772 = vld [vmem:[%s3320 + $0x708] sm:$0xff]
                %3773 = vst [vmem:[%s3321 + $0xe08] sm:$0xff] %v3772
                %v3774 = vld [vmem:[%s3320 + $0x710] sm:$0xff]
                %3775 = vst [vmem:[%s3321 + $0xe10] sm:$0xff] %v3774
                %v3776 = vld [vmem:[%s3320 + $0x718] sm:$0xff]
                %3777 = vst [vmem:[%s3321 + $0xe18] sm:$0xff] %v3776
                %v3778 = vld [vmem:[%s3320 + $0x720] sm:$0xff]
                %3779 = vst [vmem:[%s3321 + $0xe20] sm:$0xff] %v3778
                %v3780 = vld [vmem:[%s3320 + $0x728] sm:$0xff]
                %3781 = vst [vmem:[%s3321 + $0xe28] sm:$0xff] %v3780
                %v3782 = vld [vmem:[%s3320 + $0x730] sm:$0xff]
                %3783 = vst [vmem:[%s3321 + $0xe30] sm:$0xff] %v3782
                %v3784 = vld [vmem:[%s3320 + $0x738] sm:$0xff]
                %3785 = vst [vmem:[%s3321 + $0xe38] sm:$0xff] %v3784
                %v3786 = vld [vmem:[%s3320 + $0x740] sm:$0xff]
                %3787 = vst [vmem:[%s3321 + $0xe80] sm:$0xff] %v3786
                %v3788 = vld [vmem:[%s3320 + $0x748] sm:$0xff]
                %3789 = vst [vmem:[%s3321 + $0xe88] sm:$0xff] %v3788
                %v3790 = vld [vmem:[%s3320 + $0x750] sm:$0xff]
                %3791 = vst [vmem:[%s3321 + $0xe90] sm:$0xff] %v3790
                %v3792 = vld [vmem:[%s3320 + $0x758] sm:$0xff]
                %3793 = vst [vmem:[%s3321 + $0xe98] sm:$0xff] %v3792
                %v3794 = vld [vmem:[%s3320 + $0x760] sm:$0xff]
                %3795 = vst [vmem:[%s3321 + $0xea0] sm:$0xff] %v3794
                %v3796 = vld [vmem:[%s3320 + $0x768] sm:$0xff]
                %3797 = vst [vmem:[%s3321 + $0xea8] sm:$0xff] %v3796
                %v3798 = vld [vmem:[%s3320 + $0x770] sm:$0xff]
                %3799 = vst [vmem:[%s3321 + $0xeb0] sm:$0xff] %v3798
                %v3800 = vld [vmem:[%s3320 + $0x778] sm:$0xff]
                %3801 = vst [vmem:[%s3321 + $0xeb8] sm:$0xff] %v3800
                %v3802 = vld [vmem:[%s3320 + $0x780] sm:$0xff]
                %3803 = vst [vmem:[%s3321 + $0xf00] sm:$0xff] %v3802
                %v3804 = vld [vmem:[%s3320 + $0x788] sm:$0xff]
                %3805 = vst [vmem:[%s3321 + $0xf08] sm:$0xff] %v3804
                %v3806 = vld [vmem:[%s3320 + $0x790] sm:$0xff]
                %3807 = vst [vmem:[%s3321 + $0xf10] sm:$0xff] %v3806
                %v3808 = vld [vmem:[%s3320 + $0x798] sm:$0xff]
                %3809 = vst [vmem:[%s3321 + $0xf18] sm:$0xff] %v3808
                %v3810 = vld [vmem:[%s3320 + $0x7a0] sm:$0xff]
                %3811 = vst [vmem:[%s3321 + $0xf20] sm:$0xff] %v3810
                %v3812 = vld [vmem:[%s3320 + $0x7a8] sm:$0xff]
                %3813 = vst [vmem:[%s3321 + $0xf28] sm:$0xff] %v3812
                %v3814 = vld [vmem:[%s3320 + $0x7b0] sm:$0xff]
                %3815 = vst [vmem:[%s3321 + $0xf30] sm:$0xff] %v3814
                %v3816 = vld [vmem:[%s3320 + $0x7b8] sm:$0xff]
                %3817 = vst [vmem:[%s3321 + $0xf38] sm:$0xff] %v3816
                %v3818 = vld [vmem:[%s3320 + $0x7c0] sm:$0xff]
                %3819 = vst [vmem:[%s3321 + $0xf80] sm:$0xff] %v3818
                %v3820 = vld [vmem:[%s3320 + $0x7c8] sm:$0xff]
                %3821 = vst [vmem:[%s3321 + $0xf88] sm:$0xff] %v3820
                %v3822 = vld [vmem:[%s3320 + $0x7d0] sm:$0xff]
                %3823 = vst [vmem:[%s3321 + $0xf90] sm:$0xff] %v3822
                %v3824 = vld [vmem:[%s3320 + $0x7d8] sm:$0xff]
                %3825 = vst [vmem:[%s3321 + $0xf98] sm:$0xff] %v3824
                %v3826 = vld [vmem:[%s3320 + $0x7e0] sm:$0xff]
                %3827 = vst [vmem:[%s3321 + $0xfa0] sm:$0xff] %v3826
                %v3828 = vld [vmem:[%s3320 + $0x7e8] sm:$0xff]
                %3829 = vst [vmem:[%s3321 + $0xfa8] sm:$0xff] %v3828
                %v3830 = vld [vmem:[%s3320 + $0x7f0] sm:$0xff]
                %3831 = vst [vmem:[%s3321 + $0xfb0] sm:$0xff] %v3830
                %v3832 = vld [vmem:[%s3320 + $0x7f8] sm:$0xff]
                %3833 = vst [vmem:[%s3321 + $0xfb8] sm:$0xff] %v3832
              $region106: #{network_forward.1} parent=100 // loop_footer
                %s3319 = sadd.s32 1, %s3315
              $region107: #{network_forward.1} parent=100 // loop_footer_branch
                %3314 = sbr.rel target = $region103
              $region108: #{network_forward.1} parent=100 // loop_exit
                _
            $region101: #{network_forward.1} parent=92 // pred_fallthru
              _
          $region93: #{network_forward.1} parent=88 // pred_fallthru
            _
          %4358 = vnop
        $region89: #{network_forward.1} parent=73 // pred_fallthru
          _
        // Predicated region
        $region124: #{network_forward.1} parent=73 // pred_check
          %p4359 = pneg %p189
        $region125: #{network_forward.1} parent=73 // pred_check_branch
          %4361 = sbr.rel (%p4359) target = $region127
        $region126: #{network_forward.1} parent=73 // pred_region
          %s4362 = smul.u32 8, %s25
          %s4364 = ssub.s32 1024, 1024
          %4365 = vsyncadd %s3292, %s4364
          %s4366 = smul.addr %s4362, 128
          %s4367 = scalar_lea.hbm %s6, %s4366
          %s4368 = sshll.u32 %s3295, 4
          %s4369 = int_to_ptr.vmem [resolvable:$true] %s4368
          %4374 = dma.vmem_to_hbm [thread:$0]  %s4369, 1024, %s4367, %s3292, 128, 128, 8
        $region127: #{network_forward.1} parent=73 // pred_fallthru
          _
        // Predicated region
        $region128: #{network_forward.1} parent=73 // pred_check
          %p4375 = pneg %p215
        $region129: #{network_forward.1} parent=73 // pred_check_branch
          %4377 = sbr.rel (%p4375) target = $region131
        $region130: #{network_forward.1} parent=73 // pred_region
          %s4378 = smul.u32 8, %s25
          %s4380 = ssub.s32 1024, 1024
          %4381 = vsyncadd %s3297, %s4380
          %s4382 = smul.addr %s4378, 128
          %s4383 = scalar_lea.hbm %s7, %s4382
          %s4384 = sshll.u32 %s3300, 4
          %s4385 = int_to_ptr.vmem [resolvable:$true] %s4384
          %4390 = dma.vmem_to_hbm [thread:$0]  %s4385, 1024, %s4383, %s3297, 128, 128, 8
        $region131: #{network_forward.1} parent=73 // pred_fallthru
          _
      $region74: #{network_forward.1} parent=5 // pred_fallthru
        _
      %p4391 = scmp.le.s32.totalorder 2, %s20
      // Predicated region
      $region132: #{network_forward.1} parent=5 // pred_check
        %p4392 = pneg %p4391
      $region133: #{network_forward.1} parent=5 // pred_check_branch
        %4394 = sbr.rel (%p4392) target = $region135
      $region134: #{network_forward.1} parent=5 // pred_region
        %s4395 = ssub.s32 %s20, 2
        // Predicated region
        $region136: #{network_forward.1} parent=134 // pred_check
          %p4396 = pneg %p169
        $region137: #{network_forward.1} parent=134 // pred_check_branch
          %4398 = sbr.rel (%p4396) target = $region139
        $region138: #{network_forward.1} parent=134 // pred_region
          %s4399 = sand.u32 %s154, 1
          %s4400 = sand.u32 %s154, 1
          %s4401 = smul.addr %s4400, 2048
          %s4402 = scalar_lea.vmem [#allocation5], %s4401
        $region139: #{network_forward.1} parent=134 // pred_fallthru
          _
        // Predicated region
        $region140: #{network_forward.1} parent=134 // pred_check
          %p4403 = pneg %p195
        $region141: #{network_forward.1} parent=134 // pred_check_branch
          %4405 = sbr.rel (%p4403) target = $region143
        $region142: #{network_forward.1} parent=134 // pred_region
          %s4406 = sand.u32 %s180, 1
          %s4407 = scalar_lea.sflag [#allocation7], %s4406
          %s4408 = sand.u32 %s180, 1
          %s4409 = smul.addr %s4408, 64
          %s4410 = scalar_lea.vmem [#allocation6], %s4409
          %4411 = dma.done %s4407, 1024
        $region143: #{network_forward.1} parent=134 // pred_fallthru
          _
        // Predicated region
        $region144: #{network_forward.1} parent=134 // pred_check
          %p4412 = pneg %p221
        $region145: #{network_forward.1} parent=134 // pred_check_branch
          %4414 = sbr.rel (%p4412) target = $region147
        $region146: #{network_forward.1} parent=134 // pred_region
          %s4415 = sand.u32 %s206, 1
          %s4416 = scalar_lea.sflag [#allocation9], %s4415
          %s4417 = sand.u32 %s206, 1
          %s4418 = smul.addr %s4417, 64
          %s4419 = scalar_lea.vmem [#allocation8], %s4418
          %4420 = dma.done %s4416, 1024
        $region147: #{network_forward.1} parent=134 // pred_fallthru
          _
      $region135: #{network_forward.1} parent=5 // pred_fallthru
        _
    $region6: #{network_forward.1} parent=1 // loop_footer
      %s24 = sadd.s32 1, %s20
    $region7: #{network_forward.1} parent=1 // loop_footer_branch
      %19 = sbr.rel target = $region3
    $region8: #{network_forward.1} parent=1 // loop_exit
      _
    %4421 = vsyncpa [#allocation7], 1
    %s4422 = scalar_lea.sflag [#allocation7], 1
    %4423 = vsyncpa %s4422, 1
    %4424 = vsyncpa [#allocation9], 1
    %s4425 = scalar_lea.sflag [#allocation9], 1
    %4426 = vsyncpa %s4425, 1

</llo_original>
